<compile_context>
chip_gen: v6e
topology: v6e:2x2x1
jax: 0.10.0
libtpu: 0.0.40
codegen_flags: <defaults>
</compile_context>

<pallas_src>
import jax
import jax.numpy as jnp
from jax.experimental import pallas as pl
from jax.experimental.pallas import tpu as pltpu
import numpy as np


def _lane_tile(a, reps):
    """Repeat `a` `reps` times along the last (lane) axis: (R, C) -> (R, reps*C)."""
    if reps == 1:
        return a
    return jnp.concatenate([a] * reps, axis=-1)


def _row_tile(a, reps):
    """Repeat `a` `reps` times along the row (sublane) axis: (N, C) -> (reps*N, C)."""
    if reps == 1:
        return a
    return jnp.concatenate([a] * reps, axis=0)


def agcrn_cell_kernel(x_ref, s_ref, sup_ref, erx_ref, ers_ref,
                      gwx_ref, gws_ref, gb_ref,
                      uwx_ref, uws_ref, ub_ref,
                      h_ref):
    R, c_in = x_ref.shape            # R = Bt * N rows (batch folded into rows)
    H = s_ref.shape[1]
    km1, N, _ = sup_ref.shape        # supports for k = 1..K-1 (identity skipped)
    K = km1 + 1
    D = erx_ref.shape[1] // c_in     # embedding dim
    Bt = R // N                      # batch elements folded into this block

    x = x_ref[...]                           # (R, c_in)    f32
    s = s_ref[...]                           # (R, H)       f32
    erx = _row_tile(erx_ref[...], Bt)        # (R, D*c_in)  f32: E[n,d] at lane d*c_in+i
    ers = _row_tile(ers_ref[...], Bt)        # (R, D*H)     f32
    sup = sup_ref[...]                       # (K-1, N, N)  bf16

    def propagate(feat):
        """[S_k @ feat_b for k=1..K-1], per-batch-row blocks re-stacked. feat: (R,C) f32."""
        feat_bf = feat.astype(jnp.bfloat16)
        outs = []
        for k in range(km1):
            rows = [jnp.dot(sup[k], feat_bf[b * N:(b + 1) * N, :],
                            preferred_element_type=jnp.float32)
                    for b in range(Bt)]
            outs.append(rows[0] if Bt == 1 else jnp.concatenate(rows, axis=0))
        return outs

    def escale(feat, erep):
        """E-scaled left operand: L[r, d*C+i] = E[n(r), d] * feat[r, i]  (bf16)."""
        return (erep * _lane_tile(feat, D)).astype(jnp.bfloat16)

    # --- Chebyshev propagation (k = 0 identity handled with the raw features). ---
    sx = propagate(x)                        # reused by gate AND candidate convs
    ss = propagate(s)

    lx = [escale(x, erx)] + [escale(v, erx) for v in sx]      # (R, D*c_in) bf16, reused twice
    lsg = [escale(s, ers)] + [escale(v, ers) for v in ss]     # (R, D*H)    bf16

    # --- gate graph conv: z_r = sigmoid(AVWGCN([x, state])) ---
    gate = _row_tile(gb_ref[...], Bt)                         # (R, 2H) f32 (bias = E @ bias_pool)
    for k in range(K):
        gate = gate + jnp.dot(lx[k], gwx_ref[k], preferred_element_type=jnp.float32)
        gate = gate + jnp.dot(lsg[k], gws_ref[k], preferred_element_type=jnp.float32)
    zr = jax.nn.sigmoid(gate)
    z = zr[:, :H]
    r = zr[:, H:]
    zs = z * s

    # --- candidate graph conv: hc = tanh(AVWGCN([x, z*state])) ---
    szs = propagate(zs)
    lsu = [escale(zs, ers)] + [escale(v, ers) for v in szs]

    cand = _row_tile(ub_ref[...], Bt)                         # (R, H) f32
    for k in range(K):
        cand = cand + jnp.dot(lx[k], uwx_ref[k], preferred_element_type=jnp.float32)
        cand = cand + jnp.dot(lsu[k], uws_ref[k], preferred_element_type=jnp.float32)
    hc = jnp.tanh(cand)

    # --- GRU mix (f32 VPU), stored as one (Bt*N, H) slab ---
    h_ref[...] = r * s + (1.0 - r) * hc


def agcrn_cell(x, state, node_emb, gate_wpool, gate_bpool, upd_wpool, upd_bpool,
               *, batch_tile=None):
    B, N, c_in = x.shape
    H = state.shape[-1]
    D = node_emb.shape[-1]
    K = gate_wpool.shape[1]
    assert K >= 2, "cheb_k >= 2 expected (identity support handled implicitly)"
    assert N % 8 == 0, "node count must be a multiple of 8 (sublane tiling)"

    f32, bf16 = jnp.float32, jnp.bfloat16

    # ---------- batch-invariant prep, hoisted out of the kernel (plain JAX) ----------
    E = node_emb.astype(f32)
    A = jax.nn.softmax(jnp.maximum(E @ E.T, 0.0), axis=1)      # adaptive adjacency
    sups = [A]
    prev2, prev = jnp.eye(N, dtype=f32), A
    for _ in range(2, K):
        nxt = 2.0 * (A @ prev) - prev2
        sups.append(nxt)
        prev2, prev = prev, nxt
    supports = jnp.stack(sups, 0).astype(bf16)                 # (K-1, N, N); identity skipped

    gate_bias = E @ gate_bpool.astype(f32)                     # (N, 2H)
    upd_bias = E @ upd_bpool.astype(f32)                       # (N, H)
    erep_x = jnp.repeat(E, c_in, axis=1)                       # (N, D*c_in): E[n,d] at d*c_in+i
    erep_s = jnp.repeat(E, H, axis=1)                          # (N, D*H)

    def split_pool(wpool):
        # (D, K, c_in+H, O) -> x-part (K, D*c_in, O) and state-part (K, D*H, O), bf16,
        # flattened (d major, i minor) to match erep_* / lane-tiled feature layout.
        w = jnp.transpose(wpool.astype(f32), (1, 0, 2, 3))     # (K, D, c_in+H, O)
        O = w.shape[-1]
        wx = w[:, :, :c_in, :].reshape(K, D * c_in, O).astype(bf16)
        ws = w[:, :, c_in:, :].reshape(K, D * H, O).astype(bf16)
        return wx, ws

    gwx, gws = split_pool(gate_wpool)
    uwx, uws = split_pool(upd_wpool)

    # ---------- batch tiling: fold Bt batch elements into the matmul row dim ----------
    if batch_tile is None:
        target = max(1, 128 // N)          # aim for >=128-row MXU slabs per grid step
        batch_tile = max(bt for bt in range(1, B + 1) if B % bt == 0 and bt <= target)
    Bt = batch_tile
    assert B % Bt == 0
    grid = (B // Bt,)

    x2 = x.reshape(B * N, c_in).astype(f32)
    s2 = state.reshape(B * N, H).astype(f32)

    # NOTE (v7x, 64 MiB VMEM): at production node counts the (K-1, N, N) supports
    # and the (R, D*H) operands must additionally be tiled over node rows and
    # vmem_limit_bytes set explicitly; at these sizes the defaults are ample.
    h2 = pl.pallas_call(
        agcrn_cell_kernel,
        out_shape=jax.ShapeDtypeStruct((B * N, H), f32),
        grid=grid,
        in_specs=[
            pl.BlockSpec((Bt * N, c_in), lambda b: (b, 0)),          # x rows
            pl.BlockSpec((Bt * N, H), lambda b: (b, 0)),             # state rows
            pl.BlockSpec((K - 1, N, N), lambda b: (0, 0, 0)),        # supports (bf16)
            pl.BlockSpec((N, D * c_in), lambda b: (0, 0)),           # E_rep (x part)
            pl.BlockSpec((N, D * H), lambda b: (0, 0)),              # E_rep (state part)
            pl.BlockSpec((K, D * c_in, 2 * H), lambda b: (0, 0, 0)), # gate W (x part)
            pl.BlockSpec((K, D * H, 2 * H), lambda b: (0, 0, 0)),    # gate W (state part)
            pl.BlockSpec((N, 2 * H), lambda b: (0, 0)),              # gate bias (E @ pool)
            pl.BlockSpec((K, D * c_in, H), lambda b: (0, 0, 0)),     # update W (x part)
            pl.BlockSpec((K, D * H, H), lambda b: (0, 0, 0)),        # update W (state part)
            pl.BlockSpec((N, H), lambda b: (0, 0)),                  # update bias
        ],
        out_specs=pl.BlockSpec((Bt * N, H), lambda b: (b, 0)),
        compiler_params=pltpu.CompilerParams(
            dimension_semantics=("parallel",)),
    )(x2, s2, supports, erep_x, erep_s, gwx, gws, gate_bias, uwx, uws, upd_bias)

    return h2.reshape(B, N, H)


# ------------------------- pure-JAX reference -------------------------
def _avwgcn_ref(x, E, wpool, bpool, K):
    N = E.shape[0]
    A = jax.nn.softmax(jnp.maximum(E @ E.T, 0.0), axis=1)
    sup = [jnp.eye(N, dtype=jnp.float32), A]
    for _ in range(2, K):
        sup.append(2.0 * A @ sup[-1] - sup[-2])
    S = jnp.stack(sup, 0)
    W = jnp.einsum('nd,dkio->nkio', E, wpool)
    b = E @ bpool
    xg = jnp.einsum('knm,bmc->bknc', S, x).transpose(0, 2, 1, 3)
    return jnp.einsum('bnki,nkio->bno', xg, W) + b


def _cell_ref(x, state, E, gW, gb, uW, ub, K, H):
    cat = jnp.concatenate([x, state], -1)
    zr = jax.nn.sigmoid(_avwgcn_ref(cat, E, gW, gb, K))
    z, r = zr[..., :H], zr[..., H:]
    cand = jnp.concatenate([x, z * state], -1)
    hc = jnp.tanh(_avwgcn_ref(cand, E, uW, ub, K))
    return r * state + (1.0 - r) * hc


if __name__ == "__main__":
    B, N, C_IN, HID, CHEB_K, EMB = 2, 16, 8, 32, 3, 8

    key = jax.random.PRNGKey(0)
    ks = jax.random.split(key, 7)
    x = jax.random.normal(ks[0], (B, N, C_IN), jnp.float32)
    state = jax.random.normal(ks[1], (B, N, HID), jnp.float32)
    node_emb = jax.random.normal(ks[2], (N, EMB), jnp.float32) * 0.5
    gate_wpool = jax.random.normal(ks[3], (EMB, CHEB_K, C_IN + HID, 2 * HID),
                                   jnp.float32) * 0.1
    gate_bpool = jax.random.normal(ks[4], (EMB, 2 * HID), jnp.float32) * 0.1
    upd_wpool = jax.random.normal(ks[5], (EMB, CHEB_K, C_IN + HID, HID),
                                  jnp.float32) * 0.1
    upd_bpool = jax.random.normal(ks[6], (EMB, HID), jnp.float32) * 0.1

    h = agcrn_cell(x, state, node_emb, gate_wpool, gate_bpool,
                   upd_wpool, upd_bpool)
    h = jax.block_until_ready(h)

    h_ref = _cell_ref(x, state, node_emb, gate_wpool, gate_bpool,
                      upd_wpool, upd_bpool, CHEB_K, HID)
    # Tolerance relaxed vs. the all-f32 version because MXU operands are bf16
    # (f32 accumulation); structural errors would be O(0.1-1), far above this.
    np.testing.assert_allclose(np.asarray(h), np.asarray(h_ref),
                               rtol=2e-2, atol=2e-2)
    print("KERNEL_OK")
</pallas_src>

<mosaic_0001>
module attributes {stable_mosaic.version = 11 : i64} {
  func.func @agcrn_cell_kernel(%arg0: i32, %arg1: memref<32x8xf32, #tpu.memory_space<vmem>>, %arg2: memref<32x32xf32, #tpu.memory_space<vmem>>, %arg3: memref<2x16x16xbf16, #tpu.memory_space<vmem>>, %arg4: memref<16x64xf32, #tpu.memory_space<vmem>>, %arg5: memref<16x256xf32, #tpu.memory_space<vmem>>, %arg6: memref<3x64x64xbf16, #tpu.memory_space<vmem>>, %arg7: memref<3x256x64xbf16, #tpu.memory_space<vmem>>, %arg8: memref<16x64xf32, #tpu.memory_space<vmem>>, %arg9: memref<3x64x32xbf16, #tpu.memory_space<vmem>>, %arg10: memref<3x256x32xbf16, #tpu.memory_space<vmem>>, %arg11: memref<16x32xf32, #tpu.memory_space<vmem>>, %arg12: memref<32x32xf32, #tpu.memory_space<vmem>>) attributes {dimension_semantics = [#tpu.dimension_semantics<parallel>], iteration_bounds = array<i64: 1>, scalar_prefetch = 0 : i64, scratch_operands = 0 : i64, tpu.core_type = #tpu.core_type<tc>, window_params = [{transform_indices = @transform_0, window_bounds = array<i64: 32, 8>}, {transform_indices = @transform_1, window_bounds = array<i64: 32, 32>}, {pipeline_mode = #tpu.pipeline_mode<synchronous>, transform_indices = @transform_2, window_bounds = array<i64: 2, 16, 16>}, {pipeline_mode = #tpu.pipeline_mode<synchronous>, transform_indices = @transform_3, window_bounds = array<i64: 16, 64>}, {pipeline_mode = #tpu.pipeline_mode<synchronous>, transform_indices = @transform_4, window_bounds = array<i64: 16, 256>}, {pipeline_mode = #tpu.pipeline_mode<synchronous>, transform_indices = @transform_5, window_bounds = array<i64: 3, 64, 64>}, {pipeline_mode = #tpu.pipeline_mode<synchronous>, transform_indices = @transform_6, window_bounds = array<i64: 3, 256, 64>}, {pipeline_mode = #tpu.pipeline_mode<synchronous>, transform_indices = @transform_7, window_bounds = array<i64: 16, 64>}, {pipeline_mode = #tpu.pipeline_mode<synchronous>, transform_indices = @transform_8, window_bounds = array<i64: 3, 64, 32>}, {pipeline_mode = #tpu.pipeline_mode<synchronous>, transform_indices = @transform_9, window_bounds = array<i64: 3, 256, 32>}, {pipeline_mode = #tpu.pipeline_mode<synchronous>, transform_indices = @transform_10, window_bounds = array<i64: 16, 32>}, {transform_indices = @transform_11, window_bounds = array<i64: 32, 32>}]} {
    %c0 = arith.constant 0 : index
    %c0_0 = arith.constant 0 : index
    %0 = vector.load %arg1[%c0, %c0_0] : memref<32x8xf32, #tpu.memory_space<vmem>>, vector<32x8xf32>
    %c0_1 = arith.constant 0 : index
    %c0_2 = arith.constant 0 : index
    %1 = vector.load %arg2[%c0_1, %c0_2] : memref<32x32xf32, #tpu.memory_space<vmem>>, vector<32x32xf32>
    %c0_3 = arith.constant 0 : index
    %c0_4 = arith.constant 0 : index
    %2 = vector.load %arg4[%c0_3, %c0_4] : memref<16x64xf32, #tpu.memory_space<vmem>>, vector<16x64xf32>
    %3 = tpu.concatenate %2, %2 in 0 : vector<16x64xf32>, vector<16x64xf32> -> vector<32x64xf32>
    %c0_5 = arith.constant 0 : index
    %c0_6 = arith.constant 0 : index
    %4 = vector.load %arg5[%c0_5, %c0_6] : memref<16x256xf32, #tpu.memory_space<vmem>>, vector<16x256xf32>
    %5 = tpu.concatenate %4, %4 in 0 : vector<16x256xf32>, vector<16x256xf32> -> vector<32x256xf32>
    %c0_7 = arith.constant 0 : index
    %c0_8 = arith.constant 0 : index
    %c0_9 = arith.constant 0 : index
    %6 = vector.load %arg3[%c0_7, %c0_8, %c0_9] : memref<2x16x16xbf16, #tpu.memory_space<vmem>>, vector<2x16x16xbf16>
    %7 = arith.truncf %0 : vector<32x8xf32> to vector<32x8xbf16>
    %8 = vector.extract_strided_slice %6 {offsets = [0, 0, 0], sizes = [1, 16, 16], strides = [1, 1, 1]} : vector<2x16x16xbf16> to vector<1x16x16xbf16>
    %9 = vector.shape_cast %8 : vector<1x16x16xbf16> to vector<16x16xbf16>
    %10 = vector.extract_strided_slice %7 {offsets = [0, 0], sizes = [16, 8], strides = [1, 1]} : vector<32x8xbf16> to vector<16x8xbf16>
    %cst = arith.constant dense<0.000000e+00> : vector<16x8xf32>
    %11 = tpu.matmul %9, %10, %cst {dimension_numbers = #tpu.dot_dimension_numbers<[1], [0], [0], [1], [0, 0, 1, 1], [], []>} : vector<16x16xbf16>, vector<16x8xbf16>, vector<16x8xf32> -> vector<16x8xf32>
    %12 = vector.extract_strided_slice %6 {offsets = [0, 0, 0], sizes = [1, 16, 16], strides = [1, 1, 1]} : vector<2x16x16xbf16> to vector<1x16x16xbf16>
    %13 = vector.shape_cast %12 : vector<1x16x16xbf16> to vector<16x16xbf16>
    %14 = vector.extract_strided_slice %7 {offsets = [16, 0], sizes = [16, 8], strides = [1, 1]} : vector<32x8xbf16> to vector<16x8xbf16>
    %cst_10 = arith.constant dense<0.000000e+00> : vector<16x8xf32>
    %15 = tpu.matmul %13, %14, %cst_10 {dimension_numbers = #tpu.dot_dimension_numbers<[1], [0], [0], [1], [0, 0, 1, 1], [], []>} : vector<16x16xbf16>, vector<16x8xbf16>, vector<16x8xf32> -> vector<16x8xf32>
    %16 = tpu.concatenate %11, %15 in 0 : vector<16x8xf32>, vector<16x8xf32> -> vector<32x8xf32>
    %17 = vector.extract_strided_slice %6 {offsets = [1, 0, 0], sizes = [1, 16, 16], strides = [1, 1, 1]} : vector<2x16x16xbf16> to vector<1x16x16xbf16>
    %18 = vector.shape_cast %17 : vector<1x16x16xbf16> to vector<16x16xbf16>
    %19 = vector.extract_strided_slice %7 {offsets = [0, 0], sizes = [16, 8], strides = [1, 1]} : vector<32x8xbf16> to vector<16x8xbf16>
    %cst_11 = arith.constant dense<0.000000e+00> : vector<16x8xf32>
    %20 = tpu.matmul %18, %19, %cst_11 {dimension_numbers = #tpu.dot_dimension_numbers<[1], [0], [0], [1], [0, 0, 1, 1], [], []>} : vector<16x16xbf16>, vector<16x8xbf16>, vector<16x8xf32> -> vector<16x8xf32>
    %21 = vector.extract_strided_slice %6 {offsets = [1, 0, 0], sizes = [1, 16, 16], strides = [1, 1, 1]} : vector<2x16x16xbf16> to vector<1x16x16xbf16>
    %22 = vector.shape_cast %21 : vector<1x16x16xbf16> to vector<16x16xbf16>
    %23 = vector.extract_strided_slice %7 {offsets = [16, 0], sizes = [16, 8], strides = [1, 1]} : vector<32x8xbf16> to vector<16x8xbf16>
    %cst_12 = arith.constant dense<0.000000e+00> : vector<16x8xf32>
    %24 = tpu.matmul %22, %23, %cst_12 {dimension_numbers = #tpu.dot_dimension_numbers<[1], [0], [0], [1], [0, 0, 1, 1], [], []>} : vector<16x16xbf16>, vector<16x8xbf16>, vector<16x8xf32> -> vector<16x8xf32>
    %25 = tpu.concatenate %20, %24 in 0 : vector<16x8xf32>, vector<16x8xf32> -> vector<32x8xf32>
    %26 = arith.truncf %1 : vector<32x32xf32> to vector<32x32xbf16>
    %27 = vector.extract_strided_slice %6 {offsets = [0, 0, 0], sizes = [1, 16, 16], strides = [1, 1, 1]} : vector<2x16x16xbf16> to vector<1x16x16xbf16>
    %28 = vector.shape_cast %27 : vector<1x16x16xbf16> to vector<16x16xbf16>
    %29 = vector.extract_strided_slice %26 {offsets = [0, 0], sizes = [16, 32], strides = [1, 1]} : vector<32x32xbf16> to vector<16x32xbf16>
    %cst_13 = arith.constant dense<0.000000e+00> : vector<16x32xf32>
    %30 = tpu.matmul %28, %29, %cst_13 {dimension_numbers = #tpu.dot_dimension_numbers<[1], [0], [0], [1], [0, 0, 1, 1], [], []>} : vector<16x16xbf16>, vector<16x32xbf16>, vector<16x32xf32> -> vector<16x32xf32>
    %31 = vector.extract_strided_slice %6 {offsets = [0, 0, 0], sizes = [1, 16, 16], strides = [1, 1, 1]} : vector<2x16x16xbf16> to vector<1x16x16xbf16>
    %32 = vector.shape_cast %31 : vector<1x16x16xbf16> to vector<16x16xbf16>
    %33 = vector.extract_strided_slice %26 {offsets = [16, 0], sizes = [16, 32], strides = [1, 1]} : vector<32x32xbf16> to vector<16x32xbf16>
    %cst_14 = arith.constant dense<0.000000e+00> : vector<16x32xf32>
    %34 = tpu.matmul %32, %33, %cst_14 {dimension_numbers = #tpu.dot_dimension_numbers<[1], [0], [0], [1], [0, 0, 1, 1], [], []>} : vector<16x16xbf16>, vector<16x32xbf16>, vector<16x32xf32> -> vector<16x32xf32>
    %35 = tpu.concatenate %30, %34 in 0 : vector<16x32xf32>, vector<16x32xf32> -> vector<32x32xf32>
    %36 = vector.extract_strided_slice %6 {offsets = [1, 0, 0], sizes = [1, 16, 16], strides = [1, 1, 1]} : vector<2x16x16xbf16> to vector<1x16x16xbf16>
    %37 = vector.shape_cast %36 : vector<1x16x16xbf16> to vector<16x16xbf16>
    %38 = vector.extract_strided_slice %26 {offsets = [0, 0], sizes = [16, 32], strides = [1, 1]} : vector<32x32xbf16> to vector<16x32xbf16>
    %cst_15 = arith.constant dense<0.000000e+00> : vector<16x32xf32>
    %39 = tpu.matmul %37, %38, %cst_15 {dimension_numbers = #tpu.dot_dimension_numbers<[1], [0], [0], [1], [0, 0, 1, 1], [], []>} : vector<16x16xbf16>, vector<16x32xbf16>, vector<16x32xf32> -> vector<16x32xf32>
    %40 = vector.extract_strided_slice %6 {offsets = [1, 0, 0], sizes = [1, 16, 16], strides = [1, 1, 1]} : vector<2x16x16xbf16> to vector<1x16x16xbf16>
    %41 = vector.shape_cast %40 : vector<1x16x16xbf16> to vector<16x16xbf16>
    %42 = vector.extract_strided_slice %26 {offsets = [16, 0], sizes = [16, 32], strides = [1, 1]} : vector<32x32xbf16> to vector<16x32xbf16>
    %cst_16 = arith.constant dense<0.000000e+00> : vector<16x32xf32>
    %43 = tpu.matmul %41, %42, %cst_16 {dimension_numbers = #tpu.dot_dimension_numbers<[1], [0], [0], [1], [0, 0, 1, 1], [], []>} : vector<16x16xbf16>, vector<16x32xbf16>, vector<16x32xf32> -> vector<16x32xf32>
    %44 = tpu.concatenate %39, %43 in 0 : vector<16x32xf32>, vector<16x32xf32> -> vector<32x32xf32>
    %45 = tpu.concatenate %0, %0, %0, %0, %0, %0, %0, %0 in 1 : vector<32x8xf32>, vector<32x8xf32>, vector<32x8xf32>, vector<32x8xf32>, vector<32x8xf32>, vector<32x8xf32>, vector<32x8xf32>, vector<32x8xf32> -> vector<32x64xf32>
    %46 = arith.mulf %3, %45 : vector<32x64xf32>
    %47 = arith.truncf %46 : vector<32x64xf32> to vector<32x64xbf16>
    %48 = tpu.concatenate %16, %16, %16, %16, %16, %16, %16, %16 in 1 : vector<32x8xf32>, vector<32x8xf32>, vector<32x8xf32>, vector<32x8xf32>, vector<32x8xf32>, vector<32x8xf32>, vector<32x8xf32>, vector<32x8xf32> -> vector<32x64xf32>
    %49 = arith.mulf %3, %48 : vector<32x64xf32>
    %50 = arith.truncf %49 : vector<32x64xf32> to vector<32x64xbf16>
    %51 = tpu.concatenate %25, %25, %25, %25, %25, %25, %25, %25 in 1 : vector<32x8xf32>, vector<32x8xf32>, vector<32x8xf32>, vector<32x8xf32>, vector<32x8xf32>, vector<32x8xf32>, vector<32x8xf32>, vector<32x8xf32> -> vector<32x64xf32>
    %52 = arith.mulf %3, %51 : vector<32x64xf32>
    %53 = arith.truncf %52 : vector<32x64xf32> to vector<32x64xbf16>
    %54 = tpu.concatenate %1, %1, %1, %1, %1, %1, %1, %1 in 1 : vector<32x32xf32>, vector<32x32xf32>, vector<32x32xf32>, vector<32x32xf32>, vector<32x32xf32>, vector<32x32xf32>, vector<32x32xf32>, vector<32x32xf32> -> vector<32x256xf32>
    %55 = arith.mulf %5, %54 : vector<32x256xf32>
    %56 = arith.truncf %55 : vector<32x256xf32> to vector<32x256xbf16>
    %57 = tpu.concatenate %35, %35, %35, %35, %35, %35, %35, %35 in 1 : vector<32x32xf32>, vector<32x32xf32>, vector<32x32xf32>, vector<32x32xf32>, vector<32x32xf32>, vector<32x32xf32>, vector<32x32xf32>, vector<32x32xf32> -> vector<32x256xf32>
    %58 = arith.mulf %5, %57 : vector<32x256xf32>
    %59 = arith.truncf %58 : vector<32x256xf32> to vector<32x256xbf16>
    %60 = tpu.concatenate %44, %44, %44, %44, %44, %44, %44, %44 in 1 : vector<32x32xf32>, vector<32x32xf32>, vector<32x32xf32>, vector<32x32xf32>, vector<32x32xf32>, vector<32x32xf32>, vector<32x32xf32>, vector<32x32xf32> -> vector<32x256xf32>
    %61 = arith.mulf %5, %60 : vector<32x256xf32>
    %62 = arith.truncf %61 : vector<32x256xf32> to vector<32x256xbf16>
    %c0_17 = arith.constant 0 : index
    %c0_18 = arith.constant 0 : index
    %63 = vector.load %arg8[%c0_17, %c0_18] : memref<16x64xf32, #tpu.memory_space<vmem>>, vector<16x64xf32>
    %64 = tpu.concatenate %63, %63 in 0 : vector<16x64xf32>, vector<16x64xf32> -> vector<32x64xf32>
    %c0_19 = arith.constant 0 : index
    %c0_20 = arith.constant 0 : index
    %c0_21 = arith.constant 0 : index
    %65 = vector.load %arg6[%c0_19, %c0_20, %c0_21] : memref<3x64x64xbf16, #tpu.memory_space<vmem>>, vector<1x64x64xbf16>
    %66 = vector.shape_cast %65 : vector<1x64x64xbf16> to vector<64x64xbf16>
    %cst_22 = arith.constant dense<0.000000e+00> : vector<32x64xf32>
    %67 = tpu.matmul %47, %66, %cst_22 {dimension_numbers = #tpu.dot_dimension_numbers<[1], [0], [0], [1], [0, 0, 1, 1], [], []>} : vector<32x64xbf16>, vector<64x64xbf16>, vector<32x64xf32> -> vector<32x64xf32>
    %68 = arith.addf %64, %67 : vector<32x64xf32>
    %c0_23 = arith.constant 0 : index
    %c0_24 = arith.constant 0 : index
    %c0_25 = arith.constant 0 : index
    %69 = vector.load %arg7[%c0_23, %c0_24, %c0_25] : memref<3x256x64xbf16, #tpu.memory_space<vmem>>, vector<1x256x64xbf16>
    %70 = vector.shape_cast %69 : vector<1x256x64xbf16> to vector<256x64xbf16>
    %cst_26 = arith.constant dense<0.000000e+00> : vector<32x64xf32>
    %71 = tpu.matmul %56, %70, %cst_26 {dimension_numbers = #tpu.dot_dimension_numbers<[1], [0], [0], [1], [0, 0, 1, 1], [], []>} : vector<32x256xbf16>, vector<256x64xbf16>, vector<32x64xf32> -> vector<32x64xf32>
    %72 = arith.addf %68, %71 : vector<32x64xf32>
    %c1 = arith.constant 1 : index
    %c0_27 = arith.constant 0 : index
    %c0_28 = arith.constant 0 : index
    %73 = vector.load %arg6[%c1, %c0_27, %c0_28] : memref<3x64x64xbf16, #tpu.memory_space<vmem>>, vector<1x64x64xbf16>
    %74 = vector.shape_cast %73 : vector<1x64x64xbf16> to vector<64x64xbf16>
    %cst_29 = arith.constant dense<0.000000e+00> : vector<32x64xf32>
    %75 = tpu.matmul %50, %74, %cst_29 {dimension_numbers = #tpu.dot_dimension_numbers<[1], [0], [0], [1], [0, 0, 1, 1], [], []>} : vector<32x64xbf16>, vector<64x64xbf16>, vector<32x64xf32> -> vector<32x64xf32>
    %76 = arith.addf %72, %75 : vector<32x64xf32>
    %c1_30 = arith.constant 1 : index
    %c0_31 = arith.constant 0 : index
    %c0_32 = arith.constant 0 : index
    %77 = vector.load %arg7[%c1_30, %c0_31, %c0_32] : memref<3x256x64xbf16, #tpu.memory_space<vmem>>, vector<1x256x64xbf16>
    %78 = vector.shape_cast %77 : vector<1x256x64xbf16> to vector<256x64xbf16>
    %cst_33 = arith.constant dense<0.000000e+00> : vector<32x64xf32>
    %79 = tpu.matmul %59, %78, %cst_33 {dimension_numbers = #tpu.dot_dimension_numbers<[1], [0], [0], [1], [0, 0, 1, 1], [], []>} : vector<32x256xbf16>, vector<256x64xbf16>, vector<32x64xf32> -> vector<32x64xf32>
    %80 = arith.addf %76, %79 : vector<32x64xf32>
    %c2 = arith.constant 2 : index
    %c0_34 = arith.constant 0 : index
    %c0_35 = arith.constant 0 : index
    %81 = vector.load %arg6[%c2, %c0_34, %c0_35] : memref<3x64x64xbf16, #tpu.memory_space<vmem>>, vector<1x64x64xbf16>
    %82 = vector.shape_cast %81 : vector<1x64x64xbf16> to vector<64x64xbf16>
    %cst_36 = arith.constant dense<0.000000e+00> : vector<32x64xf32>
    %83 = tpu.matmul %53, %82, %cst_36 {dimension_numbers = #tpu.dot_dimension_numbers<[1], [0], [0], [1], [0, 0, 1, 1], [], []>} : vector<32x64xbf16>, vector<64x64xbf16>, vector<32x64xf32> -> vector<32x64xf32>
    %84 = arith.addf %80, %83 : vector<32x64xf32>
    %c2_37 = arith.constant 2 : index
    %c0_38 = arith.constant 0 : index
    %c0_39 = arith.constant 0 : index
    %85 = vector.load %arg7[%c2_37, %c0_38, %c0_39] : memref<3x256x64xbf16, #tpu.memory_space<vmem>>, vector<1x256x64xbf16>
    %86 = vector.shape_cast %85 : vector<1x256x64xbf16> to vector<256x64xbf16>
    %cst_40 = arith.constant dense<0.000000e+00> : vector<32x64xf32>
    %87 = tpu.matmul %62, %86, %cst_40 {dimension_numbers = #tpu.dot_dimension_numbers<[1], [0], [0], [1], [0, 0, 1, 1], [], []>} : vector<32x256xbf16>, vector<256x64xbf16>, vector<32x64xf32> -> vector<32x64xf32>
    %88 = arith.addf %84, %87 : vector<32x64xf32>
    %89 = arith.negf %88 : vector<32x64xf32>
    %90 = math.exp %89 : vector<32x64xf32>
    %cst_41 = arith.constant 1.000000e+00 : f32
    %91 = vector.broadcast %cst_41 : f32 to vector<32x64xf32>
    %92 = arith.addf %91, %90 : vector<32x64xf32>
    %93 = arith.divf %91, %92 : vector<32x64xf32>
    %94 = vector.extract_strided_slice %93 {offsets = [0, 0], sizes = [32, 32], strides = [1, 1]} : vector<32x64xf32> to vector<32x32xf32>
    %95 = vector.extract_strided_slice %93 {offsets = [0, 32], sizes = [32, 32], strides = [1, 1]} : vector<32x64xf32> to vector<32x32xf32>
    %96 = arith.mulf %94, %1 : vector<32x32xf32>
    %97 = arith.truncf %96 : vector<32x32xf32> to vector<32x32xbf16>
    %98 = vector.extract_strided_slice %6 {offsets = [0, 0, 0], sizes = [1, 16, 16], strides = [1, 1, 1]} : vector<2x16x16xbf16> to vector<1x16x16xbf16>
    %99 = vector.shape_cast %98 : vector<1x16x16xbf16> to vector<16x16xbf16>
    %100 = vector.extract_strided_slice %97 {offsets = [0, 0], sizes = [16, 32], strides = [1, 1]} : vector<32x32xbf16> to vector<16x32xbf16>
    %cst_42 = arith.constant dense<0.000000e+00> : vector<16x32xf32>
    %101 = tpu.matmul %99, %100, %cst_42 {dimension_numbers = #tpu.dot_dimension_numbers<[1], [0], [0], [1], [0, 0, 1, 1], [], []>} : vector<16x16xbf16>, vector<16x32xbf16>, vector<16x32xf32> -> vector<16x32xf32>
    %102 = vector.extract_strided_slice %6 {offsets = [0, 0, 0], sizes = [1, 16, 16], strides = [1, 1, 1]} : vector<2x16x16xbf16> to vector<1x16x16xbf16>
    %103 = vector.shape_cast %102 : vector<1x16x16xbf16> to vector<16x16xbf16>
    %104 = vector.extract_strided_slice %97 {offsets = [16, 0], sizes = [16, 32], strides = [1, 1]} : vector<32x32xbf16> to vector<16x32xbf16>
    %cst_43 = arith.constant dense<0.000000e+00> : vector<16x32xf32>
    %105 = tpu.matmul %103, %104, %cst_43 {dimension_numbers = #tpu.dot_dimension_numbers<[1], [0], [0], [1], [0, 0, 1, 1], [], []>} : vector<16x16xbf16>, vector<16x32xbf16>, vector<16x32xf32> -> vector<16x32xf32>
    %106 = tpu.concatenate %101, %105 in 0 : vector<16x32xf32>, vector<16x32xf32> -> vector<32x32xf32>
    %107 = vector.extract_strided_slice %6 {offsets = [1, 0, 0], sizes = [1, 16, 16], strides = [1, 1, 1]} : vector<2x16x16xbf16> to vector<1x16x16xbf16>
    %108 = vector.shape_cast %107 : vector<1x16x16xbf16> to vector<16x16xbf16>
    %109 = vector.extract_strided_slice %97 {offsets = [0, 0], sizes = [16, 32], strides = [1, 1]} : vector<32x32xbf16> to vector<16x32xbf16>
    %cst_44 = arith.constant dense<0.000000e+00> : vector<16x32xf32>
    %110 = tpu.matmul %108, %109, %cst_44 {dimension_numbers = #tpu.dot_dimension_numbers<[1], [0], [0], [1], [0, 0, 1, 1], [], []>} : vector<16x16xbf16>, vector<16x32xbf16>, vector<16x32xf32> -> vector<16x32xf32>
    %111 = vector.extract_strided_slice %6 {offsets = [1, 0, 0], sizes = [1, 16, 16], strides = [1, 1, 1]} : vector<2x16x16xbf16> to vector<1x16x16xbf16>
    %112 = vector.shape_cast %111 : vector<1x16x16xbf16> to vector<16x16xbf16>
    %113 = vector.extract_strided_slice %97 {offsets = [16, 0], sizes = [16, 32], strides = [1, 1]} : vector<32x32xbf16> to vector<16x32xbf16>
    %cst_45 = arith.constant dense<0.000000e+00> : vector<16x32xf32>
    %114 = tpu.matmul %112, %113, %cst_45 {dimension_numbers = #tpu.dot_dimension_numbers<[1], [0], [0], [1], [0, 0, 1, 1], [], []>} : vector<16x16xbf16>, vector<16x32xbf16>, vector<16x32xf32> -> vector<16x32xf32>
    %115 = tpu.concatenate %110, %114 in 0 : vector<16x32xf32>, vector<16x32xf32> -> vector<32x32xf32>
    %116 = tpu.concatenate %96, %96, %96, %96, %96, %96, %96, %96 in 1 : vector<32x32xf32>, vector<32x32xf32>, vector<32x32xf32>, vector<32x32xf32>, vector<32x32xf32>, vector<32x32xf32>, vector<32x32xf32>, vector<32x32xf32> -> vector<32x256xf32>
    %117 = arith.mulf %5, %116 : vector<32x256xf32>
    %118 = arith.truncf %117 : vector<32x256xf32> to vector<32x256xbf16>
    %119 = tpu.concatenate %106, %106, %106, %106, %106, %106, %106, %106 in 1 : vector<32x32xf32>, vector<32x32xf32>, vector<32x32xf32>, vector<32x32xf32>, vector<32x32xf32>, vector<32x32xf32>, vector<32x32xf32>, vector<32x32xf32> -> vector<32x256xf32>
    %120 = arith.mulf %5, %119 : vector<32x256xf32>
    %121 = arith.truncf %120 : vector<32x256xf32> to vector<32x256xbf16>
    %122 = tpu.concatenate %115, %115, %115, %115, %115, %115, %115, %115 in 1 : vector<32x32xf32>, vector<32x32xf32>, vector<32x32xf32>, vector<32x32xf32>, vector<32x32xf32>, vector<32x32xf32>, vector<32x32xf32>, vector<32x32xf32> -> vector<32x256xf32>
    %123 = arith.mulf %5, %122 : vector<32x256xf32>
    %124 = arith.truncf %123 : vector<32x256xf32> to vector<32x256xbf16>
    %c0_46 = arith.constant 0 : index
    %c0_47 = arith.constant 0 : index
    %125 = vector.load %arg11[%c0_46, %c0_47] : memref<16x32xf32, #tpu.memory_space<vmem>>, vector<16x32xf32>
    %126 = tpu.concatenate %125, %125 in 0 : vector<16x32xf32>, vector<16x32xf32> -> vector<32x32xf32>
    %c0_48 = arith.constant 0 : index
    %c0_49 = arith.constant 0 : index
    %c0_50 = arith.constant 0 : index
    %127 = vector.load %arg9[%c0_48, %c0_49, %c0_50] : memref<3x64x32xbf16, #tpu.memory_space<vmem>>, vector<1x64x32xbf16>
    %128 = vector.shape_cast %127 : vector<1x64x32xbf16> to vector<64x32xbf16>
    %cst_51 = arith.constant dense<0.000000e+00> : vector<32x32xf32>
    %129 = tpu.matmul %47, %128, %cst_51 {dimension_numbers = #tpu.dot_dimension_numbers<[1], [0], [0], [1], [0, 0, 1, 1], [], []>} : vector<32x64xbf16>, vector<64x32xbf16>, vector<32x32xf32> -> vector<32x32xf32>
    %130 = arith.addf %126, %129 : vector<32x32xf32>
    %c0_52 = arith.constant 0 : index
    %c0_53 = arith.constant 0 : index
    %c0_54 = arith.constant 0 : index
    %131 = vector.load %arg10[%c0_52, %c0_53, %c0_54] : memref<3x256x32xbf16, #tpu.memory_space<vmem>>, vector<1x256x32xbf16>
    %132 = vector.shape_cast %131 : vector<1x256x32xbf16> to vector<256x32xbf16>
    %cst_55 = arith.constant dense<0.000000e+00> : vector<32x32xf32>
    %133 = tpu.matmul %118, %132, %cst_55 {dimension_numbers = #tpu.dot_dimension_numbers<[1], [0], [0], [1], [0, 0, 1, 1], [], []>} : vector<32x256xbf16>, vector<256x32xbf16>, vector<32x32xf32> -> vector<32x32xf32>
    %134 = arith.addf %130, %133 : vector<32x32xf32>
    %c1_56 = arith.constant 1 : index
    %c0_57 = arith.constant 0 : index
    %c0_58 = arith.constant 0 : index
    %135 = vector.load %arg9[%c1_56, %c0_57, %c0_58] : memref<3x64x32xbf16, #tpu.memory_space<vmem>>, vector<1x64x32xbf16>
    %136 = vector.shape_cast %135 : vector<1x64x32xbf16> to vector<64x32xbf16>
    %cst_59 = arith.constant dense<0.000000e+00> : vector<32x32xf32>
    %137 = tpu.matmul %50, %136, %cst_59 {dimension_numbers = #tpu.dot_dimension_numbers<[1], [0], [0], [1], [0, 0, 1, 1], [], []>} : vector<32x64xbf16>, vector<64x32xbf16>, vector<32x32xf32> -> vector<32x32xf32>
    %138 = arith.addf %134, %137 : vector<32x32xf32>
    %c1_60 = arith.constant 1 : index
    %c0_61 = arith.constant 0 : index
    %c0_62 = arith.constant 0 : index
    %139 = vector.load %arg10[%c1_60, %c0_61, %c0_62] : memref<3x256x32xbf16, #tpu.memory_space<vmem>>, vector<1x256x32xbf16>
    %140 = vector.shape_cast %139 : vector<1x256x32xbf16> to vector<256x32xbf16>
    %cst_63 = arith.constant dense<0.000000e+00> : vector<32x32xf32>
    %141 = tpu.matmul %121, %140, %cst_63 {dimension_numbers = #tpu.dot_dimension_numbers<[1], [0], [0], [1], [0, 0, 1, 1], [], []>} : vector<32x256xbf16>, vector<256x32xbf16>, vector<32x32xf32> -> vector<32x32xf32>
    %142 = arith.addf %138, %141 : vector<32x32xf32>
    %c2_64 = arith.constant 2 : index
    %c0_65 = arith.constant 0 : index
    %c0_66 = arith.constant 0 : index
    %143 = vector.load %arg9[%c2_64, %c0_65, %c0_66] : memref<3x64x32xbf16, #tpu.memory_space<vmem>>, vector<1x64x32xbf16>
    %144 = vector.shape_cast %143 : vector<1x64x32xbf16> to vector<64x32xbf16>
    %cst_67 = arith.constant dense<0.000000e+00> : vector<32x32xf32>
    %145 = tpu.matmul %53, %144, %cst_67 {dimension_numbers = #tpu.dot_dimension_numbers<[1], [0], [0], [1], [0, 0, 1, 1], [], []>} : vector<32x64xbf16>, vector<64x32xbf16>, vector<32x32xf32> -> vector<32x32xf32>
    %146 = arith.addf %142, %145 : vector<32x32xf32>
    %c2_68 = arith.constant 2 : index
    %c0_69 = arith.constant 0 : index
    %c0_70 = arith.constant 0 : index
    %147 = vector.load %arg10[%c2_68, %c0_69, %c0_70] : memref<3x256x32xbf16, #tpu.memory_space<vmem>>, vector<1x256x32xbf16>
    %148 = vector.shape_cast %147 : vector<1x256x32xbf16> to vector<256x32xbf16>
    %cst_71 = arith.constant dense<0.000000e+00> : vector<32x32xf32>
    %149 = tpu.matmul %124, %148, %cst_71 {dimension_numbers = #tpu.dot_dimension_numbers<[1], [0], [0], [1], [0, 0, 1, 1], [], []>} : vector<32x256xbf16>, vector<256x32xbf16>, vector<32x32xf32> -> vector<32x32xf32>
    %150 = arith.addf %146, %149 : vector<32x32xf32>
    %151 = math.tanh %150 : vector<32x32xf32>
    %152 = arith.mulf %95, %1 : vector<32x32xf32>
    %cst_72 = arith.constant 1.000000e+00 : f32
    %153 = vector.broadcast %cst_72 : f32 to vector<32x32xf32>
    %154 = arith.subf %153, %95 : vector<32x32xf32>
    %155 = arith.mulf %154, %151 : vector<32x32xf32>
    %156 = arith.addf %152, %155 : vector<32x32xf32>
    %c0_73 = arith.constant 0 : index
    %c0_74 = arith.constant 0 : index
    %157 = vector.load %arg12[%c0_73, %c0_74] : memref<32x32xf32, #tpu.memory_space<vmem>>, vector<32x32xf32>
    tpu.vector_store %arg12[%c0_73, %c0_74], %156 {strides = array<i32>} : memref<32x32xf32, #tpu.memory_space<vmem>>, vector<32x32xf32>,
    return
  }
  func.func @transform_0(%arg0: i32) -> (i32, i32) {
    %c0_i32 = arith.constant 0 : i32
    %c0_i32_0 = arith.constant 0 : i32
    return %arg0, %c0_i32 : i32, i32
  }
  func.func @transform_1(%arg0: i32) -> (i32, i32) {
    %c0_i32 = arith.constant 0 : i32
    %c0_i32_0 = arith.constant 0 : i32
    return %arg0, %c0_i32 : i32, i32
  }
  func.func @transform_2(%arg0: i32) -> (i32, i32, i32) {
    %c0_i32 = arith.constant 0 : i32
    %c0_i32_0 = arith.constant 0 : i32
    %c0_i32_1 = arith.constant 0 : i32
    %c0_i32_2 = arith.constant 0 : i32
    return %c0_i32, %c0_i32_0, %c0_i32_1 : i32, i32, i32
  }
  func.func @transform_3(%arg0: i32) -> (i32, i32) {
    %c0_i32 = arith.constant 0 : i32
    %c0_i32_0 = arith.constant 0 : i32
    %c0_i32_1 = arith.constant 0 : i32
    return %c0_i32, %c0_i32_0 : i32, i32
  }
  func.func @transform_4(%arg0: i32) -> (i32, i32) {
    %c0_i32 = arith.constant 0 : i32
    %c0_i32_0 = arith.constant 0 : i32
    %c0_i32_1 = arith.constant 0 : i32
    return %c0_i32, %c0_i32_0 : i32, i32
  }
  func.func @transform_5(%arg0: i32) -> (i32, i32, i32) {
    %c0_i32 = arith.constant 0 : i32
    %c0_i32_0 = arith.constant 0 : i32
    %c0_i32_1 = arith.constant 0 : i32
    %c0_i32_2 = arith.constant 0 : i32
    return %c0_i32, %c0_i32_0, %c0_i32_1 : i32, i32, i32
  }
  func.func @transform_6(%arg0: i32) -> (i32, i32, i32) {
    %c0_i32 = arith.constant 0 : i32
    %c0_i32_0 = arith.constant 0 : i32
    %c0_i32_1 = arith.constant 0 : i32
    %c0_i32_2 = arith.constant 0 : i32
    return %c0_i32, %c0_i32_0, %c0_i32_1 : i32, i32, i32
  }
  func.func @transform_7(%arg0: i32) -> (i32, i32) {
    %c0_i32 = arith.constant 0 : i32
    %c0_i32_0 = arith.constant 0 : i32
    %c0_i32_1 = arith.constant 0 : i32
    return %c0_i32, %c0_i32_0 : i32, i32
  }
  func.func @transform_8(%arg0: i32) -> (i32, i32, i32) {
    %c0_i32 = arith.constant 0 : i32
    %c0_i32_0 = arith.constant 0 : i32
    %c0_i32_1 = arith.constant 0 : i32
    %c0_i32_2 = arith.constant 0 : i32
    return %c0_i32, %c0_i32_0, %c0_i32_1 : i32, i32, i32
  }
  func.func @transform_9(%arg0: i32) -> (i32, i32, i32) {
    %c0_i32 = arith.constant 0 : i32
    %c0_i32_0 = arith.constant 0 : i32
    %c0_i32_1 = arith.constant 0 : i32
    %c0_i32_2 = arith.constant 0 : i32
    return %c0_i32, %c0_i32_0, %c0_i32_1 : i32, i32, i32
  }
  func.func @transform_10(%arg0: i32) -> (i32, i32) {
    %c0_i32 = arith.constant 0 : i32
    %c0_i32_0 = arith.constant 0 : i32
    %c0_i32_1 = arith.constant 0 : i32
    return %c0_i32, %c0_i32_0 : i32, i32
  }
  func.func @transform_11(%arg0: i32) -> (i32, i32) {
    %c0_i32 = arith.constant 0 : i32
    %c0_i32_0 = arith.constant 0 : i32
    return %arg0, %c0_i32 : i32, i32
  }
}

</mosaic_0001>

<llo_original>
// kernel: tpu_custom_call.1
$region0: #{tpu_custom_call.1}
  #allocation0 [shape = 'u32[]', space=smem, size = 0x4, offset = 0x4, fixed_abs, tag = 'smem constant byte address 0x4 - core index']
  #allocation1 [shape = 'u32[144,128]{1,0:T(1,128)}', space=vmem, size = 0x12000, scoped, tag = 'internal scratch']
  %s0 = inlined_call_operand.vmem [shape: f32[32,8], index: 0, kind: input, shape index: {}]
  %s1 = inlined_call_operand.vmem [shape: f32[32,32], index: 1, kind: input, shape index: {}]
  %s2 = inlined_call_operand.vmem [shape: bf16[2,16,16], index: 2, kind: input, shape index: {}]
  %s3 = inlined_call_operand.vmem [shape: f32[16,64], index: 3, kind: input, shape index: {}]
  %s4 = inlined_call_operand.vmem [shape: f32[16,256], index: 4, kind: input, shape index: {}]
  %s5 = inlined_call_operand.vmem [shape: bf16[3,64,64], index: 5, kind: input, shape index: {}]
  %s6 = inlined_call_operand.vmem [shape: bf16[3,256,64], index: 6, kind: input, shape index: {}]
  %s7 = inlined_call_operand.vmem [shape: f32[16,64], index: 7, kind: input, shape index: {}]
  %s8 = inlined_call_operand.vmem [shape: bf16[3,64,32], index: 8, kind: input, shape index: {}]
  %s9 = inlined_call_operand.vmem [shape: bf16[3,256,32], index: 9, kind: input, shape index: {}]
  %s10 = inlined_call_operand.vmem [shape: f32[16,32], index: 10, kind: input, shape index: {}]
  %s11 = inlined_call_operand.hbm [shape: f32[32,32], index: 11, kind: output, shape index: {}]
  %s12 = sld [smem:[#allocation0]]
  $region54: #{tpu_custom_call.1} parent=0
    _
  %s14 = ssub.s32 1, %s12
  %s15 = scalar_select 0, %s14, %s12
  $region1: #{tpu_custom_call.1} parent=0
    #allocation2 [shape = 'u8[16384]{0}', space=vmem, size = 0x4000, scoped, tag = 'output window, operand 0, single buffered']
    #allocation3 [shape = 's32[1]{0}', space=sflag, size = 0x4, scoped, tag = 'scoped memory for tpu_custom_call.1']
    %16 = vsyncpa [#allocation3], 0
    // Predicated region
    $region2: #{tpu_custom_call.1} parent=1 // pred_check
      _
    $region3: #{tpu_custom_call.1} parent=1 // pred_check_branch
      %18 = sbr.rel (0) target = $region5
    $region4: #{tpu_custom_call.1} parent=1 // pred_region
      _
    $region5: #{tpu_custom_call.1} parent=1 // pred_fallthru
      _
    // Predicated region
    $region6: #{tpu_custom_call.1} parent=1 // pred_check
      _
    $region7: #{tpu_custom_call.1} parent=1 // pred_check_branch
      %20 = sbr.rel (0) target = $region9
    $region8: #{tpu_custom_call.1} parent=1 // pred_region
      _
    $region9: #{tpu_custom_call.1} parent=1 // pred_fallthru
      _
    // Predicated region
    $region10: #{tpu_custom_call.1} parent=1 // pred_check
      _
    $region11: #{tpu_custom_call.1} parent=1 // pred_check_branch
      %22 = sbr.rel (0) target = $region13
    $region12: #{tpu_custom_call.1} parent=1 // pred_region
      _
    $region13: #{tpu_custom_call.1} parent=1 // pred_fallthru
      _
    // Predicated region
    $region14: #{tpu_custom_call.1} parent=1 // pred_check
      _
    $region15: #{tpu_custom_call.1} parent=1 // pred_check_branch
      %24 = sbr.rel (0) target = $region17
    $region16: #{tpu_custom_call.1} parent=1 // pred_region
      _
    $region17: #{tpu_custom_call.1} parent=1 // pred_fallthru
      _
    // Predicated region
    $region18: #{tpu_custom_call.1} parent=1 // pred_check
      _
    $region19: #{tpu_custom_call.1} parent=1 // pred_check_branch
      %26 = sbr.rel (0) target = $region21
    $region20: #{tpu_custom_call.1} parent=1 // pred_region
      _
    $region21: #{tpu_custom_call.1} parent=1 // pred_fallthru
      _
    // Predicated region
    $region22: #{tpu_custom_call.1} parent=1 // pred_check
      _
    $region23: #{tpu_custom_call.1} parent=1 // pred_check_branch
      %28 = sbr.rel (0) target = $region25
    $region24: #{tpu_custom_call.1} parent=1 // pred_region
      _
    $region25: #{tpu_custom_call.1} parent=1 // pred_fallthru
      _
    // Predicated region
    $region26: #{tpu_custom_call.1} parent=1 // pred_check
      _
    $region27: #{tpu_custom_call.1} parent=1 // pred_check_branch
      %30 = sbr.rel (0) target = $region29
    $region28: #{tpu_custom_call.1} parent=1 // pred_region
      _
    $region29: #{tpu_custom_call.1} parent=1 // pred_fallthru
      _
    // Predicated region
    $region30: #{tpu_custom_call.1} parent=1 // pred_check
      _
    $region31: #{tpu_custom_call.1} parent=1 // pred_check_branch
      %32 = sbr.rel (0) target = $region33
    $region32: #{tpu_custom_call.1} parent=1 // pred_region
      _
    $region33: #{tpu_custom_call.1} parent=1 // pred_fallthru
      _
    // Predicated region
    $region34: #{tpu_custom_call.1} parent=1 // pred_check
      _
    $region35: #{tpu_custom_call.1} parent=1 // pred_check_branch
      %34 = sbr.rel (0) target = $region37
    $region36: #{tpu_custom_call.1} parent=1 // pred_region
      _
    $region37: #{tpu_custom_call.1} parent=1 // pred_fallthru
      _
    // Predicated region
    $region38: #{tpu_custom_call.1} parent=1 // pred_check
      _
    $region39: #{tpu_custom_call.1} parent=1 // pred_check_branch
      %36 = sbr.rel (0) target = $region41
    $region40: #{tpu_custom_call.1} parent=1 // pred_region
      _
    $region41: #{tpu_custom_call.1} parent=1 // pred_fallthru
      _
    // Predicated region
    $region42: #{tpu_custom_call.1} parent=1 // pred_check
      _
    $region43: #{tpu_custom_call.1} parent=1 // pred_check_branch
      %38 = sbr.rel (0) target = $region45
    $region44: #{tpu_custom_call.1} parent=1 // pred_region
      _
    $region45: #{tpu_custom_call.1} parent=1 // pred_fallthru
      _
    %v40 = vld [vmem:[%s0] sm:$0xff]
    %v41 = vld [vmem:[%s0 + $0x8] sm:$0xff]
    %v42 = vld [vmem:[%s0 + $0x10] sm:$0xff]
    %v43 = vld [vmem:[%s0 + $0x18] sm:$0xff]
    %v44 = vld [vmem:[%s1] sm:$0xff]
    %v45 = vld [vmem:[%s1 + $0x8] sm:$0xff]
    %v46 = vld [vmem:[%s1 + $0x10] sm:$0xff]
    %v47 = vld [vmem:[%s1 + $0x18] sm:$0xff]
    %v48 = vld [vmem:[%s3] sm:$0xff]
    %v49 = vld [vmem:[%s3 + $0x8] sm:$0xff]
    %v50 = vld [vmem:[%s4] sm:$0xff]
    %v51 = vld [vmem:[%s4 + $0x8] sm:$0xff]
    %v52 = vld [vmem:[%s4 + $0x10] sm:$0xff]
    %v53 = vld [vmem:[%s4 + $0x18] sm:$0xff]
    %v54 = vld [vmem:[%s2] sm:$0xf]
    %v55 = vld [vmem:[%s2 + $0x4] sm:$0xf]
    %v56 = vld [vmem:[%s2 + $0x8] sm:$0xf]
    %v57 = vld [vmem:[%s2 + $0xc] sm:$0xf]
    %v58 = vpack.c.bf16 %v41, %v40
    %v59 = vpack.c.bf16 %v43, %v42
    %v62 = vunpack.c.l.b16 %v54
    %v63 = vunpack.c.l.b16 %v55
    %v64 = vpack.c.b16 %v63, %v62
    %vm65 = vcmask 130048
    %v67 = vsel %vm65, %v64, 0
    %69 = vmatprep.subr.bf16.mxu0 0
    %70 = vmatpush1.bf16.msra.mxu0 0
    %71 = vmatprep.subr.bf16.mxu0 0
    %72 = vmatpush1.bf16.msra.mxu0 0
    %73 = vmatprep.subr.bf16.mxu0 0
    %74 = vmatpush1.bf16.msra.mxu0 0
    %75 = vmatprep.subr.bf16.mxu0 0
    %76 = vmatpush1.bf16.msra.mxu0 0
    %77 = vmatprep.subr.bf16.mxu0 0
    %78 = vmatpush1.bf16.msra.mxu0 0
    %79 = vmatprep.subr.bf16.mxu0 0
    %80 = vmatpush1.bf16.msra.mxu0 0
    %81 = vmatprep.subr.bf16.mxu0 0
    %82 = vmatpush1.bf16.msra.mxu0 0
    %83 = vmatprep.subr.bf16.mxu0 0
    %84 = vmatpush1.bf16.msra.mxu0 %v58
    %85 = vmatprep.subr.bf16.mxu0 0
    %86 = vmatpush2.bf16.msra.mxu0 0
    %87 = vmatprep.subr.bf16.mxu0 0
    %88 = vmatpush2.bf16.msra.mxu0 0
    %89 = vmatprep.subr.bf16.mxu0 0
    %90 = vmatpush2.bf16.msra.mxu0 0
    %91 = vmatprep.subr.bf16.mxu0 0
    %92 = vmatpush2.bf16.msra.mxu0 0
    %93 = vmatprep.subr.bf16.mxu0 0
    %94 = vmatpush2.bf16.msra.mxu0 0
    %95 = vmatprep.subr.bf16.mxu0 0
    %96 = vmatpush2.bf16.msra.mxu0 0
    %97 = vmatprep.subr.bf16.mxu0 0
    %98 = vmatpush2.bf16.msra.mxu0 0
    %99 = vmatprep.subr.bf16.mxu0 0
    %100 = vmatpush2.bf16.msra.mxu0 0
    %101 = vmatprep.mubr.bf16.mxu0 0
    %102 = vmatmul.mubr.bf16.gmra.mxu0 %v67
    %v103 = vpop.f32.mrf.mxu0
    %v104 = vadd.f32 0.0, %v103
    %v105 = vpop.f32.mrf.mxu0
    %v106 = vpop.f32.mrf.mxu0
    %v107 = vadd.f32 0.0, %v106
    %v108 = vpop.f32.mrf.mxu0
    %109 = vdwg.mxu0
    %110 = vmatprep.subr.bf16.mxu0 0
    %111 = vmatpush1.bf16.msra.mxu0 0
    %112 = vmatprep.subr.bf16.mxu0 0
    %113 = vmatpush1.bf16.msra.mxu0 0
    %114 = vmatprep.subr.bf16.mxu0 0
    %115 = vmatpush1.bf16.msra.mxu0 0
    %116 = vmatprep.subr.bf16.mxu0 0
    %117 = vmatpush1.bf16.msra.mxu0 0
    %118 = vmatprep.subr.bf16.mxu0 0
    %119 = vmatpush1.bf16.msra.mxu0 0
    %120 = vmatprep.subr.bf16.mxu0 0
    %121 = vmatpush1.bf16.msra.mxu0 0
    %122 = vmatprep.subr.bf16.mxu0 0
    %123 = vmatpush1.bf16.msra.mxu0 0
    %124 = vmatprep.subr.bf16.mxu0 0
    %125 = vmatpush1.bf16.msra.mxu0 %v59
    %126 = vmatprep.subr.bf16.mxu0 0
    %127 = vmatpush2.bf16.msra.mxu0 0
    %128 = vmatprep.subr.bf16.mxu0 0
    %129 = vmatpush2.bf16.msra.mxu0 0
    %130 = vmatprep.subr.bf16.mxu0 0
    %131 = vmatpush2.bf16.msra.mxu0 0
    %132 = vmatprep.subr.bf16.mxu0 0
    %133 = vmatpush2.bf16.msra.mxu0 0
    %134 = vmatprep.subr.bf16.mxu0 0
    %135 = vmatpush2.bf16.msra.mxu0 0
    %136 = vmatprep.subr.bf16.mxu0 0
    %137 = vmatpush2.bf16.msra.mxu0 0
    %138 = vmatprep.subr.bf16.mxu0 0
    %139 = vmatpush2.bf16.msra.mxu0 0
    %140 = vmatprep.subr.bf16.mxu0 0
    %141 = vmatpush2.bf16.msra.mxu0 0
    %142 = vmatprep.mubr.bf16.mxu0 0
    %143 = vmatmul.mubr.bf16.gmra.mxu0 %v67
    %v144 = vpop.f32.mrf.mxu0
    %v145 = vadd.f32 0.0, %v144
    %v146 = vpop.f32.mrf.mxu0
    %v147 = vpop.f32.mrf.mxu0
    %v148 = vadd.f32 0.0, %v147
    %v149 = vpop.f32.mrf.mxu0
    %150 = vdwg.mxu0
    %v153 = vunpack.c.l.b16 %v56
    %v154 = vunpack.c.l.b16 %v57
    %v155 = vpack.c.b16 %v154, %v153
    %v157 = vsel %vm65, %v155, 0
    %159 = vmatprep.subr.bf16.mxu0 0
    %160 = vmatpush1.bf16.msra.mxu0 0
    %161 = vmatprep.subr.bf16.mxu0 0
    %162 = vmatpush1.bf16.msra.mxu0 0
    %163 = vmatprep.subr.bf16.mxu0 0
    %164 = vmatpush1.bf16.msra.mxu0 0
    %165 = vmatprep.subr.bf16.mxu0 0
    %166 = vmatpush1.bf16.msra.mxu0 0
    %167 = vmatprep.subr.bf16.mxu0 0
    %168 = vmatpush1.bf16.msra.mxu0 0
    %169 = vmatprep.subr.bf16.mxu0 0
    %170 = vmatpush1.bf16.msra.mxu0 0
    %171 = vmatprep.subr.bf16.mxu0 0
    %172 = vmatpush1.bf16.msra.mxu0 0
    %173 = vmatprep.subr.bf16.mxu0 0
    %174 = vmatpush1.bf16.msra.mxu0 %v58
    %175 = vmatprep.subr.bf16.mxu0 0
    %176 = vmatpush2.bf16.msra.mxu0 0
    %177 = vmatprep.subr.bf16.mxu0 0
    %178 = vmatpush2.bf16.msra.mxu0 0
    %179 = vmatprep.subr.bf16.mxu0 0
    %180 = vmatpush2.bf16.msra.mxu0 0
    %181 = vmatprep.subr.bf16.mxu0 0
    %182 = vmatpush2.bf16.msra.mxu0 0
    %183 = vmatprep.subr.bf16.mxu0 0
    %184 = vmatpush2.bf16.msra.mxu0 0
    %185 = vmatprep.subr.bf16.mxu0 0
    %186 = vmatpush2.bf16.msra.mxu0 0
    %187 = vmatprep.subr.bf16.mxu0 0
    %188 = vmatpush2.bf16.msra.mxu0 0
    %189 = vmatprep.subr.bf16.mxu0 0
    %190 = vmatpush2.bf16.msra.mxu0 0
    %191 = vmatprep.mubr.bf16.mxu0 0
    %192 = vmatmul.mubr.bf16.gmra.mxu0 %v157
    %v193 = vpop.f32.mrf.mxu0
    %v194 = vadd.f32 0.0, %v193
    %v195 = vpop.f32.mrf.mxu0
    %v196 = vpop.f32.mrf.mxu0
    %v197 = vadd.f32 0.0, %v196
    %v198 = vpop.f32.mrf.mxu0
    %199 = vdwg.mxu0
    %200 = vmatprep.subr.bf16.mxu0 0
    %201 = vmatpush1.bf16.msra.mxu0 0
    %202 = vmatprep.subr.bf16.mxu0 0
    %203 = vmatpush1.bf16.msra.mxu0 0
    %204 = vmatprep.subr.bf16.mxu0 0
    %205 = vmatpush1.bf16.msra.mxu0 0
    %206 = vmatprep.subr.bf16.mxu0 0
    %207 = vmatpush1.bf16.msra.mxu0 0
    %208 = vmatprep.subr.bf16.mxu0 0
    %209 = vmatpush1.bf16.msra.mxu0 0
    %210 = vmatprep.subr.bf16.mxu0 0
    %211 = vmatpush1.bf16.msra.mxu0 0
    %212 = vmatprep.subr.bf16.mxu0 0
    %213 = vmatpush1.bf16.msra.mxu0 0
    %214 = vmatprep.subr.bf16.mxu0 0
    %215 = vmatpush1.bf16.msra.mxu0 %v59
    %216 = vmatprep.subr.bf16.mxu0 0
    %217 = vmatpush2.bf16.msra.mxu0 0
    %218 = vmatprep.subr.bf16.mxu0 0
    %219 = vmatpush2.bf16.msra.mxu0 0
    %220 = vmatprep.subr.bf16.mxu0 0
    %221 = vmatpush2.bf16.msra.mxu0 0
    %222 = vmatprep.subr.bf16.mxu0 0
    %223 = vmatpush2.bf16.msra.mxu0 0
    %224 = vmatprep.subr.bf16.mxu0 0
    %225 = vmatpush2.bf16.msra.mxu0 0
    %226 = vmatprep.subr.bf16.mxu0 0
    %227 = vmatpush2.bf16.msra.mxu0 0
    %228 = vmatprep.subr.bf16.mxu0 0
    %229 = vmatpush2.bf16.msra.mxu0 0
    %230 = vmatprep.subr.bf16.mxu0 0
    %231 = vmatpush2.bf16.msra.mxu0 0
    %232 = vmatprep.mubr.bf16.mxu0 0
    %233 = vmatmul.mubr.bf16.gmra.mxu0 %v157
    %v234 = vpop.f32.mrf.mxu0
    %v235 = vadd.f32 0.0, %v234
    %v236 = vpop.f32.mrf.mxu0
    %v237 = vpop.f32.mrf.mxu0
    %v238 = vadd.f32 0.0, %v237
    %v239 = vpop.f32.mrf.mxu0
    %240 = vdwg.mxu0
    %v241 = vpack.c.bf16 %v45, %v44
    %v242 = vpack.c.bf16 %v47, %v46
    %243 = vmatprep.subr.bf16.mxu0 0
    %244 = vmatpush1.bf16.msra.mxu0 0
    %245 = vmatprep.subr.bf16.mxu0 0
    %246 = vmatpush1.bf16.msra.mxu0 0
    %247 = vmatprep.subr.bf16.mxu0 0
    %248 = vmatpush1.bf16.msra.mxu0 0
    %249 = vmatprep.subr.bf16.mxu0 0
    %250 = vmatpush1.bf16.msra.mxu0 0
    %251 = vmatprep.subr.bf16.mxu0 0
    %252 = vmatpush1.bf16.msra.mxu0 0
    %253 = vmatprep.subr.bf16.mxu0 0
    %254 = vmatpush1.bf16.msra.mxu0 0
    %255 = vmatprep.subr.bf16.mxu0 0
    %256 = vmatpush1.bf16.msra.mxu0 0
    %257 = vmatprep.subr.bf16.mxu0 0
    %258 = vmatpush1.bf16.msra.mxu0 %v241
    %259 = vmatprep.subr.bf16.mxu0 0
    %260 = vmatpush2.bf16.msra.mxu0 0
    %261 = vmatprep.subr.bf16.mxu0 0
    %262 = vmatpush2.bf16.msra.mxu0 0
    %263 = vmatprep.subr.bf16.mxu0 0
    %264 = vmatpush2.bf16.msra.mxu0 0
    %265 = vmatprep.subr.bf16.mxu0 0
    %266 = vmatpush2.bf16.msra.mxu0 0
    %267 = vmatprep.subr.bf16.mxu0 0
    %268 = vmatpush2.bf16.msra.mxu0 0
    %269 = vmatprep.subr.bf16.mxu0 0
    %270 = vmatpush2.bf16.msra.mxu0 0
    %271 = vmatprep.subr.bf16.mxu0 0
    %272 = vmatpush2.bf16.msra.mxu0 0
    %273 = vmatprep.subr.bf16.mxu0 0
    %274 = vmatpush2.bf16.msra.mxu0 0
    %275 = vmatprep.mubr.bf16.mxu0 0
    %276 = vmatmul.mubr.bf16.gmra.mxu0 %v67
    %v277 = vpop.f32.mrf.mxu0
    %v278 = vadd.f32 0.0, %v277
    %v279 = vpop.f32.mrf.mxu0
    %v280 = vpop.f32.mrf.mxu0
    %v281 = vadd.f32 0.0, %v280
    %v282 = vpop.f32.mrf.mxu0
    %283 = vdwg.mxu0
    %284 = vmatprep.subr.bf16.mxu0 0
    %285 = vmatpush1.bf16.msra.mxu0 0
    %286 = vmatprep.subr.bf16.mxu0 0
    %287 = vmatpush1.bf16.msra.mxu0 0
    %288 = vmatprep.subr.bf16.mxu0 0
    %289 = vmatpush1.bf16.msra.mxu0 0
    %290 = vmatprep.subr.bf16.mxu0 0
    %291 = vmatpush1.bf16.msra.mxu0 0
    %292 = vmatprep.subr.bf16.mxu0 0
    %293 = vmatpush1.bf16.msra.mxu0 0
    %294 = vmatprep.subr.bf16.mxu0 0
    %295 = vmatpush1.bf16.msra.mxu0 0
    %296 = vmatprep.subr.bf16.mxu0 0
    %297 = vmatpush1.bf16.msra.mxu0 0
    %298 = vmatprep.subr.bf16.mxu0 0
    %299 = vmatpush1.bf16.msra.mxu0 %v242
    %300 = vmatprep.subr.bf16.mxu0 0
    %301 = vmatpush2.bf16.msra.mxu0 0
    %302 = vmatprep.subr.bf16.mxu0 0
    %303 = vmatpush2.bf16.msra.mxu0 0
    %304 = vmatprep.subr.bf16.mxu0 0
    %305 = vmatpush2.bf16.msra.mxu0 0
    %306 = vmatprep.subr.bf16.mxu0 0
    %307 = vmatpush2.bf16.msra.mxu0 0
    %308 = vmatprep.subr.bf16.mxu0 0
    %309 = vmatpush2.bf16.msra.mxu0 0
    %310 = vmatprep.subr.bf16.mxu0 0
    %311 = vmatpush2.bf16.msra.mxu0 0
    %312 = vmatprep.subr.bf16.mxu0 0
    %313 = vmatpush2.bf16.msra.mxu0 0
    %314 = vmatprep.subr.bf16.mxu0 0
    %315 = vmatpush2.bf16.msra.mxu0 0
    %316 = vmatprep.mubr.bf16.mxu0 0
    %317 = vmatmul.mubr.bf16.gmra.mxu0 %v67
    %v318 = vpop.f32.mrf.mxu0
    %v319 = vadd.f32 0.0, %v318
    %v320 = vpop.f32.mrf.mxu0
    %v321 = vpop.f32.mrf.mxu0
    %v322 = vadd.f32 0.0, %v321
    %v323 = vpop.f32.mrf.mxu0
    %324 = vdwg.mxu0
    %325 = vmatprep.subr.bf16.mxu0 0
    %326 = vmatpush1.bf16.msra.mxu0 0
    %327 = vmatprep.subr.bf16.mxu0 0
    %328 = vmatpush1.bf16.msra.mxu0 0
    %329 = vmatprep.subr.bf16.mxu0 0
    %330 = vmatpush1.bf16.msra.mxu0 0
    %331 = vmatprep.subr.bf16.mxu0 0
    %332 = vmatpush1.bf16.msra.mxu0 0
    %333 = vmatprep.subr.bf16.mxu0 0
    %334 = vmatpush1.bf16.msra.mxu0 0
    %335 = vmatprep.subr.bf16.mxu0 0
    %336 = vmatpush1.bf16.msra.mxu0 0
    %337 = vmatprep.subr.bf16.mxu0 0
    %338 = vmatpush1.bf16.msra.mxu0 0
    %339 = vmatprep.subr.bf16.mxu0 0
    %340 = vmatpush1.bf16.msra.mxu0 %v241
    %341 = vmatprep.subr.bf16.mxu0 0
    %342 = vmatpush2.bf16.msra.mxu0 0
    %343 = vmatprep.subr.bf16.mxu0 0
    %344 = vmatpush2.bf16.msra.mxu0 0
    %345 = vmatprep.subr.bf16.mxu0 0
    %346 = vmatpush2.bf16.msra.mxu0 0
    %347 = vmatprep.subr.bf16.mxu0 0
    %348 = vmatpush2.bf16.msra.mxu0 0
    %349 = vmatprep.subr.bf16.mxu0 0
    %350 = vmatpush2.bf16.msra.mxu0 0
    %351 = vmatprep.subr.bf16.mxu0 0
    %352 = vmatpush2.bf16.msra.mxu0 0
    %353 = vmatprep.subr.bf16.mxu0 0
    %354 = vmatpush2.bf16.msra.mxu0 0
    %355 = vmatprep.subr.bf16.mxu0 0
    %356 = vmatpush2.bf16.msra.mxu0 0
    %357 = vmatprep.mubr.bf16.mxu0 0
    %358 = vmatmul.mubr.bf16.gmra.mxu0 %v157
    %v359 = vpop.f32.mrf.mxu0
    %v360 = vadd.f32 0.0, %v359
    %v361 = vpop.f32.mrf.mxu0
    %v362 = vpop.f32.mrf.mxu0
    %v363 = vadd.f32 0.0, %v362
    %v364 = vpop.f32.mrf.mxu0
    %365 = vdwg.mxu0
    %366 = vmatprep.subr.bf16.mxu0 0
    %367 = vmatpush1.bf16.msra.mxu0 0
    %368 = vmatprep.subr.bf16.mxu0 0
    %369 = vmatpush1.bf16.msra.mxu0 0
    %370 = vmatprep.subr.bf16.mxu0 0
    %371 = vmatpush1.bf16.msra.mxu0 0
    %372 = vmatprep.subr.bf16.mxu0 0
    %373 = vmatpush1.bf16.msra.mxu0 0
    %374 = vmatprep.subr.bf16.mxu0 0
    %375 = vmatpush1.bf16.msra.mxu0 0
    %376 = vmatprep.subr.bf16.mxu0 0
    %377 = vmatpush1.bf16.msra.mxu0 0
    %378 = vmatprep.subr.bf16.mxu0 0
    %379 = vmatpush1.bf16.msra.mxu0 0
    %380 = vmatprep.subr.bf16.mxu0 0
    %381 = vmatpush1.bf16.msra.mxu0 %v242
    %382 = vmatprep.subr.bf16.mxu0 0
    %383 = vmatpush2.bf16.msra.mxu0 0
    %384 = vmatprep.subr.bf16.mxu0 0
    %385 = vmatpush2.bf16.msra.mxu0 0
    %386 = vmatprep.subr.bf16.mxu0 0
    %387 = vmatpush2.bf16.msra.mxu0 0
    %388 = vmatprep.subr.bf16.mxu0 0
    %389 = vmatpush2.bf16.msra.mxu0 0
    %390 = vmatprep.subr.bf16.mxu0 0
    %391 = vmatpush2.bf16.msra.mxu0 0
    %392 = vmatprep.subr.bf16.mxu0 0
    %393 = vmatpush2.bf16.msra.mxu0 0
    %394 = vmatprep.subr.bf16.mxu0 0
    %395 = vmatpush2.bf16.msra.mxu0 0
    %396 = vmatprep.subr.bf16.mxu0 0
    %397 = vmatpush2.bf16.msra.mxu0 0
    %398 = vmatprep.mubr.bf16.mxu0 0
    %399 = vmatmul.mubr.bf16.gmra.mxu0 %v157
    %v400 = vpop.f32.mrf.mxu0
    %v401 = vadd.f32 0.0, %v400
    %v402 = vpop.f32.mrf.mxu0
    %v403 = vpop.f32.mrf.mxu0
    %v404 = vadd.f32 0.0, %v403
    %v405 = vpop.f32.mrf.mxu0
    %406 = vdwg.mxu0
    %411 = vrot.lane.b32.xlu0 %v40, 8
    %v412 = vpop.permute.xlu0 %411
    %413 = vrot.lane.b32.xlu0 %v41, 8
    %v414 = vpop.permute.xlu0 %413
    %415 = vrot.lane.b32.xlu0 %v42, 8
    %v416 = vpop.permute.xlu0 %415
    %417 = vrot.lane.b32.xlu0 %v43, 8
    %v418 = vpop.permute.xlu0 %417
    %423 = vrot.lane.b32.xlu0 %v40, 16
    %v424 = vpop.permute.xlu0 %423
    %425 = vrot.lane.b32.xlu0 %v41, 16
    %v426 = vpop.permute.xlu0 %425
    %427 = vrot.lane.b32.xlu0 %v42, 16
    %v428 = vpop.permute.xlu0 %427
    %429 = vrot.lane.b32.xlu0 %v43, 16
    %v430 = vpop.permute.xlu0 %429
    %435 = vrot.lane.b32.xlu0 %v40, 24
    %v436 = vpop.permute.xlu0 %435
    %437 = vrot.lane.b32.xlu0 %v41, 24
    %v438 = vpop.permute.xlu0 %437
    %439 = vrot.lane.b32.xlu0 %v42, 24
    %v440 = vpop.permute.xlu0 %439
    %441 = vrot.lane.b32.xlu0 %v43, 24
    %v442 = vpop.permute.xlu0 %441
    %447 = vrot.lane.b32.xlu0 %v40, 32
    %v448 = vpop.permute.xlu0 %447
    %449 = vrot.lane.b32.xlu0 %v41, 32
    %v450 = vpop.permute.xlu0 %449
    %451 = vrot.lane.b32.xlu0 %v42, 32
    %v452 = vpop.permute.xlu0 %451
    %453 = vrot.lane.b32.xlu0 %v43, 32
    %v454 = vpop.permute.xlu0 %453
    %459 = vrot.lane.b32.xlu0 %v40, 40
    %v460 = vpop.permute.xlu0 %459
    %461 = vrot.lane.b32.xlu0 %v41, 40
    %v462 = vpop.permute.xlu0 %461
    %463 = vrot.lane.b32.xlu0 %v42, 40
    %v464 = vpop.permute.xlu0 %463
    %465 = vrot.lane.b32.xlu0 %v43, 40
    %v466 = vpop.permute.xlu0 %465
    %471 = vrot.lane.b32.xlu0 %v40, 48
    %v472 = vpop.permute.xlu0 %471
    %473 = vrot.lane.b32.xlu0 %v41, 48
    %v474 = vpop.permute.xlu0 %473
    %475 = vrot.lane.b32.xlu0 %v42, 48
    %v476 = vpop.permute.xlu0 %475
    %477 = vrot.lane.b32.xlu0 %v43, 48
    %v478 = vpop.permute.xlu0 %477
    %483 = vrot.lane.b32.xlu0 %v40, 56
    %v484 = vpop.permute.xlu0 %483
    %485 = vrot.lane.b32.xlu0 %v41, 56
    %v486 = vpop.permute.xlu0 %485
    %487 = vrot.lane.b32.xlu0 %v42, 56
    %v488 = vpop.permute.xlu0 %487
    %489 = vrot.lane.b32.xlu0 %v43, 56
    %v490 = vpop.permute.xlu0 %489
    %vm495 = vcmask 64512
    %v496 = vsel %vm495, %v40, %v412
    %v497 = vsel %vm495, %v41, %v414
    %v498 = vsel %vm495, %v42, %v416
    %v499 = vsel %vm495, %v43, %v418
    %v500 = vsel %vm65, %v496, %v424
    %v501 = vsel %vm65, %v497, %v426
    %v502 = vsel %vm65, %v498, %v428
    %v503 = vsel %vm65, %v499, %v430
    %vm504 = vcmask 195584
    %v505 = vsel %vm504, %v500, %v436
    %v506 = vsel %vm504, %v501, %v438
    %v507 = vsel %vm504, %v502, %v440
    %v508 = vsel %vm504, %v503, %v442
    %vm509 = vcmask 261120
    %v510 = vsel %vm509, %v505, %v448
    %v511 = vsel %vm509, %v506, %v450
    %v512 = vsel %vm509, %v507, %v452
    %v513 = vsel %vm509, %v508, %v454
    %vm514 = vcmask 326656
    %v515 = vsel %vm514, %v510, %v460
    %v516 = vsel %vm514, %v511, %v462
    %v517 = vsel %vm514, %v512, %v464
    %v518 = vsel %vm514, %v513, %v466
    %vm519 = vcmask 392192
    %v520 = vsel %vm519, %v515, %v472
    %v521 = vsel %vm519, %v516, %v474
    %v522 = vsel %vm519, %v517, %v476
    %v523 = vsel %vm519, %v518, %v478
    %vm524 = vcmask 457728
    %v525 = vsel %vm524, %v520, %v484
    %v526 = vsel %vm524, %v521, %v486
    %v527 = vsel %vm524, %v522, %v488
    %v528 = vsel %vm524, %v523, %v490
    %v529 = vmul.f32 %v48, %v525
    %v530 = vmul.f32 %v49, %v526
    %v531 = vmul.f32 %v48, %v527
    %v532 = vmul.f32 %v49, %v528
    %v533 = vpack.c.bf16 %v530, %v529
    %v534 = vpack.c.bf16 %v532, %v531
    %539 = vrot.lane.b32.xlu0 %v104, 8
    %v540 = vpop.permute.xlu0 %539
    %541 = vrot.lane.b32.xlu0 %v107, 8
    %v542 = vpop.permute.xlu0 %541
    %543 = vrot.lane.b32.xlu0 %v145, 8
    %v544 = vpop.permute.xlu0 %543
    %545 = vrot.lane.b32.xlu0 %v148, 8
    %v546 = vpop.permute.xlu0 %545
    %551 = vrot.lane.b32.xlu0 %v104, 16
    %v552 = vpop.permute.xlu0 %551
    %553 = vrot.lane.b32.xlu0 %v107, 16
    %v554 = vpop.permute.xlu0 %553
    %555 = vrot.lane.b32.xlu0 %v145, 16
    %v556 = vpop.permute.xlu0 %555
    %557 = vrot.lane.b32.xlu0 %v148, 16
    %v558 = vpop.permute.xlu0 %557
    %563 = vrot.lane.b32.xlu0 %v104, 24
    %v564 = vpop.permute.xlu0 %563
    %565 = vrot.lane.b32.xlu0 %v107, 24
    %v566 = vpop.permute.xlu0 %565
    %567 = vrot.lane.b32.xlu0 %v145, 24
    %v568 = vpop.permute.xlu0 %567
    %569 = vrot.lane.b32.xlu0 %v148, 24
    %v570 = vpop.permute.xlu0 %569
    %575 = vrot.lane.b32.xlu0 %v104, 32
    %v576 = vpop.permute.xlu0 %575
    %577 = vrot.lane.b32.xlu0 %v107, 32
    %v578 = vpop.permute.xlu0 %577
    %579 = vrot.lane.b32.xlu0 %v145, 32
    %v580 = vpop.permute.xlu0 %579
    %581 = vrot.lane.b32.xlu0 %v148, 32
    %v582 = vpop.permute.xlu0 %581
    %587 = vrot.lane.b32.xlu0 %v104, 40
    %v588 = vpop.permute.xlu0 %587
    %589 = vrot.lane.b32.xlu0 %v107, 40
    %v590 = vpop.permute.xlu0 %589
    %591 = vrot.lane.b32.xlu0 %v145, 40
    %v592 = vpop.permute.xlu0 %591
    %593 = vrot.lane.b32.xlu0 %v148, 40
    %v594 = vpop.permute.xlu0 %593
    %599 = vrot.lane.b32.xlu0 %v104, 48
    %v600 = vpop.permute.xlu0 %599
    %601 = vrot.lane.b32.xlu0 %v107, 48
    %v602 = vpop.permute.xlu0 %601
    %603 = vrot.lane.b32.xlu0 %v145, 48
    %v604 = vpop.permute.xlu0 %603
    %605 = vrot.lane.b32.xlu0 %v148, 48
    %v606 = vpop.permute.xlu0 %605
    %611 = vrot.lane.b32.xlu0 %v104, 56
    %v612 = vpop.permute.xlu0 %611
    %613 = vrot.lane.b32.xlu0 %v107, 56
    %v614 = vpop.permute.xlu0 %613
    %615 = vrot.lane.b32.xlu0 %v145, 56
    %v616 = vpop.permute.xlu0 %615
    %617 = vrot.lane.b32.xlu0 %v148, 56
    %v618 = vpop.permute.xlu0 %617
    %v623 = vsel %vm495, %v104, %v540
    %v624 = vsel %vm495, %v107, %v542
    %v625 = vsel %vm495, %v145, %v544
    %v626 = vsel %vm495, %v148, %v546
    %v627 = vsel %vm65, %v623, %v552
    %v628 = vsel %vm65, %v624, %v554
    %v629 = vsel %vm65, %v625, %v556
    %v630 = vsel %vm65, %v626, %v558
    %v631 = vsel %vm504, %v627, %v564
    %v632 = vsel %vm504, %v628, %v566
    %v633 = vsel %vm504, %v629, %v568
    %v634 = vsel %vm504, %v630, %v570
    %v635 = vsel %vm509, %v631, %v576
    %v636 = vsel %vm509, %v632, %v578
    %v637 = vsel %vm509, %v633, %v580
    %v638 = vsel %vm509, %v634, %v582
    %v639 = vsel %vm514, %v635, %v588
    %v640 = vsel %vm514, %v636, %v590
    %v641 = vsel %vm514, %v637, %v592
    %v642 = vsel %vm514, %v638, %v594
    %v643 = vsel %vm519, %v639, %v600
    %v644 = vsel %vm519, %v640, %v602
    %v645 = vsel %vm519, %v641, %v604
    %v646 = vsel %vm519, %v642, %v606
    %v647 = vsel %vm524, %v643, %v612
    %v648 = vsel %vm524, %v644, %v614
    %v649 = vsel %vm524, %v645, %v616
    %v650 = vsel %vm524, %v646, %v618
    %v651 = vmul.f32 %v48, %v647
    %v652 = vmul.f32 %v49, %v648
    %v653 = vmul.f32 %v48, %v649
    %v654 = vmul.f32 %v49, %v650
    %v655 = vpack.c.bf16 %v652, %v651
    %v656 = vpack.c.bf16 %v654, %v653
    %661 = vrot.lane.b32.xlu0 %v194, 8
    %v662 = vpop.permute.xlu0 %661
    %663 = vrot.lane.b32.xlu0 %v197, 8
    %v664 = vpop.permute.xlu0 %663
    %665 = vrot.lane.b32.xlu0 %v235, 8
    %v666 = vpop.permute.xlu0 %665
    %667 = vrot.lane.b32.xlu0 %v238, 8
    %v668 = vpop.permute.xlu0 %667
    %673 = vrot.lane.b32.xlu0 %v194, 16
    %v674 = vpop.permute.xlu0 %673
    %675 = vrot.lane.b32.xlu0 %v197, 16
    %v676 = vpop.permute.xlu0 %675
    %677 = vrot.lane.b32.xlu0 %v235, 16
    %v678 = vpop.permute.xlu0 %677
    %679 = vrot.lane.b32.xlu0 %v238, 16
    %v680 = vpop.permute.xlu0 %679
    %685 = vrot.lane.b32.xlu0 %v194, 24
    %v686 = vpop.permute.xlu0 %685
    %687 = vrot.lane.b32.xlu0 %v197, 24
    %v688 = vpop.permute.xlu0 %687
    %689 = vrot.lane.b32.xlu0 %v235, 24
    %v690 = vpop.permute.xlu0 %689
    %691 = vrot.lane.b32.xlu0 %v238, 24
    %v692 = vpop.permute.xlu0 %691
    %697 = vrot.lane.b32.xlu0 %v194, 32
    %v698 = vpop.permute.xlu0 %697
    %699 = vrot.lane.b32.xlu0 %v197, 32
    %v700 = vpop.permute.xlu0 %699
    %701 = vrot.lane.b32.xlu0 %v235, 32
    %v702 = vpop.permute.xlu0 %701
    %703 = vrot.lane.b32.xlu0 %v238, 32
    %v704 = vpop.permute.xlu0 %703
    %709 = vrot.lane.b32.xlu0 %v194, 40
    %v710 = vpop.permute.xlu0 %709
    %711 = vrot.lane.b32.xlu0 %v197, 40
    %v712 = vpop.permute.xlu0 %711
    %713 = vrot.lane.b32.xlu0 %v235, 40
    %v714 = vpop.permute.xlu0 %713
    %715 = vrot.lane.b32.xlu0 %v238, 40
    %v716 = vpop.permute.xlu0 %715
    %721 = vrot.lane.b32.xlu0 %v194, 48
    %v722 = vpop.permute.xlu0 %721
    %723 = vrot.lane.b32.xlu0 %v197, 48
    %v724 = vpop.permute.xlu0 %723
    %725 = vrot.lane.b32.xlu0 %v235, 48
    %v726 = vpop.permute.xlu0 %725
    %727 = vrot.lane.b32.xlu0 %v238, 48
    %v728 = vpop.permute.xlu0 %727
    %733 = vrot.lane.b32.xlu0 %v194, 56
    %v734 = vpop.permute.xlu0 %733
    %735 = vrot.lane.b32.xlu0 %v197, 56
    %v736 = vpop.permute.xlu0 %735
    %737 = vrot.lane.b32.xlu0 %v235, 56
    %v738 = vpop.permute.xlu0 %737
    %739 = vrot.lane.b32.xlu0 %v238, 56
    %v740 = vpop.permute.xlu0 %739
    %v745 = vsel %vm495, %v194, %v662
    %v746 = vsel %vm495, %v197, %v664
    %v747 = vsel %vm495, %v235, %v666
    %v748 = vsel %vm495, %v238, %v668
    %v749 = vsel %vm65, %v745, %v674
    %v750 = vsel %vm65, %v746, %v676
    %v751 = vsel %vm65, %v747, %v678
    %v752 = vsel %vm65, %v748, %v680
    %v753 = vsel %vm504, %v749, %v686
    %v754 = vsel %vm504, %v750, %v688
    %v755 = vsel %vm504, %v751, %v690
    %v756 = vsel %vm504, %v752, %v692
    %v757 = vsel %vm509, %v753, %v698
    %v758 = vsel %vm509, %v754, %v700
    %v759 = vsel %vm509, %v755, %v702
    %v760 = vsel %vm509, %v756, %v704
    %v761 = vsel %vm514, %v757, %v710
    %v762 = vsel %vm514, %v758, %v712
    %v763 = vsel %vm514, %v759, %v714
    %v764 = vsel %vm514, %v760, %v716
    %v765 = vsel %vm519, %v761, %v722
    %v766 = vsel %vm519, %v762, %v724
    %v767 = vsel %vm519, %v763, %v726
    %v768 = vsel %vm519, %v764, %v728
    %v769 = vsel %vm524, %v765, %v734
    %v770 = vsel %vm524, %v766, %v736
    %v771 = vsel %vm524, %v767, %v738
    %v772 = vsel %vm524, %v768, %v740
    %v773 = vmul.f32 %v48, %v769
    %v774 = vmul.f32 %v49, %v770
    %v775 = vmul.f32 %v48, %v771
    %v776 = vmul.f32 %v49, %v772
    %v777 = vpack.c.bf16 %v774, %v773
    %v778 = vpack.c.bf16 %v776, %v775
    %783 = vrot.lane.b32.xlu0 %v44, 32
    %v784 = vpop.permute.xlu0 %783
    %785 = vrot.lane.b32.xlu0 %v45, 32
    %v786 = vpop.permute.xlu0 %785
    %787 = vrot.lane.b32.xlu0 %v46, 32
    %v788 = vpop.permute.xlu0 %787
    %789 = vrot.lane.b32.xlu0 %v47, 32
    %v790 = vpop.permute.xlu0 %789
    %795 = vrot.lane.b32.xlu0 %v44, 64
    %v796 = vpop.permute.xlu0 %795
    %797 = vrot.lane.b32.xlu0 %v45, 64
    %v798 = vpop.permute.xlu0 %797
    %799 = vrot.lane.b32.xlu0 %v46, 64
    %v800 = vpop.permute.xlu0 %799
    %801 = vrot.lane.b32.xlu0 %v47, 64
    %v802 = vpop.permute.xlu0 %801
    %807 = vrot.lane.b32.xlu0 %v44, 96
    %v808 = vpop.permute.xlu0 %807
    %809 = vrot.lane.b32.xlu0 %v45, 96
    %v810 = vpop.permute.xlu0 %809
    %811 = vrot.lane.b32.xlu0 %v46, 96
    %v812 = vpop.permute.xlu0 %811
    %813 = vrot.lane.b32.xlu0 %v47, 96
    %v814 = vpop.permute.xlu0 %813
    %v819 = vsel %vm509, %v44, %v784
    %v820 = vsel %vm509, %v45, %v786
    %v821 = vsel %vm509, %v46, %v788
    %v822 = vsel %vm509, %v47, %v790
    %vm823 = vcmask 523264
    %v824 = vsel %vm823, %v819, %v796
    %v825 = vsel %vm823, %v820, %v798
    %v826 = vsel %vm823, %v821, %v800
    %v827 = vsel %vm823, %v822, %v802
    %vm828 = vcmask 785408
    %v829 = vsel %vm828, %v824, %v808
    %v830 = vsel %vm828, %v825, %v810
    %v831 = vsel %vm828, %v826, %v812
    %v832 = vsel %vm828, %v827, %v814
    %v833 = vmul.f32 %v50, %v829
    %v834 = vmul.f32 %v51, %v829
    %v835 = vmul.f32 %v52, %v830
    %v836 = vmul.f32 %v53, %v830
    %v837 = vmul.f32 %v50, %v831
    %v838 = vmul.f32 %v51, %v831
    %v839 = vmul.f32 %v52, %v832
    %v840 = vmul.f32 %v53, %v832
    %v841 = vpack.c.bf16 %v835, %v833
    %v842 = vpack.c.bf16 %v836, %v834
    %v843 = vpack.c.bf16 %v839, %v837
    %v844 = vpack.c.bf16 %v840, %v838
    %849 = vrot.lane.b32.xlu0 %v278, 32
    %v850 = vpop.permute.xlu0 %849
    %851 = vrot.lane.b32.xlu0 %v281, 32
    %v852 = vpop.permute.xlu0 %851
    %853 = vrot.lane.b32.xlu0 %v319, 32
    %v854 = vpop.permute.xlu0 %853
    %855 = vrot.lane.b32.xlu0 %v322, 32
    %v856 = vpop.permute.xlu0 %855
    %861 = vrot.lane.b32.xlu0 %v278, 64
    %v862 = vpop.permute.xlu0 %861
    %863 = vrot.lane.b32.xlu0 %v281, 64
    %v864 = vpop.permute.xlu0 %863
    %865 = vrot.lane.b32.xlu0 %v319, 64
    %v866 = vpop.permute.xlu0 %865
    %867 = vrot.lane.b32.xlu0 %v322, 64
    %v868 = vpop.permute.xlu0 %867
    %873 = vrot.lane.b32.xlu0 %v278, 96
    %v874 = vpop.permute.xlu0 %873
    %875 = vrot.lane.b32.xlu0 %v281, 96
    %v876 = vpop.permute.xlu0 %875
    %877 = vrot.lane.b32.xlu0 %v319, 96
    %v878 = vpop.permute.xlu0 %877
    %879 = vrot.lane.b32.xlu0 %v322, 96
    %v880 = vpop.permute.xlu0 %879
    %v885 = vsel %vm509, %v278, %v850
    %v886 = vsel %vm509, %v281, %v852
    %v887 = vsel %vm509, %v319, %v854
    %v888 = vsel %vm509, %v322, %v856
    %v889 = vsel %vm823, %v885, %v862
    %v890 = vsel %vm823, %v886, %v864
    %v891 = vsel %vm823, %v887, %v866
    %v892 = vsel %vm823, %v888, %v868
    %v893 = vsel %vm828, %v889, %v874
    %v894 = vsel %vm828, %v890, %v876
    %v895 = vsel %vm828, %v891, %v878
    %v896 = vsel %vm828, %v892, %v880
    %v897 = vmul.f32 %v50, %v893
    %v898 = vmul.f32 %v51, %v893
    %v899 = vmul.f32 %v52, %v894
    %v900 = vmul.f32 %v53, %v894
    %v901 = vmul.f32 %v50, %v895
    %v902 = vmul.f32 %v51, %v895
    %v903 = vmul.f32 %v52, %v896
    %v904 = vmul.f32 %v53, %v896
    %v905 = vpack.c.bf16 %v899, %v897
    %v906 = vpack.c.bf16 %v900, %v898
    %v907 = vpack.c.bf16 %v903, %v901
    %v908 = vpack.c.bf16 %v904, %v902
    %913 = vrot.lane.b32.xlu0 %v360, 32
    %v914 = vpop.permute.xlu0 %913
    %915 = vrot.lane.b32.xlu0 %v363, 32
    %v916 = vpop.permute.xlu0 %915
    %917 = vrot.lane.b32.xlu0 %v401, 32
    %v918 = vpop.permute.xlu0 %917
    %919 = vrot.lane.b32.xlu0 %v404, 32
    %v920 = vpop.permute.xlu0 %919
    %925 = vrot.lane.b32.xlu0 %v360, 64
    %v926 = vpop.permute.xlu0 %925
    %927 = vrot.lane.b32.xlu0 %v363, 64
    %v928 = vpop.permute.xlu0 %927
    %929 = vrot.lane.b32.xlu0 %v401, 64
    %v930 = vpop.permute.xlu0 %929
    %931 = vrot.lane.b32.xlu0 %v404, 64
    %v932 = vpop.permute.xlu0 %931
    %937 = vrot.lane.b32.xlu0 %v360, 96
    %v938 = vpop.permute.xlu0 %937
    %939 = vrot.lane.b32.xlu0 %v363, 96
    %v940 = vpop.permute.xlu0 %939
    %941 = vrot.lane.b32.xlu0 %v401, 96
    %v942 = vpop.permute.xlu0 %941
    %943 = vrot.lane.b32.xlu0 %v404, 96
    %v944 = vpop.permute.xlu0 %943
    %v949 = vsel %vm509, %v360, %v914
    %v950 = vsel %vm509, %v363, %v916
    %v951 = vsel %vm509, %v401, %v918
    %v952 = vsel %vm509, %v404, %v920
    %v953 = vsel %vm823, %v949, %v926
    %v954 = vsel %vm823, %v950, %v928
    %v955 = vsel %vm823, %v951, %v930
    %v956 = vsel %vm823, %v952, %v932
    %v957 = vsel %vm828, %v953, %v938
    %v958 = vsel %vm828, %v954, %v940
    %v959 = vsel %vm828, %v955, %v942
    %v960 = vsel %vm828, %v956, %v944
    %v961 = vmul.f32 %v50, %v957
    %v962 = vmul.f32 %v51, %v957
    %v963 = vmul.f32 %v52, %v958
    %v964 = vmul.f32 %v53, %v958
    %v965 = vmul.f32 %v50, %v959
    %v966 = vmul.f32 %v51, %v959
    %v967 = vmul.f32 %v52, %v960
    %v968 = vmul.f32 %v53, %v960
    %v969 = vpack.c.bf16 %v963, %v961
    %v970 = vpack.c.bf16 %v964, %v962
    %v971 = vpack.c.bf16 %v967, %v965
    %v972 = vpack.c.bf16 %v968, %v966
    %v973 = vld [vmem:[%s7] sm:$0xff]
    %v974 = vld [vmem:[%s7 + $0x8] sm:$0xff]
    %v975 = vld [vmem:[%s5] sm:$0xf]
    %v976 = vld [vmem:[%s5 + $0x4] sm:$0xf]
    %v977 = vld [vmem:[%s5 + $0x8] sm:$0xf]
    %v978 = vld [vmem:[%s5 + $0xc] sm:$0xf]
    %v979 = vld [vmem:[%s5 + $0x10] sm:$0xf]
    %v980 = vld [vmem:[%s5 + $0x14] sm:$0xf]
    %v981 = vld [vmem:[%s5 + $0x18] sm:$0xf]
    %v982 = vld [vmem:[%s5 + $0x1c] sm:$0xf]
    %v991 = vunpack.c.l.b16 %v975
    %v992 = vunpack.c.l.b16 %v976
    %v993 = vunpack.c.l.b16 %v977
    %v994 = vunpack.c.l.b16 %v978
    %v995 = vunpack.c.l.b16 %v979
    %v996 = vunpack.c.l.b16 %v980
    %v997 = vunpack.c.l.b16 %v981
    %v998 = vunpack.c.l.b16 %v982
    %v999 = vpack.c.b16 %v992, %v991
    %v1000 = vpack.c.b16 %v994, %v993
    %v1001 = vpack.c.b16 %v996, %v995
    %v1002 = vpack.c.b16 %v998, %v997
    %v1008 = vsel %vm823, %v533, 0
    %v1011 = vsel %vm823, %v534, 0
    %1013 = vmatprep.subr.bf16.mxu0 0
    %1014 = vmatpush1.bf16.msra.mxu0 0
    %1015 = vmatprep.subr.bf16.mxu0 0
    %1016 = vmatpush1.bf16.msra.mxu0 0
    %1017 = vmatprep.subr.bf16.mxu0 0
    %1018 = vmatpush1.bf16.msra.mxu0 0
    %1019 = vmatprep.subr.bf16.mxu0 0
    %1020 = vmatpush1.bf16.msra.mxu0 0
    %1021 = vmatprep.subr.bf16.mxu0 0
    %1022 = vmatpush1.bf16.msra.mxu0 %v1002
    %1023 = vmatprep.subr.bf16.mxu0 0
    %1024 = vmatpush1.bf16.msra.mxu0 %v1001
    %1025 = vmatprep.subr.bf16.mxu0 0
    %1026 = vmatpush1.bf16.msra.mxu0 %v1000
    %1027 = vmatprep.subr.bf16.mxu0 0
    %1028 = vmatpush1.bf16.msra.mxu0 %v999
    %1029 = vmatprep.subr.bf16.mxu0 0
    %1030 = vmatpush2.bf16.msra.mxu0 0
    %1031 = vmatprep.subr.bf16.mxu0 0
    %1032 = vmatpush2.bf16.msra.mxu0 0
    %1033 = vmatprep.subr.bf16.mxu0 0
    %1034 = vmatpush2.bf16.msra.mxu0 0
    %1035 = vmatprep.subr.bf16.mxu0 0
    %1036 = vmatpush2.bf16.msra.mxu0 0
    %1037 = vmatprep.subr.bf16.mxu0 0
    %1038 = vmatpush2.bf16.msra.mxu0 0
    %1039 = vmatprep.subr.bf16.mxu0 0
    %1040 = vmatpush2.bf16.msra.mxu0 0
    %1041 = vmatprep.subr.bf16.mxu0 0
    %1042 = vmatpush2.bf16.msra.mxu0 0
    %1043 = vmatprep.subr.bf16.mxu0 0
    %1044 = vmatpush2.bf16.msra.mxu0 0
    %1045 = vmatprep.mubr.bf16.mxu0 0
    %1046 = vmatmul.mubr.bf16.gmra.mxu0 %v1008
    %v1047 = vpop.f32.mrf.mxu0
    %v1048 = vadd.f32 0.0, %v1047
    %v1049 = vpop.f32.mrf.mxu0
    %v1050 = vpop.f32.mrf.mxu0
    %v1051 = vadd.f32 0.0, %v1050
    %v1052 = vpop.f32.mrf.mxu0
    %1053 = vmatprep.mubr.bf16.mxu0 0
    %1054 = vmatmul.mubr.bf16.gmra.mxu0 %v1011
    %v1055 = vpop.f32.mrf.mxu0
    %v1056 = vadd.f32 0.0, %v1055
    %v1057 = vpop.f32.mrf.mxu0
    %v1058 = vpop.f32.mrf.mxu0
    %v1059 = vadd.f32 0.0, %v1058
    %v1060 = vpop.f32.mrf.mxu0
    %1061 = vdwg.mxu0
    %v1062 = vadd.f32 %v973, %v1048
    %v1063 = vadd.f32 %v974, %v1051
    %v1064 = vadd.f32 %v973, %v1056
    %v1065 = vadd.f32 %v974, %v1059
    %v1066 = vld [vmem:[%s6] sm:$0xf]
    %v1067 = vld [vmem:[%s6 + $0x4] sm:$0xf]
    %v1068 = vld [vmem:[%s6 + $0x8] sm:$0xf]
    %v1069 = vld [vmem:[%s6 + $0xc] sm:$0xf]
    %v1070 = vld [vmem:[%s6 + $0x10] sm:$0xf]
    %v1071 = vld [vmem:[%s6 + $0x14] sm:$0xf]
    %v1072 = vld [vmem:[%s6 + $0x18] sm:$0xf]
    %v1073 = vld [vmem:[%s6 + $0x1c] sm:$0xf]
    %v1074 = vld [vmem:[%s6 + $0x20] sm:$0xf]
    %v1075 = vld [vmem:[%s6 + $0x24] sm:$0xf]
    %v1076 = vld [vmem:[%s6 + $0x28] sm:$0xf]
    %v1077 = vld [vmem:[%s6 + $0x2c] sm:$0xf]
    %v1078 = vld [vmem:[%s6 + $0x30] sm:$0xf]
    %v1079 = vld [vmem:[%s6 + $0x34] sm:$0xf]
    %v1080 = vld [vmem:[%s6 + $0x38] sm:$0xf]
    %v1081 = vld [vmem:[%s6 + $0x3c] sm:$0xf]
    %v1082 = vld [vmem:[%s6 + $0x40] sm:$0xf]
    %v1083 = vld [vmem:[%s6 + $0x44] sm:$0xf]
    %v1084 = vld [vmem:[%s6 + $0x48] sm:$0xf]
    %v1085 = vld [vmem:[%s6 + $0x4c] sm:$0xf]
    %v1086 = vld [vmem:[%s6 + $0x50] sm:$0xf]
    %v1087 = vld [vmem:[%s6 + $0x54] sm:$0xf]
    %v1088 = vld [vmem:[%s6 + $0x58] sm:$0xf]
    %v1089 = vld [vmem:[%s6 + $0x5c] sm:$0xf]
    %v1090 = vld [vmem:[%s6 + $0x60] sm:$0xf]
    %v1091 = vld [vmem:[%s6 + $0x64] sm:$0xf]
    %v1092 = vld [vmem:[%s6 + $0x68] sm:$0xf]
    %v1093 = vld [vmem:[%s6 + $0x6c] sm:$0xf]
    %v1094 = vld [vmem:[%s6 + $0x70] sm:$0xf]
    %v1095 = vld [vmem:[%s6 + $0x74] sm:$0xf]
    %v1096 = vld [vmem:[%s6 + $0x78] sm:$0xf]
    %v1097 = vld [vmem:[%s6 + $0x7c] sm:$0xf]
    %v1130 = vunpack.c.l.b16 %v1066
    %v1131 = vunpack.c.l.b16 %v1067
    %v1132 = vunpack.c.l.b16 %v1068
    %v1133 = vunpack.c.l.b16 %v1069
    %v1134 = vunpack.c.l.b16 %v1070
    %v1135 = vunpack.c.l.b16 %v1071
    %v1136 = vunpack.c.l.b16 %v1072
    %v1137 = vunpack.c.l.b16 %v1073
    %v1138 = vunpack.c.l.b16 %v1074
    %v1139 = vunpack.c.l.b16 %v1075
    %v1140 = vunpack.c.l.b16 %v1076
    %v1141 = vunpack.c.l.b16 %v1077
    %v1142 = vunpack.c.l.b16 %v1078
    %v1143 = vunpack.c.l.b16 %v1079
    %v1144 = vunpack.c.l.b16 %v1080
    %v1145 = vunpack.c.l.b16 %v1081
    %v1146 = vunpack.c.l.b16 %v1082
    %v1147 = vunpack.c.l.b16 %v1083
    %v1148 = vunpack.c.l.b16 %v1084
    %v1149 = vunpack.c.l.b16 %v1085
    %v1150 = vunpack.c.l.b16 %v1086
    %v1151 = vunpack.c.l.b16 %v1087
    %v1152 = vunpack.c.l.b16 %v1088
    %v1153 = vunpack.c.l.b16 %v1089
    %v1154 = vunpack.c.l.b16 %v1090
    %v1155 = vunpack.c.l.b16 %v1091
    %v1156 = vunpack.c.l.b16 %v1092
    %v1157 = vunpack.c.l.b16 %v1093
    %v1158 = vunpack.c.l.b16 %v1094
    %v1159 = vunpack.c.l.b16 %v1095
    %v1160 = vunpack.c.l.b16 %v1096
    %v1161 = vunpack.c.l.b16 %v1097
    %v1162 = vpack.c.b16 %v1131, %v1130
    %v1163 = vpack.c.b16 %v1133, %v1132
    %v1164 = vpack.c.b16 %v1135, %v1134
    %v1165 = vpack.c.b16 %v1137, %v1136
    %v1166 = vpack.c.b16 %v1139, %v1138
    %v1167 = vpack.c.b16 %v1141, %v1140
    %v1168 = vpack.c.b16 %v1143, %v1142
    %v1169 = vpack.c.b16 %v1145, %v1144
    %v1170 = vpack.c.b16 %v1147, %v1146
    %v1171 = vpack.c.b16 %v1149, %v1148
    %v1172 = vpack.c.b16 %v1151, %v1150
    %v1173 = vpack.c.b16 %v1153, %v1152
    %v1174 = vpack.c.b16 %v1155, %v1154
    %v1175 = vpack.c.b16 %v1157, %v1156
    %v1176 = vpack.c.b16 %v1159, %v1158
    %v1177 = vpack.c.b16 %v1161, %v1160
    %1194 = vmatprep.subr.bf16.mxu0 0
    %1195 = vmatpush1.bf16.msra.mxu0 %v1169
    %1196 = vmatprep.subr.bf16.mxu0 0
    %1197 = vmatpush1.bf16.msra.mxu0 %v1168
    %1198 = vmatprep.subr.bf16.mxu0 0
    %1199 = vmatpush1.bf16.msra.mxu0 %v1167
    %1200 = vmatprep.subr.bf16.mxu0 0
    %1201 = vmatpush1.bf16.msra.mxu0 %v1166
    %1202 = vmatprep.subr.bf16.mxu0 0
    %1203 = vmatpush1.bf16.msra.mxu0 %v1165
    %1204 = vmatprep.subr.bf16.mxu0 0
    %1205 = vmatpush1.bf16.msra.mxu0 %v1164
    %1206 = vmatprep.subr.bf16.mxu0 0
    %1207 = vmatpush1.bf16.msra.mxu0 %v1163
    %1208 = vmatprep.subr.bf16.mxu0 0
    %1209 = vmatpush1.bf16.msra.mxu0 %v1162
    %1210 = vmatprep.subr.bf16.mxu0 0
    %1211 = vmatpush2.bf16.msra.mxu0 %v1177
    %1212 = vmatprep.subr.bf16.mxu0 0
    %1213 = vmatpush2.bf16.msra.mxu0 %v1176
    %1214 = vmatprep.subr.bf16.mxu0 0
    %1215 = vmatpush2.bf16.msra.mxu0 %v1175
    %1216 = vmatprep.subr.bf16.mxu0 0
    %1217 = vmatpush2.bf16.msra.mxu0 %v1174
    %1218 = vmatprep.subr.bf16.mxu0 0
    %1219 = vmatpush2.bf16.msra.mxu0 %v1173
    %1220 = vmatprep.subr.bf16.mxu0 0
    %1221 = vmatpush2.bf16.msra.mxu0 %v1172
    %1222 = vmatprep.subr.bf16.mxu0 0
    %1223 = vmatpush2.bf16.msra.mxu0 %v1171
    %1224 = vmatprep.subr.bf16.mxu0 0
    %1225 = vmatpush2.bf16.msra.mxu0 %v1170
    %1226 = vmatprep.mubr.bf16.mxu0 %v842
    %1227 = vmatmul.mubr.bf16.gmra.mxu0 %v841
    %v1228 = vpop.f32.mrf.mxu0
    %v1229 = vadd.f32 0.0, %v1228
    %v1230 = vpop.f32.mrf.mxu0
    %v1231 = vpop.f32.mrf.mxu0
    %v1232 = vadd.f32 0.0, %v1231
    %v1233 = vpop.f32.mrf.mxu0
    %1234 = vmatprep.mubr.bf16.mxu0 %v844
    %1235 = vmatmul.mubr.bf16.gmra.mxu0 %v843
    %v1236 = vpop.f32.mrf.mxu0
    %v1237 = vadd.f32 0.0, %v1236
    %v1238 = vpop.f32.mrf.mxu0
    %v1239 = vpop.f32.mrf.mxu0
    %v1240 = vadd.f32 0.0, %v1239
    %v1241 = vpop.f32.mrf.mxu0
    %1242 = vdwg.mxu0
    %v1243 = vadd.f32 %v1062, %v1229
    %v1244 = vadd.f32 %v1063, %v1232
    %v1245 = vadd.f32 %v1064, %v1237
    %v1246 = vadd.f32 %v1065, %v1240
    %s1247 = scalar_lea.vmem %s5, 32
    %v1248 = vld [vmem:[%s1247] sm:$0xf]
    %v1249 = vld [vmem:[%s1247 + $0x4] sm:$0xf]
    %v1250 = vld [vmem:[%s1247 + $0x8] sm:$0xf]
    %v1251 = vld [vmem:[%s1247 + $0xc] sm:$0xf]
    %v1252 = vld [vmem:[%s1247 + $0x10] sm:$0xf]
    %v1253 = vld [vmem:[%s1247 + $0x14] sm:$0xf]
    %v1254 = vld [vmem:[%s1247 + $0x18] sm:$0xf]
    %v1255 = vld [vmem:[%s1247 + $0x1c] sm:$0xf]
    %v1264 = vunpack.c.l.b16 %v1248
    %v1265 = vunpack.c.l.b16 %v1249
    %v1266 = vunpack.c.l.b16 %v1250
    %v1267 = vunpack.c.l.b16 %v1251
    %v1268 = vunpack.c.l.b16 %v1252
    %v1269 = vunpack.c.l.b16 %v1253
    %v1270 = vunpack.c.l.b16 %v1254
    %v1271 = vunpack.c.l.b16 %v1255
    %v1272 = vpack.c.b16 %v1265, %v1264
    %v1273 = vpack.c.b16 %v1267, %v1266
    %v1274 = vpack.c.b16 %v1269, %v1268
    %v1275 = vpack.c.b16 %v1271, %v1270
    %v1281 = vsel %vm823, %v655, 0
    %v1284 = vsel %vm823, %v656, 0
    %1286 = vmatprep.subr.bf16.mxu0 0
    %1287 = vmatpush1.bf16.msra.mxu0 0
    %1288 = vmatprep.subr.bf16.mxu0 0
    %1289 = vmatpush1.bf16.msra.mxu0 0
    %1290 = vmatprep.subr.bf16.mxu0 0
    %1291 = vmatpush1.bf16.msra.mxu0 0
    %1292 = vmatprep.subr.bf16.mxu0 0
    %1293 = vmatpush1.bf16.msra.mxu0 0
    %1294 = vmatprep.subr.bf16.mxu0 0
    %1295 = vmatpush1.bf16.msra.mxu0 %v1275
    %1296 = vmatprep.subr.bf16.mxu0 0
    %1297 = vmatpush1.bf16.msra.mxu0 %v1274
    %1298 = vmatprep.subr.bf16.mxu0 0
    %1299 = vmatpush1.bf16.msra.mxu0 %v1273
    %1300 = vmatprep.subr.bf16.mxu0 0
    %1301 = vmatpush1.bf16.msra.mxu0 %v1272
    %1302 = vmatprep.subr.bf16.mxu0 0
    %1303 = vmatpush2.bf16.msra.mxu0 0
    %1304 = vmatprep.subr.bf16.mxu0 0
    %1305 = vmatpush2.bf16.msra.mxu0 0
    %1306 = vmatprep.subr.bf16.mxu0 0
    %1307 = vmatpush2.bf16.msra.mxu0 0
    %1308 = vmatprep.subr.bf16.mxu0 0
    %1309 = vmatpush2.bf16.msra.mxu0 0
    %1310 = vmatprep.subr.bf16.mxu0 0
    %1311 = vmatpush2.bf16.msra.mxu0 0
    %1312 = vmatprep.subr.bf16.mxu0 0
    %1313 = vmatpush2.bf16.msra.mxu0 0
    %1314 = vmatprep.subr.bf16.mxu0 0
    %1315 = vmatpush2.bf16.msra.mxu0 0
    %1316 = vmatprep.subr.bf16.mxu0 0
    %1317 = vmatpush2.bf16.msra.mxu0 0
    %1318 = vmatprep.mubr.bf16.mxu0 0
    %1319 = vmatmul.mubr.bf16.gmra.mxu0 %v1281
    %v1320 = vpop.f32.mrf.mxu0
    %v1321 = vadd.f32 0.0, %v1320
    %v1322 = vpop.f32.mrf.mxu0
    %v1323 = vpop.f32.mrf.mxu0
    %v1324 = vadd.f32 0.0, %v1323
    %v1325 = vpop.f32.mrf.mxu0
    %1326 = vmatprep.mubr.bf16.mxu0 0
    %1327 = vmatmul.mubr.bf16.gmra.mxu0 %v1284
    %v1328 = vpop.f32.mrf.mxu0
    %v1329 = vadd.f32 0.0, %v1328
    %v1330 = vpop.f32.mrf.mxu0
    %v1331 = vpop.f32.mrf.mxu0
    %v1332 = vadd.f32 0.0, %v1331
    %v1333 = vpop.f32.mrf.mxu0
    %1334 = vdwg.mxu0
    %v1335 = vadd.f32 %v1243, %v1321
    %v1336 = vadd.f32 %v1244, %v1324
    %v1337 = vadd.f32 %v1245, %v1329
    %v1338 = vadd.f32 %v1246, %v1332
    %s1339 = scalar_lea.vmem %s6, 128
    %v1340 = vld [vmem:[%s1339] sm:$0xf]
    %v1341 = vld [vmem:[%s1339 + $0x4] sm:$0xf]
    %v1342 = vld [vmem:[%s1339 + $0x8] sm:$0xf]
    %v1343 = vld [vmem:[%s1339 + $0xc] sm:$0xf]
    %v1344 = vld [vmem:[%s1339 + $0x10] sm:$0xf]
    %v1345 = vld [vmem:[%s1339 + $0x14] sm:$0xf]
    %v1346 = vld [vmem:[%s1339 + $0x18] sm:$0xf]
    %v1347 = vld [vmem:[%s1339 + $0x1c] sm:$0xf]
    %v1348 = vld [vmem:[%s1339 + $0x20] sm:$0xf]
    %v1349 = vld [vmem:[%s1339 + $0x24] sm:$0xf]
    %v1350 = vld [vmem:[%s1339 + $0x28] sm:$0xf]
    %v1351 = vld [vmem:[%s1339 + $0x2c] sm:$0xf]
    %v1352 = vld [vmem:[%s1339 + $0x30] sm:$0xf]
    %v1353 = vld [vmem:[%s1339 + $0x34] sm:$0xf]
    %v1354 = vld [vmem:[%s1339 + $0x38] sm:$0xf]
    %v1355 = vld [vmem:[%s1339 + $0x3c] sm:$0xf]
    %v1356 = vld [vmem:[%s1339 + $0x40] sm:$0xf]
    %v1357 = vld [vmem:[%s1339 + $0x44] sm:$0xf]
    %v1358 = vld [vmem:[%s1339 + $0x48] sm:$0xf]
    %v1359 = vld [vmem:[%s1339 + $0x4c] sm:$0xf]
    %v1360 = vld [vmem:[%s1339 + $0x50] sm:$0xf]
    %v1361 = vld [vmem:[%s1339 + $0x54] sm:$0xf]
    %v1362 = vld [vmem:[%s1339 + $0x58] sm:$0xf]
    %v1363 = vld [vmem:[%s1339 + $0x5c] sm:$0xf]
    %v1364 = vld [vmem:[%s1339 + $0x60] sm:$0xf]
    %v1365 = vld [vmem:[%s1339 + $0x64] sm:$0xf]
    %v1366 = vld [vmem:[%s1339 + $0x68] sm:$0xf]
    %v1367 = vld [vmem:[%s1339 + $0x6c] sm:$0xf]
    %v1368 = vld [vmem:[%s1339 + $0x70] sm:$0xf]
    %v1369 = vld [vmem:[%s1339 + $0x74] sm:$0xf]
    %v1370 = vld [vmem:[%s1339 + $0x78] sm:$0xf]
    %v1371 = vld [vmem:[%s1339 + $0x7c] sm:$0xf]
    %v1404 = vunpack.c.l.b16 %v1340
    %v1405 = vunpack.c.l.b16 %v1341
    %v1406 = vunpack.c.l.b16 %v1342
    %v1407 = vunpack.c.l.b16 %v1343
    %v1408 = vunpack.c.l.b16 %v1344
    %v1409 = vunpack.c.l.b16 %v1345
    %v1410 = vunpack.c.l.b16 %v1346
    %v1411 = vunpack.c.l.b16 %v1347
    %v1412 = vunpack.c.l.b16 %v1348
    %v1413 = vunpack.c.l.b16 %v1349
    %v1414 = vunpack.c.l.b16 %v1350
    %v1415 = vunpack.c.l.b16 %v1351
    %v1416 = vunpack.c.l.b16 %v1352
    %v1417 = vunpack.c.l.b16 %v1353
    %v1418 = vunpack.c.l.b16 %v1354
    %v1419 = vunpack.c.l.b16 %v1355
    %v1420 = vunpack.c.l.b16 %v1356
    %v1421 = vunpack.c.l.b16 %v1357
    %v1422 = vunpack.c.l.b16 %v1358
    %v1423 = vunpack.c.l.b16 %v1359
    %v1424 = vunpack.c.l.b16 %v1360
    %v1425 = vunpack.c.l.b16 %v1361
    %v1426 = vunpack.c.l.b16 %v1362
    %v1427 = vunpack.c.l.b16 %v1363
    %v1428 = vunpack.c.l.b16 %v1364
    %v1429 = vunpack.c.l.b16 %v1365
    %v1430 = vunpack.c.l.b16 %v1366
    %v1431 = vunpack.c.l.b16 %v1367
    %v1432 = vunpack.c.l.b16 %v1368
    %v1433 = vunpack.c.l.b16 %v1369
    %v1434 = vunpack.c.l.b16 %v1370
    %v1435 = vunpack.c.l.b16 %v1371
    %v1436 = vpack.c.b16 %v1405, %v1404
    %v1437 = vpack.c.b16 %v1407, %v1406
    %v1438 = vpack.c.b16 %v1409, %v1408
    %v1439 = vpack.c.b16 %v1411, %v1410
    %v1440 = vpack.c.b16 %v1413, %v1412
    %v1441 = vpack.c.b16 %v1415, %v1414
    %v1442 = vpack.c.b16 %v1417, %v1416
    %v1443 = vpack.c.b16 %v1419, %v1418
    %v1444 = vpack.c.b16 %v1421, %v1420
    %v1445 = vpack.c.b16 %v1423, %v1422
    %v1446 = vpack.c.b16 %v1425, %v1424
    %v1447 = vpack.c.b16 %v1427, %v1426
    %v1448 = vpack.c.b16 %v1429, %v1428
    %v1449 = vpack.c.b16 %v1431, %v1430
    %v1450 = vpack.c.b16 %v1433, %v1432
    %v1451 = vpack.c.b16 %v1435, %v1434
    %1468 = vmatprep.subr.bf16.mxu0 0
    %1469 = vmatpush1.bf16.msra.mxu0 %v1443
    %1470 = vmatprep.subr.bf16.mxu0 0
    %1471 = vmatpush1.bf16.msra.mxu0 %v1442
    %1472 = vmatprep.subr.bf16.mxu0 0
    %1473 = vmatpush1.bf16.msra.mxu0 %v1441
    %1474 = vmatprep.subr.bf16.mxu0 0
    %1475 = vmatpush1.bf16.msra.mxu0 %v1440
    %1476 = vmatprep.subr.bf16.mxu0 0
    %1477 = vmatpush1.bf16.msra.mxu0 %v1439
    %1478 = vmatprep.subr.bf16.mxu0 0
    %1479 = vmatpush1.bf16.msra.mxu0 %v1438
    %1480 = vmatprep.subr.bf16.mxu0 0
    %1481 = vmatpush1.bf16.msra.mxu0 %v1437
    %1482 = vmatprep.subr.bf16.mxu0 0
    %1483 = vmatpush1.bf16.msra.mxu0 %v1436
    %1484 = vmatprep.subr.bf16.mxu0 0
    %1485 = vmatpush2.bf16.msra.mxu0 %v1451
    %1486 = vmatprep.subr.bf16.mxu0 0
    %1487 = vmatpush2.bf16.msra.mxu0 %v1450
    %1488 = vmatprep.subr.bf16.mxu0 0
    %1489 = vmatpush2.bf16.msra.mxu0 %v1449
    %1490 = vmatprep.subr.bf16.mxu0 0
    %1491 = vmatpush2.bf16.msra.mxu0 %v1448
    %1492 = vmatprep.subr.bf16.mxu0 0
    %1493 = vmatpush2.bf16.msra.mxu0 %v1447
    %1494 = vmatprep.subr.bf16.mxu0 0
    %1495 = vmatpush2.bf16.msra.mxu0 %v1446
    %1496 = vmatprep.subr.bf16.mxu0 0
    %1497 = vmatpush2.bf16.msra.mxu0 %v1445
    %1498 = vmatprep.subr.bf16.mxu0 0
    %1499 = vmatpush2.bf16.msra.mxu0 %v1444
    %1500 = vmatprep.mubr.bf16.mxu0 %v906
    %1501 = vmatmul.mubr.bf16.gmra.mxu0 %v905
    %v1502 = vpop.f32.mrf.mxu0
    %v1503 = vadd.f32 0.0, %v1502
    %v1504 = vpop.f32.mrf.mxu0
    %v1505 = vpop.f32.mrf.mxu0
    %v1506 = vadd.f32 0.0, %v1505
    %v1507 = vpop.f32.mrf.mxu0
    %1508 = vmatprep.mubr.bf16.mxu0 %v908
    %1509 = vmatmul.mubr.bf16.gmra.mxu0 %v907
    %v1510 = vpop.f32.mrf.mxu0
    %v1511 = vadd.f32 0.0, %v1510
    %v1512 = vpop.f32.mrf.mxu0
    %v1513 = vpop.f32.mrf.mxu0
    %v1514 = vadd.f32 0.0, %v1513
    %v1515 = vpop.f32.mrf.mxu0
    %1516 = vdwg.mxu0
    %v1517 = vadd.f32 %v1335, %v1503
    %v1518 = vadd.f32 %v1336, %v1506
    %v1519 = vadd.f32 %v1337, %v1511
    %v1520 = vadd.f32 %v1338, %v1514
    %s1521 = scalar_lea.vmem %s5, 64
    %v1522 = vld [vmem:[%s1521] sm:$0xf]
    %v1523 = vld [vmem:[%s1521 + $0x4] sm:$0xf]
    %v1524 = vld [vmem:[%s1521 + $0x8] sm:$0xf]
    %v1525 = vld [vmem:[%s1521 + $0xc] sm:$0xf]
    %v1526 = vld [vmem:[%s1521 + $0x10] sm:$0xf]
    %v1527 = vld [vmem:[%s1521 + $0x14] sm:$0xf]
    %v1528 = vld [vmem:[%s1521 + $0x18] sm:$0xf]
    %v1529 = vld [vmem:[%s1521 + $0x1c] sm:$0xf]
    %v1538 = vunpack.c.l.b16 %v1522
    %v1539 = vunpack.c.l.b16 %v1523
    %v1540 = vunpack.c.l.b16 %v1524
    %v1541 = vunpack.c.l.b16 %v1525
    %v1542 = vunpack.c.l.b16 %v1526
    %v1543 = vunpack.c.l.b16 %v1527
    %v1544 = vunpack.c.l.b16 %v1528
    %v1545 = vunpack.c.l.b16 %v1529
    %v1546 = vpack.c.b16 %v1539, %v1538
    %v1547 = vpack.c.b16 %v1541, %v1540
    %v1548 = vpack.c.b16 %v1543, %v1542
    %v1549 = vpack.c.b16 %v1545, %v1544
    %v1555 = vsel %vm823, %v777, 0
    %v1558 = vsel %vm823, %v778, 0
    %1560 = vmatprep.subr.bf16.mxu0 0
    %1561 = vmatpush1.bf16.msra.mxu0 0
    %1562 = vmatprep.subr.bf16.mxu0 0
    %1563 = vmatpush1.bf16.msra.mxu0 0
    %1564 = vmatprep.subr.bf16.mxu0 0
    %1565 = vmatpush1.bf16.msra.mxu0 0
    %1566 = vmatprep.subr.bf16.mxu0 0
    %1567 = vmatpush1.bf16.msra.mxu0 0
    %1568 = vmatprep.subr.bf16.mxu0 0
    %1569 = vmatpush1.bf16.msra.mxu0 %v1549
    %1570 = vmatprep.subr.bf16.mxu0 0
    %1571 = vmatpush1.bf16.msra.mxu0 %v1548
    %1572 = vmatprep.subr.bf16.mxu0 0
    %1573 = vmatpush1.bf16.msra.mxu0 %v1547
    %1574 = vmatprep.subr.bf16.mxu0 0
    %1575 = vmatpush1.bf16.msra.mxu0 %v1546
    %1576 = vmatprep.subr.bf16.mxu0 0
    %1577 = vmatpush2.bf16.msra.mxu0 0
    %1578 = vmatprep.subr.bf16.mxu0 0
    %1579 = vmatpush2.bf16.msra.mxu0 0
    %1580 = vmatprep.subr.bf16.mxu0 0
    %1581 = vmatpush2.bf16.msra.mxu0 0
    %1582 = vmatprep.subr.bf16.mxu0 0
    %1583 = vmatpush2.bf16.msra.mxu0 0
    %1584 = vmatprep.subr.bf16.mxu0 0
    %1585 = vmatpush2.bf16.msra.mxu0 0
    %1586 = vmatprep.subr.bf16.mxu0 0
    %1587 = vmatpush2.bf16.msra.mxu0 0
    %1588 = vmatprep.subr.bf16.mxu0 0
    %1589 = vmatpush2.bf16.msra.mxu0 0
    %1590 = vmatprep.subr.bf16.mxu0 0
    %1591 = vmatpush2.bf16.msra.mxu0 0
    %1592 = vmatprep.mubr.bf16.mxu0 0
    %1593 = vmatmul.mubr.bf16.gmra.mxu0 %v1555
    %v1594 = vpop.f32.mrf.mxu0
    %v1595 = vadd.f32 0.0, %v1594
    %v1596 = vpop.f32.mrf.mxu0
    %v1597 = vpop.f32.mrf.mxu0
    %v1598 = vadd.f32 0.0, %v1597
    %v1599 = vpop.f32.mrf.mxu0
    %1600 = vmatprep.mubr.bf16.mxu0 0
    %1601 = vmatmul.mubr.bf16.gmra.mxu0 %v1558
    %v1602 = vpop.f32.mrf.mxu0
    %v1603 = vadd.f32 0.0, %v1602
    %v1604 = vpop.f32.mrf.mxu0
    %v1605 = vpop.f32.mrf.mxu0
    %v1606 = vadd.f32 0.0, %v1605
    %v1607 = vpop.f32.mrf.mxu0
    %1608 = vdwg.mxu0
    %v1609 = vadd.f32 %v1517, %v1595
    %v1610 = vadd.f32 %v1518, %v1598
    %v1611 = vadd.f32 %v1519, %v1603
    %v1612 = vadd.f32 %v1520, %v1606
    %s1613 = scalar_lea.vmem %s6, 256
    %v1614 = vld [vmem:[%s1613] sm:$0xf]
    %v1615 = vld [vmem:[%s1613 + $0x4] sm:$0xf]
    %v1616 = vld [vmem:[%s1613 + $0x8] sm:$0xf]
    %v1617 = vld [vmem:[%s1613 + $0xc] sm:$0xf]
    %v1618 = vld [vmem:[%s1613 + $0x10] sm:$0xf]
    %v1619 = vld [vmem:[%s1613 + $0x14] sm:$0xf]
    %v1620 = vld [vmem:[%s1613 + $0x18] sm:$0xf]
    %v1621 = vld [vmem:[%s1613 + $0x1c] sm:$0xf]
    %v1622 = vld [vmem:[%s1613 + $0x20] sm:$0xf]
    %v1623 = vld [vmem:[%s1613 + $0x24] sm:$0xf]
    %v1624 = vld [vmem:[%s1613 + $0x28] sm:$0xf]
    %v1625 = vld [vmem:[%s1613 + $0x2c] sm:$0xf]
    %v1626 = vld [vmem:[%s1613 + $0x30] sm:$0xf]
    %v1627 = vld [vmem:[%s1613 + $0x34] sm:$0xf]
    %v1628 = vld [vmem:[%s1613 + $0x38] sm:$0xf]
    %v1629 = vld [vmem:[%s1613 + $0x3c] sm:$0xf]
    %v1630 = vld [vmem:[%s1613 + $0x40] sm:$0xf]
    %v1631 = vld [vmem:[%s1613 + $0x44] sm:$0xf]
    %v1632 = vld [vmem:[%s1613 + $0x48] sm:$0xf]
    %v1633 = vld [vmem:[%s1613 + $0x4c] sm:$0xf]
    %v1634 = vld [vmem:[%s1613 + $0x50] sm:$0xf]
    %v1635 = vld [vmem:[%s1613 + $0x54] sm:$0xf]
    %v1636 = vld [vmem:[%s1613 + $0x58] sm:$0xf]
    %v1637 = vld [vmem:[%s1613 + $0x5c] sm:$0xf]
    %v1638 = vld [vmem:[%s1613 + $0x60] sm:$0xf]
    %v1639 = vld [vmem:[%s1613 + $0x64] sm:$0xf]
    %v1640 = vld [vmem:[%s1613 + $0x68] sm:$0xf]
    %v1641 = vld [vmem:[%s1613 + $0x6c] sm:$0xf]
    %v1642 = vld [vmem:[%s1613 + $0x70] sm:$0xf]
    %v1643 = vld [vmem:[%s1613 + $0x74] sm:$0xf]
    %v1644 = vld [vmem:[%s1613 + $0x78] sm:$0xf]
    %v1645 = vld [vmem:[%s1613 + $0x7c] sm:$0xf]
    %v1678 = vunpack.c.l.b16 %v1614
    %v1679 = vunpack.c.l.b16 %v1615
    %v1680 = vunpack.c.l.b16 %v1616
    %v1681 = vunpack.c.l.b16 %v1617
    %v1682 = vunpack.c.l.b16 %v1618
    %v1683 = vunpack.c.l.b16 %v1619
    %v1684 = vunpack.c.l.b16 %v1620
    %v1685 = vunpack.c.l.b16 %v1621
    %v1686 = vunpack.c.l.b16 %v1622
    %v1687 = vunpack.c.l.b16 %v1623
    %v1688 = vunpack.c.l.b16 %v1624
    %v1689 = vunpack.c.l.b16 %v1625
    %v1690 = vunpack.c.l.b16 %v1626
    %v1691 = vunpack.c.l.b16 %v1627
    %v1692 = vunpack.c.l.b16 %v1628
    %v1693 = vunpack.c.l.b16 %v1629
    %v1694 = vunpack.c.l.b16 %v1630
    %v1695 = vunpack.c.l.b16 %v1631
    %v1696 = vunpack.c.l.b16 %v1632
    %v1697 = vunpack.c.l.b16 %v1633
    %v1698 = vunpack.c.l.b16 %v1634
    %v1699 = vunpack.c.l.b16 %v1635
    %v1700 = vunpack.c.l.b16 %v1636
    %v1701 = vunpack.c.l.b16 %v1637
    %v1702 = vunpack.c.l.b16 %v1638
    %v1703 = vunpack.c.l.b16 %v1639
    %v1704 = vunpack.c.l.b16 %v1640
    %v1705 = vunpack.c.l.b16 %v1641
    %v1706 = vunpack.c.l.b16 %v1642
    %v1707 = vunpack.c.l.b16 %v1643
    %v1708 = vunpack.c.l.b16 %v1644
    %v1709 = vunpack.c.l.b16 %v1645
    %v1710 = vpack.c.b16 %v1679, %v1678
    %v1711 = vpack.c.b16 %v1681, %v1680
    %v1712 = vpack.c.b16 %v1683, %v1682
    %v1713 = vpack.c.b16 %v1685, %v1684
    %v1714 = vpack.c.b16 %v1687, %v1686
    %v1715 = vpack.c.b16 %v1689, %v1688
    %v1716 = vpack.c.b16 %v1691, %v1690
    %v1717 = vpack.c.b16 %v1693, %v1692
    %v1718 = vpack.c.b16 %v1695, %v1694
    %v1719 = vpack.c.b16 %v1697, %v1696
    %v1720 = vpack.c.b16 %v1699, %v1698
    %v1721 = vpack.c.b16 %v1701, %v1700
    %v1722 = vpack.c.b16 %v1703, %v1702
    %v1723 = vpack.c.b16 %v1705, %v1704
    %v1724 = vpack.c.b16 %v1707, %v1706
    %v1725 = vpack.c.b16 %v1709, %v1708
    %1742 = vmatprep.subr.bf16.mxu0 0
    %1743 = vmatpush1.bf16.msra.mxu0 %v1717
    %1744 = vmatprep.subr.bf16.mxu0 0
    %1745 = vmatpush1.bf16.msra.mxu0 %v1716
    %1746 = vmatprep.subr.bf16.mxu0 0
    %1747 = vmatpush1.bf16.msra.mxu0 %v1715
    %1748 = vmatprep.subr.bf16.mxu0 0
    %1749 = vmatpush1.bf16.msra.mxu0 %v1714
    %1750 = vmatprep.subr.bf16.mxu0 0
    %1751 = vmatpush1.bf16.msra.mxu0 %v1713
    %1752 = vmatprep.subr.bf16.mxu0 0
    %1753 = vmatpush1.bf16.msra.mxu0 %v1712
    %1754 = vmatprep.subr.bf16.mxu0 0
    %1755 = vmatpush1.bf16.msra.mxu0 %v1711
    %1756 = vmatprep.subr.bf16.mxu0 0
    %1757 = vmatpush1.bf16.msra.mxu0 %v1710
    %1758 = vmatprep.subr.bf16.mxu0 0
    %1759 = vmatpush2.bf16.msra.mxu0 %v1725
    %1760 = vmatprep.subr.bf16.mxu0 0
    %1761 = vmatpush2.bf16.msra.mxu0 %v1724
    %1762 = vmatprep.subr.bf16.mxu0 0
    %1763 = vmatpush2.bf16.msra.mxu0 %v1723
    %1764 = vmatprep.subr.bf16.mxu0 0
    %1765 = vmatpush2.bf16.msra.mxu0 %v1722
    %1766 = vmatprep.subr.bf16.mxu0 0
    %1767 = vmatpush2.bf16.msra.mxu0 %v1721
    %1768 = vmatprep.subr.bf16.mxu0 0
    %1769 = vmatpush2.bf16.msra.mxu0 %v1720
    %1770 = vmatprep.subr.bf16.mxu0 0
    %1771 = vmatpush2.bf16.msra.mxu0 %v1719
    %1772 = vmatprep.subr.bf16.mxu0 0
    %1773 = vmatpush2.bf16.msra.mxu0 %v1718
    %1774 = vmatprep.mubr.bf16.mxu0 %v970
    %1775 = vmatmul.mubr.bf16.gmra.mxu0 %v969
    %v1776 = vpop.f32.mrf.mxu0
    %v1777 = vadd.f32 0.0, %v1776
    %v1778 = vpop.f32.mrf.mxu0
    %v1779 = vpop.f32.mrf.mxu0
    %v1780 = vadd.f32 0.0, %v1779
    %v1781 = vpop.f32.mrf.mxu0
    %1782 = vmatprep.mubr.bf16.mxu0 %v972
    %1783 = vmatmul.mubr.bf16.gmra.mxu0 %v971
    %v1784 = vpop.f32.mrf.mxu0
    %v1785 = vadd.f32 0.0, %v1784
    %v1786 = vpop.f32.mrf.mxu0
    %v1787 = vpop.f32.mrf.mxu0
    %v1788 = vadd.f32 0.0, %v1787
    %v1789 = vpop.f32.mrf.mxu0
    %1790 = vdwg.mxu0
    %v1791 = vadd.f32 %v1609, %v1777
    %v1792 = vadd.f32 %v1610, %v1780
    %v1793 = vadd.f32 %v1611, %v1785
    %v1794 = vadd.f32 %v1612, %v1788
    %v1795 = vxor.u32 %v1791, 2147483648
    %v1796 = vxor.u32 %v1792, 2147483648
    %v1797 = vxor.u32 %v1793, 2147483648
    %v1798 = vxor.u32 %v1794, 2147483648
    %v1799 = vmul.f32 %v1795, 1.442695
    %v1800 = vpow.pop %v1799
    %v1801 = vmul.f32 %v1796, 1.442695
    %v1802 = vpow.pop %v1801
    %v1803 = vmul.f32 %v1797, 1.442695
    %v1804 = vpow.pop %v1803
    %v1805 = vmul.f32 %v1798, 1.442695
    %v1806 = vpow.pop %v1805
    %v1807 = vadd.f32 %v1800, 1.0
    %v1808 = vadd.f32 %v1802, 1.0
    %v1809 = vadd.f32 %v1804, 1.0
    %v1810 = vadd.f32 %v1806, 1.0
    %v1811 = vrcp.pop %v1807
    %v1812 = vmul.f32 1.0, %v1811
    %v1813 = vrcp.pop %v1808
    %v1814 = vmul.f32 1.0, %v1813
    %v1815 = vrcp.pop %v1809
    %v1816 = vmul.f32 1.0, %v1815
    %v1817 = vrcp.pop %v1810
    %v1818 = vmul.f32 1.0, %v1817
    %v1819 = vmul.f32 %v1812, %v44
    %v1820 = vmul.f32 %v1814, %v45
    %v1821 = vmul.f32 %v1816, %v46
    %v1822 = vmul.f32 %v1818, %v47
    %v1823 = vpack.c.bf16 %v1820, %v1819
    %v1824 = vpack.c.bf16 %v1822, %v1821
    %1825 = vmatprep.subr.bf16.mxu0 0
    %1826 = vmatpush1.bf16.msra.mxu0 0
    %1827 = vmatprep.subr.bf16.mxu0 0
    %1828 = vmatpush1.bf16.msra.mxu0 0
    %1829 = vmatprep.subr.bf16.mxu0 0
    %1830 = vmatpush1.bf16.msra.mxu0 0
    %1831 = vmatprep.subr.bf16.mxu0 0
    %1832 = vmatpush1.bf16.msra.mxu0 0
    %1833 = vmatprep.subr.bf16.mxu0 0
    %1834 = vmatpush1.bf16.msra.mxu0 0
    %1835 = vmatprep.subr.bf16.mxu0 0
    %1836 = vmatpush1.bf16.msra.mxu0 0
    %1837 = vmatprep.subr.bf16.mxu0 0
    %1838 = vmatpush1.bf16.msra.mxu0 0
    %1839 = vmatprep.subr.bf16.mxu0 0
    %1840 = vmatpush1.bf16.msra.mxu0 %v1823
    %1841 = vmatprep.subr.bf16.mxu0 0
    %1842 = vmatpush2.bf16.msra.mxu0 0
    %1843 = vmatprep.subr.bf16.mxu0 0
    %1844 = vmatpush2.bf16.msra.mxu0 0
    %1845 = vmatprep.subr.bf16.mxu0 0
    %1846 = vmatpush2.bf16.msra.mxu0 0
    %1847 = vmatprep.subr.bf16.mxu0 0
    %1848 = vmatpush2.bf16.msra.mxu0 0
    %1849 = vmatprep.subr.bf16.mxu0 0
    %1850 = vmatpush2.bf16.msra.mxu0 0
    %1851 = vmatprep.subr.bf16.mxu0 0
    %1852 = vmatpush2.bf16.msra.mxu0 0
    %1853 = vmatprep.subr.bf16.mxu0 0
    %1854 = vmatpush2.bf16.msra.mxu0 0
    %1855 = vmatprep.subr.bf16.mxu0 0
    %1856 = vmatpush2.bf16.msra.mxu0 0
    %1857 = vmatprep.mubr.bf16.mxu0 0
    %1858 = vmatmul.mubr.bf16.gmra.mxu0 %v67
    %v1859 = vpop.f32.mrf.mxu0
    %v1860 = vadd.f32 0.0, %v1859
    %v1861 = vpop.f32.mrf.mxu0
    %v1862 = vpop.f32.mrf.mxu0
    %v1863 = vadd.f32 0.0, %v1862
    %v1864 = vpop.f32.mrf.mxu0
    %1865 = vdwg.mxu0
    %1866 = vmatprep.subr.bf16.mxu0 0
    %1867 = vmatpush1.bf16.msra.mxu0 0
    %1868 = vmatprep.subr.bf16.mxu0 0
    %1869 = vmatpush1.bf16.msra.mxu0 0
    %1870 = vmatprep.subr.bf16.mxu0 0
    %1871 = vmatpush1.bf16.msra.mxu0 0
    %1872 = vmatprep.subr.bf16.mxu0 0
    %1873 = vmatpush1.bf16.msra.mxu0 0
    %1874 = vmatprep.subr.bf16.mxu0 0
    %1875 = vmatpush1.bf16.msra.mxu0 0
    %1876 = vmatprep.subr.bf16.mxu0 0
    %1877 = vmatpush1.bf16.msra.mxu0 0
    %1878 = vmatprep.subr.bf16.mxu0 0
    %1879 = vmatpush1.bf16.msra.mxu0 0
    %1880 = vmatprep.subr.bf16.mxu0 0
    %1881 = vmatpush1.bf16.msra.mxu0 %v1824
    %1882 = vmatprep.subr.bf16.mxu0 0
    %1883 = vmatpush2.bf16.msra.mxu0 0
    %1884 = vmatprep.subr.bf16.mxu0 0
    %1885 = vmatpush2.bf16.msra.mxu0 0
    %1886 = vmatprep.subr.bf16.mxu0 0
    %1887 = vmatpush2.bf16.msra.mxu0 0
    %1888 = vmatprep.subr.bf16.mxu0 0
    %1889 = vmatpush2.bf16.msra.mxu0 0
    %1890 = vmatprep.subr.bf16.mxu0 0
    %1891 = vmatpush2.bf16.msra.mxu0 0
    %1892 = vmatprep.subr.bf16.mxu0 0
    %1893 = vmatpush2.bf16.msra.mxu0 0
    %1894 = vmatprep.subr.bf16.mxu0 0
    %1895 = vmatpush2.bf16.msra.mxu0 0
    %1896 = vmatprep.subr.bf16.mxu0 0
    %1897 = vmatpush2.bf16.msra.mxu0 0
    %1898 = vmatprep.mubr.bf16.mxu0 0
    %1899 = vmatmul.mubr.bf16.gmra.mxu0 %v67
    %v1900 = vpop.f32.mrf.mxu0
    %v1901 = vadd.f32 0.0, %v1900
    %v1902 = vpop.f32.mrf.mxu0
    %v1903 = vpop.f32.mrf.mxu0
    %v1904 = vadd.f32 0.0, %v1903
    %v1905 = vpop.f32.mrf.mxu0
    %1906 = vdwg.mxu0
    %1907 = vmatprep.subr.bf16.mxu0 0
    %1908 = vmatpush1.bf16.msra.mxu0 0
    %1909 = vmatprep.subr.bf16.mxu0 0
    %1910 = vmatpush1.bf16.msra.mxu0 0
    %1911 = vmatprep.subr.bf16.mxu0 0
    %1912 = vmatpush1.bf16.msra.mxu0 0
    %1913 = vmatprep.subr.bf16.mxu0 0
    %1914 = vmatpush1.bf16.msra.mxu0 0
    %1915 = vmatprep.subr.bf16.mxu0 0
    %1916 = vmatpush1.bf16.msra.mxu0 0
    %1917 = vmatprep.subr.bf16.mxu0 0
    %1918 = vmatpush1.bf16.msra.mxu0 0
    %1919 = vmatprep.subr.bf16.mxu0 0
    %1920 = vmatpush1.bf16.msra.mxu0 0
    %1921 = vmatprep.subr.bf16.mxu0 0
    %1922 = vmatpush1.bf16.msra.mxu0 %v1823
    %1923 = vmatprep.subr.bf16.mxu0 0
    %1924 = vmatpush2.bf16.msra.mxu0 0
    %1925 = vmatprep.subr.bf16.mxu0 0
    %1926 = vmatpush2.bf16.msra.mxu0 0
    %1927 = vmatprep.subr.bf16.mxu0 0
    %1928 = vmatpush2.bf16.msra.mxu0 0
    %1929 = vmatprep.subr.bf16.mxu0 0
    %1930 = vmatpush2.bf16.msra.mxu0 0
    %1931 = vmatprep.subr.bf16.mxu0 0
    %1932 = vmatpush2.bf16.msra.mxu0 0
    %1933 = vmatprep.subr.bf16.mxu0 0
    %1934 = vmatpush2.bf16.msra.mxu0 0
    %1935 = vmatprep.subr.bf16.mxu0 0
    %1936 = vmatpush2.bf16.msra.mxu0 0
    %1937 = vmatprep.subr.bf16.mxu0 0
    %1938 = vmatpush2.bf16.msra.mxu0 0
    %1939 = vmatprep.mubr.bf16.mxu0 0
    %1940 = vmatmul.mubr.bf16.gmra.mxu0 %v157
    %v1941 = vpop.f32.mrf.mxu0
    %v1942 = vadd.f32 0.0, %v1941
    %v1943 = vpop.f32.mrf.mxu0
    %v1944 = vpop.f32.mrf.mxu0
    %v1945 = vadd.f32 0.0, %v1944
    %v1946 = vpop.f32.mrf.mxu0
    %1947 = vdwg.mxu0
    %1948 = vmatprep.subr.bf16.mxu0 0
    %1949 = vmatpush1.bf16.msra.mxu0 0
    %1950 = vmatprep.subr.bf16.mxu0 0
    %1951 = vmatpush1.bf16.msra.mxu0 0
    %1952 = vmatprep.subr.bf16.mxu0 0
    %1953 = vmatpush1.bf16.msra.mxu0 0
    %1954 = vmatprep.subr.bf16.mxu0 0
    %1955 = vmatpush1.bf16.msra.mxu0 0
    %1956 = vmatprep.subr.bf16.mxu0 0
    %1957 = vmatpush1.bf16.msra.mxu0 0
    %1958 = vmatprep.subr.bf16.mxu0 0
    %1959 = vmatpush1.bf16.msra.mxu0 0
    %1960 = vmatprep.subr.bf16.mxu0 0
    %1961 = vmatpush1.bf16.msra.mxu0 0
    %1962 = vmatprep.subr.bf16.mxu0 0
    %1963 = vmatpush1.bf16.msra.mxu0 %v1824
    %1964 = vmatprep.subr.bf16.mxu0 0
    %1965 = vmatpush2.bf16.msra.mxu0 0
    %1966 = vmatprep.subr.bf16.mxu0 0
    %1967 = vmatpush2.bf16.msra.mxu0 0
    %1968 = vmatprep.subr.bf16.mxu0 0
    %1969 = vmatpush2.bf16.msra.mxu0 0
    %1970 = vmatprep.subr.bf16.mxu0 0
    %1971 = vmatpush2.bf16.msra.mxu0 0
    %1972 = vmatprep.subr.bf16.mxu0 0
    %1973 = vmatpush2.bf16.msra.mxu0 0
    %1974 = vmatprep.subr.bf16.mxu0 0
    %1975 = vmatpush2.bf16.msra.mxu0 0
    %1976 = vmatprep.subr.bf16.mxu0 0
    %1977 = vmatpush2.bf16.msra.mxu0 0
    %1978 = vmatprep.subr.bf16.mxu0 0
    %1979 = vmatpush2.bf16.msra.mxu0 0
    %1980 = vmatprep.mubr.bf16.mxu0 0
    %1981 = vmatmul.mubr.bf16.gmra.mxu0 %v157
    %v1982 = vpop.f32.mrf.mxu0
    %v1983 = vadd.f32 0.0, %v1982
    %v1984 = vpop.f32.mrf.mxu0
    %v1985 = vpop.f32.mrf.mxu0
    %v1986 = vadd.f32 0.0, %v1985
    %v1987 = vpop.f32.mrf.mxu0
    %1988 = vdwg.mxu0
    %1993 = vrot.lane.b32.xlu0 %v1819, 32
    %v1994 = vpop.permute.xlu0 %1993
    %1995 = vrot.lane.b32.xlu0 %v1820, 32
    %v1996 = vpop.permute.xlu0 %1995
    %1997 = vrot.lane.b32.xlu0 %v1821, 32
    %v1998 = vpop.permute.xlu0 %1997
    %1999 = vrot.lane.b32.xlu0 %v1822, 32
    %v2000 = vpop.permute.xlu0 %1999
    %2005 = vrot.lane.b32.xlu0 %v1819, 64
    %v2006 = vpop.permute.xlu0 %2005
    %2007 = vrot.lane.b32.xlu0 %v1820, 64
    %v2008 = vpop.permute.xlu0 %2007
    %2009 = vrot.lane.b32.xlu0 %v1821, 64
    %v2010 = vpop.permute.xlu0 %2009
    %2011 = vrot.lane.b32.xlu0 %v1822, 64
    %v2012 = vpop.permute.xlu0 %2011
    %2017 = vrot.lane.b32.xlu0 %v1819, 96
    %v2018 = vpop.permute.xlu0 %2017
    %2019 = vrot.lane.b32.xlu0 %v1820, 96
    %v2020 = vpop.permute.xlu0 %2019
    %2021 = vrot.lane.b32.xlu0 %v1821, 96
    %v2022 = vpop.permute.xlu0 %2021
    %2023 = vrot.lane.b32.xlu0 %v1822, 96
    %v2024 = vpop.permute.xlu0 %2023
    %v2029 = vsel %vm509, %v1819, %v1994
    %v2030 = vsel %vm509, %v1820, %v1996
    %v2031 = vsel %vm509, %v1821, %v1998
    %v2032 = vsel %vm509, %v1822, %v2000
    %v2033 = vsel %vm823, %v2029, %v2006
    %v2034 = vsel %vm823, %v2030, %v2008
    %v2035 = vsel %vm823, %v2031, %v2010
    %v2036 = vsel %vm823, %v2032, %v2012
    %v2037 = vsel %vm828, %v2033, %v2018
    %v2038 = vsel %vm828, %v2034, %v2020
    %v2039 = vsel %vm828, %v2035, %v2022
    %v2040 = vsel %vm828, %v2036, %v2024
    %v2041 = vmul.f32 %v50, %v2037
    %v2042 = vmul.f32 %v51, %v2037
    %v2043 = vmul.f32 %v52, %v2038
    %v2044 = vmul.f32 %v53, %v2038
    %v2045 = vmul.f32 %v50, %v2039
    %v2046 = vmul.f32 %v51, %v2039
    %v2047 = vmul.f32 %v52, %v2040
    %v2048 = vmul.f32 %v53, %v2040
    %v2049 = vpack.c.bf16 %v2043, %v2041
    %v2050 = vpack.c.bf16 %v2044, %v2042
    %v2051 = vpack.c.bf16 %v2047, %v2045
    %v2052 = vpack.c.bf16 %v2048, %v2046
    %2057 = vrot.lane.b32.xlu0 %v1860, 32
    %v2058 = vpop.permute.xlu0 %2057
    %2059 = vrot.lane.b32.xlu0 %v1863, 32
    %v2060 = vpop.permute.xlu0 %2059
    %2061 = vrot.lane.b32.xlu0 %v1901, 32
    %v2062 = vpop.permute.xlu0 %2061
    %2063 = vrot.lane.b32.xlu0 %v1904, 32
    %v2064 = vpop.permute.xlu0 %2063
    %2069 = vrot.lane.b32.xlu0 %v1860, 64
    %v2070 = vpop.permute.xlu0 %2069
    %2071 = vrot.lane.b32.xlu0 %v1863, 64
    %v2072 = vpop.permute.xlu0 %2071
    %2073 = vrot.lane.b32.xlu0 %v1901, 64
    %v2074 = vpop.permute.xlu0 %2073
    %2075 = vrot.lane.b32.xlu0 %v1904, 64
    %v2076 = vpop.permute.xlu0 %2075
    %2081 = vrot.lane.b32.xlu0 %v1860, 96
    %v2082 = vpop.permute.xlu0 %2081
    %2083 = vrot.lane.b32.xlu0 %v1863, 96
    %v2084 = vpop.permute.xlu0 %2083
    %2085 = vrot.lane.b32.xlu0 %v1901, 96
    %v2086 = vpop.permute.xlu0 %2085
    %2087 = vrot.lane.b32.xlu0 %v1904, 96
    %v2088 = vpop.permute.xlu0 %2087
    %v2093 = vsel %vm509, %v1860, %v2058
    %v2094 = vsel %vm509, %v1863, %v2060
    %v2095 = vsel %vm509, %v1901, %v2062
    %v2096 = vsel %vm509, %v1904, %v2064
    %v2097 = vsel %vm823, %v2093, %v2070
    %v2098 = vsel %vm823, %v2094, %v2072
    %v2099 = vsel %vm823, %v2095, %v2074
    %v2100 = vsel %vm823, %v2096, %v2076
    %v2101 = vsel %vm828, %v2097, %v2082
    %v2102 = vsel %vm828, %v2098, %v2084
    %v2103 = vsel %vm828, %v2099, %v2086
    %v2104 = vsel %vm828, %v2100, %v2088
    %v2105 = vmul.f32 %v50, %v2101
    %v2106 = vmul.f32 %v51, %v2101
    %v2107 = vmul.f32 %v52, %v2102
    %v2108 = vmul.f32 %v53, %v2102
    %v2109 = vmul.f32 %v50, %v2103
    %v2110 = vmul.f32 %v51, %v2103
    %v2111 = vmul.f32 %v52, %v2104
    %v2112 = vmul.f32 %v53, %v2104
    %v2113 = vpack.c.bf16 %v2107, %v2105
    %v2114 = vpack.c.bf16 %v2108, %v2106
    %v2115 = vpack.c.bf16 %v2111, %v2109
    %v2116 = vpack.c.bf16 %v2112, %v2110
    %2121 = vrot.lane.b32.xlu0 %v1942, 32
    %v2122 = vpop.permute.xlu0 %2121
    %2123 = vrot.lane.b32.xlu0 %v1945, 32
    %v2124 = vpop.permute.xlu0 %2123
    %2125 = vrot.lane.b32.xlu0 %v1983, 32
    %v2126 = vpop.permute.xlu0 %2125
    %2127 = vrot.lane.b32.xlu0 %v1986, 32
    %v2128 = vpop.permute.xlu0 %2127
    %2133 = vrot.lane.b32.xlu0 %v1942, 64
    %v2134 = vpop.permute.xlu0 %2133
    %2135 = vrot.lane.b32.xlu0 %v1945, 64
    %v2136 = vpop.permute.xlu0 %2135
    %2137 = vrot.lane.b32.xlu0 %v1983, 64
    %v2138 = vpop.permute.xlu0 %2137
    %2139 = vrot.lane.b32.xlu0 %v1986, 64
    %v2140 = vpop.permute.xlu0 %2139
    %2145 = vrot.lane.b32.xlu0 %v1942, 96
    %v2146 = vpop.permute.xlu0 %2145
    %2147 = vrot.lane.b32.xlu0 %v1945, 96
    %v2148 = vpop.permute.xlu0 %2147
    %2149 = vrot.lane.b32.xlu0 %v1983, 96
    %v2150 = vpop.permute.xlu0 %2149
    %2151 = vrot.lane.b32.xlu0 %v1986, 96
    %v2152 = vpop.permute.xlu0 %2151
    %v2157 = vsel %vm509, %v1942, %v2122
    %v2158 = vsel %vm509, %v1945, %v2124
    %v2159 = vsel %vm509, %v1983, %v2126
    %v2160 = vsel %vm509, %v1986, %v2128
    %v2161 = vsel %vm823, %v2157, %v2134
    %v2162 = vsel %vm823, %v2158, %v2136
    %v2163 = vsel %vm823, %v2159, %v2138
    %v2164 = vsel %vm823, %v2160, %v2140
    %v2165 = vsel %vm828, %v2161, %v2146
    %v2166 = vsel %vm828, %v2162, %v2148
    %v2167 = vsel %vm828, %v2163, %v2150
    %v2168 = vsel %vm828, %v2164, %v2152
    %v2169 = vmul.f32 %v50, %v2165
    %v2170 = vmul.f32 %v51, %v2165
    %v2171 = vmul.f32 %v52, %v2166
    %v2172 = vmul.f32 %v53, %v2166
    %v2173 = vmul.f32 %v50, %v2167
    %v2174 = vmul.f32 %v51, %v2167
    %v2175 = vmul.f32 %v52, %v2168
    %v2176 = vmul.f32 %v53, %v2168
    %v2177 = vpack.c.bf16 %v2171, %v2169
    %v2178 = vpack.c.bf16 %v2172, %v2170
    %v2179 = vpack.c.bf16 %v2175, %v2173
    %v2180 = vpack.c.bf16 %v2176, %v2174
    %v2181 = vld [vmem:[%s10] sm:$0xff]
    %v2182 = vld [vmem:[%s10 + $0x8] sm:$0xff]
    %v2183 = vld [vmem:[%s8] sm:$0xf]
    %v2184 = vld [vmem:[%s8 + $0x4] sm:$0xf]
    %v2185 = vld [vmem:[%s8 + $0x8] sm:$0xf]
    %v2186 = vld [vmem:[%s8 + $0xc] sm:$0xf]
    %v2187 = vld [vmem:[%s8 + $0x10] sm:$0xf]
    %v2188 = vld [vmem:[%s8 + $0x14] sm:$0xf]
    %v2189 = vld [vmem:[%s8 + $0x18] sm:$0xf]
    %v2190 = vld [vmem:[%s8 + $0x1c] sm:$0xf]
    %v2199 = vunpack.c.l.b16 %v2183
    %v2200 = vunpack.c.l.b16 %v2184
    %v2201 = vunpack.c.l.b16 %v2185
    %v2202 = vunpack.c.l.b16 %v2186
    %v2203 = vunpack.c.l.b16 %v2187
    %v2204 = vunpack.c.l.b16 %v2188
    %v2205 = vunpack.c.l.b16 %v2189
    %v2206 = vunpack.c.l.b16 %v2190
    %v2207 = vpack.c.b16 %v2200, %v2199
    %v2208 = vpack.c.b16 %v2202, %v2201
    %v2209 = vpack.c.b16 %v2204, %v2203
    %v2210 = vpack.c.b16 %v2206, %v2205
    %2215 = vmatprep.subr.bf16.mxu0 0
    %2216 = vmatpush1.bf16.msra.mxu0 0
    %2217 = vmatprep.subr.bf16.mxu0 0
    %2218 = vmatpush1.bf16.msra.mxu0 0
    %2219 = vmatprep.subr.bf16.mxu0 0
    %2220 = vmatpush1.bf16.msra.mxu0 0
    %2221 = vmatprep.subr.bf16.mxu0 0
    %2222 = vmatpush1.bf16.msra.mxu0 0
    %2223 = vmatprep.subr.bf16.mxu0 0
    %2224 = vmatpush1.bf16.msra.mxu0 %v2210
    %2225 = vmatprep.subr.bf16.mxu0 0
    %2226 = vmatpush1.bf16.msra.mxu0 %v2209
    %2227 = vmatprep.subr.bf16.mxu0 0
    %2228 = vmatpush1.bf16.msra.mxu0 %v2208
    %2229 = vmatprep.subr.bf16.mxu0 0
    %2230 = vmatpush1.bf16.msra.mxu0 %v2207
    %2231 = vmatprep.subr.bf16.mxu0 0
    %2232 = vmatpush2.bf16.msra.mxu0 0
    %2233 = vmatprep.subr.bf16.mxu0 0
    %2234 = vmatpush2.bf16.msra.mxu0 0
    %2235 = vmatprep.subr.bf16.mxu0 0
    %2236 = vmatpush2.bf16.msra.mxu0 0
    %2237 = vmatprep.subr.bf16.mxu0 0
    %2238 = vmatpush2.bf16.msra.mxu0 0
    %2239 = vmatprep.subr.bf16.mxu0 0
    %2240 = vmatpush2.bf16.msra.mxu0 0
    %2241 = vmatprep.subr.bf16.mxu0 0
    %2242 = vmatpush2.bf16.msra.mxu0 0
    %2243 = vmatprep.subr.bf16.mxu0 0
    %2244 = vmatpush2.bf16.msra.mxu0 0
    %2245 = vmatprep.subr.bf16.mxu0 0
    %2246 = vmatpush2.bf16.msra.mxu0 0
    %2247 = vmatprep.mubr.bf16.mxu0 0
    %2248 = vmatmul.mubr.bf16.gmra.mxu0 %v1008
    %v2249 = vpop.f32.mrf.mxu0
    %v2250 = vadd.f32 0.0, %v2249
    %v2251 = vpop.f32.mrf.mxu0
    %v2252 = vpop.f32.mrf.mxu0
    %v2253 = vadd.f32 0.0, %v2252
    %v2254 = vpop.f32.mrf.mxu0
    %2255 = vmatprep.mubr.bf16.mxu0 0
    %2256 = vmatmul.mubr.bf16.gmra.mxu0 %v1011
    %v2257 = vpop.f32.mrf.mxu0
    %v2258 = vadd.f32 0.0, %v2257
    %v2259 = vpop.f32.mrf.mxu0
    %v2260 = vpop.f32.mrf.mxu0
    %v2261 = vadd.f32 0.0, %v2260
    %v2262 = vpop.f32.mrf.mxu0
    %2263 = vdwg.mxu0
    %v2264 = vadd.f32 %v2181, %v2250
    %v2265 = vadd.f32 %v2182, %v2253
    %v2266 = vadd.f32 %v2181, %v2258
    %v2267 = vadd.f32 %v2182, %v2261
    %v2268 = vld [vmem:[%s9] sm:$0xf]
    %v2269 = vld [vmem:[%s9 + $0x4] sm:$0xf]
    %v2270 = vld [vmem:[%s9 + $0x8] sm:$0xf]
    %v2271 = vld [vmem:[%s9 + $0xc] sm:$0xf]
    %v2272 = vld [vmem:[%s9 + $0x10] sm:$0xf]
    %v2273 = vld [vmem:[%s9 + $0x14] sm:$0xf]
    %v2274 = vld [vmem:[%s9 + $0x18] sm:$0xf]
    %v2275 = vld [vmem:[%s9 + $0x1c] sm:$0xf]
    %v2276 = vld [vmem:[%s9 + $0x20] sm:$0xf]
    %v2277 = vld [vmem:[%s9 + $0x24] sm:$0xf]
    %v2278 = vld [vmem:[%s9 + $0x28] sm:$0xf]
    %v2279 = vld [vmem:[%s9 + $0x2c] sm:$0xf]
    %v2280 = vld [vmem:[%s9 + $0x30] sm:$0xf]
    %v2281 = vld [vmem:[%s9 + $0x34] sm:$0xf]
    %v2282 = vld [vmem:[%s9 + $0x38] sm:$0xf]
    %v2283 = vld [vmem:[%s9 + $0x3c] sm:$0xf]
    %v2284 = vld [vmem:[%s9 + $0x40] sm:$0xf]
    %v2285 = vld [vmem:[%s9 + $0x44] sm:$0xf]
    %v2286 = vld [vmem:[%s9 + $0x48] sm:$0xf]
    %v2287 = vld [vmem:[%s9 + $0x4c] sm:$0xf]
    %v2288 = vld [vmem:[%s9 + $0x50] sm:$0xf]
    %v2289 = vld [vmem:[%s9 + $0x54] sm:$0xf]
    %v2290 = vld [vmem:[%s9 + $0x58] sm:$0xf]
    %v2291 = vld [vmem:[%s9 + $0x5c] sm:$0xf]
    %v2292 = vld [vmem:[%s9 + $0x60] sm:$0xf]
    %v2293 = vld [vmem:[%s9 + $0x64] sm:$0xf]
    %v2294 = vld [vmem:[%s9 + $0x68] sm:$0xf]
    %v2295 = vld [vmem:[%s9 + $0x6c] sm:$0xf]
    %v2296 = vld [vmem:[%s9 + $0x70] sm:$0xf]
    %v2297 = vld [vmem:[%s9 + $0x74] sm:$0xf]
    %v2298 = vld [vmem:[%s9 + $0x78] sm:$0xf]
    %v2299 = vld [vmem:[%s9 + $0x7c] sm:$0xf]
    %v2332 = vunpack.c.l.b16 %v2268
    %v2333 = vunpack.c.l.b16 %v2269
    %v2334 = vunpack.c.l.b16 %v2270
    %v2335 = vunpack.c.l.b16 %v2271
    %v2336 = vunpack.c.l.b16 %v2272
    %v2337 = vunpack.c.l.b16 %v2273
    %v2338 = vunpack.c.l.b16 %v2274
    %v2339 = vunpack.c.l.b16 %v2275
    %v2340 = vunpack.c.l.b16 %v2276
    %v2341 = vunpack.c.l.b16 %v2277
    %v2342 = vunpack.c.l.b16 %v2278
    %v2343 = vunpack.c.l.b16 %v2279
    %v2344 = vunpack.c.l.b16 %v2280
    %v2345 = vunpack.c.l.b16 %v2281
    %v2346 = vunpack.c.l.b16 %v2282
    %v2347 = vunpack.c.l.b16 %v2283
    %v2348 = vunpack.c.l.b16 %v2284
    %v2349 = vunpack.c.l.b16 %v2285
    %v2350 = vunpack.c.l.b16 %v2286
    %v2351 = vunpack.c.l.b16 %v2287
    %v2352 = vunpack.c.l.b16 %v2288
    %v2353 = vunpack.c.l.b16 %v2289
    %v2354 = vunpack.c.l.b16 %v2290
    %v2355 = vunpack.c.l.b16 %v2291
    %v2356 = vunpack.c.l.b16 %v2292
    %v2357 = vunpack.c.l.b16 %v2293
    %v2358 = vunpack.c.l.b16 %v2294
    %v2359 = vunpack.c.l.b16 %v2295
    %v2360 = vunpack.c.l.b16 %v2296
    %v2361 = vunpack.c.l.b16 %v2297
    %v2362 = vunpack.c.l.b16 %v2298
    %v2363 = vunpack.c.l.b16 %v2299
    %v2364 = vpack.c.b16 %v2333, %v2332
    %v2365 = vpack.c.b16 %v2335, %v2334
    %v2366 = vpack.c.b16 %v2337, %v2336
    %v2367 = vpack.c.b16 %v2339, %v2338
    %v2368 = vpack.c.b16 %v2341, %v2340
    %v2369 = vpack.c.b16 %v2343, %v2342
    %v2370 = vpack.c.b16 %v2345, %v2344
    %v2371 = vpack.c.b16 %v2347, %v2346
    %v2372 = vpack.c.b16 %v2349, %v2348
    %v2373 = vpack.c.b16 %v2351, %v2350
    %v2374 = vpack.c.b16 %v2353, %v2352
    %v2375 = vpack.c.b16 %v2355, %v2354
    %v2376 = vpack.c.b16 %v2357, %v2356
    %v2377 = vpack.c.b16 %v2359, %v2358
    %v2378 = vpack.c.b16 %v2361, %v2360
    %v2379 = vpack.c.b16 %v2363, %v2362
    %2396 = vmatprep.subr.bf16.mxu0 0
    %2397 = vmatpush1.bf16.msra.mxu0 %v2371
    %2398 = vmatprep.subr.bf16.mxu0 0
    %2399 = vmatpush1.bf16.msra.mxu0 %v2370
    %2400 = vmatprep.subr.bf16.mxu0 0
    %2401 = vmatpush1.bf16.msra.mxu0 %v2369
    %2402 = vmatprep.subr.bf16.mxu0 0
    %2403 = vmatpush1.bf16.msra.mxu0 %v2368
    %2404 = vmatprep.subr.bf16.mxu0 0
    %2405 = vmatpush1.bf16.msra.mxu0 %v2367
    %2406 = vmatprep.subr.bf16.mxu0 0
    %2407 = vmatpush1.bf16.msra.mxu0 %v2366
    %2408 = vmatprep.subr.bf16.mxu0 0
    %2409 = vmatpush1.bf16.msra.mxu0 %v2365
    %2410 = vmatprep.subr.bf16.mxu0 0
    %2411 = vmatpush1.bf16.msra.mxu0 %v2364
    %2412 = vmatprep.subr.bf16.mxu0 0
    %2413 = vmatpush2.bf16.msra.mxu0 %v2379
    %2414 = vmatprep.subr.bf16.mxu0 0
    %2415 = vmatpush2.bf16.msra.mxu0 %v2378
    %2416 = vmatprep.subr.bf16.mxu0 0
    %2417 = vmatpush2.bf16.msra.mxu0 %v2377
    %2418 = vmatprep.subr.bf16.mxu0 0
    %2419 = vmatpush2.bf16.msra.mxu0 %v2376
    %2420 = vmatprep.subr.bf16.mxu0 0
    %2421 = vmatpush2.bf16.msra.mxu0 %v2375
    %2422 = vmatprep.subr.bf16.mxu0 0
    %2423 = vmatpush2.bf16.msra.mxu0 %v2374
    %2424 = vmatprep.subr.bf16.mxu0 0
    %2425 = vmatpush2.bf16.msra.mxu0 %v2373
    %2426 = vmatprep.subr.bf16.mxu0 0
    %2427 = vmatpush2.bf16.msra.mxu0 %v2372
    %2428 = vmatprep.mubr.bf16.mxu0 %v2050
    %2429 = vmatmul.mubr.bf16.gmra.mxu0 %v2049
    %v2430 = vpop.f32.mrf.mxu0
    %v2431 = vadd.f32 0.0, %v2430
    %v2432 = vpop.f32.mrf.mxu0
    %v2433 = vpop.f32.mrf.mxu0
    %v2434 = vadd.f32 0.0, %v2433
    %v2435 = vpop.f32.mrf.mxu0
    %2436 = vmatprep.mubr.bf16.mxu0 %v2052
    %2437 = vmatmul.mubr.bf16.gmra.mxu0 %v2051
    %v2438 = vpop.f32.mrf.mxu0
    %v2439 = vadd.f32 0.0, %v2438
    %v2440 = vpop.f32.mrf.mxu0
    %v2441 = vpop.f32.mrf.mxu0
    %v2442 = vadd.f32 0.0, %v2441
    %v2443 = vpop.f32.mrf.mxu0
    %2444 = vdwg.mxu0
    %v2445 = vadd.f32 %v2264, %v2431
    %v2446 = vadd.f32 %v2265, %v2434
    %v2447 = vadd.f32 %v2266, %v2439
    %v2448 = vadd.f32 %v2267, %v2442
    %s2449 = scalar_lea.vmem %s8, 32
    %v2450 = vld [vmem:[%s2449] sm:$0xf]
    %v2451 = vld [vmem:[%s2449 + $0x4] sm:$0xf]
    %v2452 = vld [vmem:[%s2449 + $0x8] sm:$0xf]
    %v2453 = vld [vmem:[%s2449 + $0xc] sm:$0xf]
    %v2454 = vld [vmem:[%s2449 + $0x10] sm:$0xf]
    %v2455 = vld [vmem:[%s2449 + $0x14] sm:$0xf]
    %v2456 = vld [vmem:[%s2449 + $0x18] sm:$0xf]
    %v2457 = vld [vmem:[%s2449 + $0x1c] sm:$0xf]
    %v2466 = vunpack.c.l.b16 %v2450
    %v2467 = vunpack.c.l.b16 %v2451
    %v2468 = vunpack.c.l.b16 %v2452
    %v2469 = vunpack.c.l.b16 %v2453
    %v2470 = vunpack.c.l.b16 %v2454
    %v2471 = vunpack.c.l.b16 %v2455
    %v2472 = vunpack.c.l.b16 %v2456
    %v2473 = vunpack.c.l.b16 %v2457
    %v2474 = vpack.c.b16 %v2467, %v2466
    %v2475 = vpack.c.b16 %v2469, %v2468
    %v2476 = vpack.c.b16 %v2471, %v2470
    %v2477 = vpack.c.b16 %v2473, %v2472
    %2482 = vmatprep.subr.bf16.mxu0 0
    %2483 = vmatpush1.bf16.msra.mxu0 0
    %2484 = vmatprep.subr.bf16.mxu0 0
    %2485 = vmatpush1.bf16.msra.mxu0 0
    %2486 = vmatprep.subr.bf16.mxu0 0
    %2487 = vmatpush1.bf16.msra.mxu0 0
    %2488 = vmatprep.subr.bf16.mxu0 0
    %2489 = vmatpush1.bf16.msra.mxu0 0
    %2490 = vmatprep.subr.bf16.mxu0 0
    %2491 = vmatpush1.bf16.msra.mxu0 %v2477
    %2492 = vmatprep.subr.bf16.mxu0 0
    %2493 = vmatpush1.bf16.msra.mxu0 %v2476
    %2494 = vmatprep.subr.bf16.mxu0 0
    %2495 = vmatpush1.bf16.msra.mxu0 %v2475
    %2496 = vmatprep.subr.bf16.mxu0 0
    %2497 = vmatpush1.bf16.msra.mxu0 %v2474
    %2498 = vmatprep.subr.bf16.mxu0 0
    %2499 = vmatpush2.bf16.msra.mxu0 0
    %2500 = vmatprep.subr.bf16.mxu0 0
    %2501 = vmatpush2.bf16.msra.mxu0 0
    %2502 = vmatprep.subr.bf16.mxu0 0
    %2503 = vmatpush2.bf16.msra.mxu0 0
    %2504 = vmatprep.subr.bf16.mxu0 0
    %2505 = vmatpush2.bf16.msra.mxu0 0
    %2506 = vmatprep.subr.bf16.mxu0 0
    %2507 = vmatpush2.bf16.msra.mxu0 0
    %2508 = vmatprep.subr.bf16.mxu0 0
    %2509 = vmatpush2.bf16.msra.mxu0 0
    %2510 = vmatprep.subr.bf16.mxu0 0
    %2511 = vmatpush2.bf16.msra.mxu0 0
    %2512 = vmatprep.subr.bf16.mxu0 0
    %2513 = vmatpush2.bf16.msra.mxu0 0
    %2514 = vmatprep.mubr.bf16.mxu0 0
    %2515 = vmatmul.mubr.bf16.gmra.mxu0 %v1281
    %v2516 = vpop.f32.mrf.mxu0
    %v2517 = vadd.f32 0.0, %v2516
    %v2518 = vpop.f32.mrf.mxu0
    %v2519 = vpop.f32.mrf.mxu0
    %v2520 = vadd.f32 0.0, %v2519
    %v2521 = vpop.f32.mrf.mxu0
    %2522 = vmatprep.mubr.bf16.mxu0 0
    %2523 = vmatmul.mubr.bf16.gmra.mxu0 %v1284
    %v2524 = vpop.f32.mrf.mxu0
    %v2525 = vadd.f32 0.0, %v2524
    %v2526 = vpop.f32.mrf.mxu0
    %v2527 = vpop.f32.mrf.mxu0
    %v2528 = vadd.f32 0.0, %v2527
    %v2529 = vpop.f32.mrf.mxu0
    %2530 = vdwg.mxu0
    %v2531 = vadd.f32 %v2445, %v2517
    %v2532 = vadd.f32 %v2446, %v2520
    %v2533 = vadd.f32 %v2447, %v2525
    %v2534 = vadd.f32 %v2448, %v2528
    %s2535 = scalar_lea.vmem %s9, 128
    %v2536 = vld [vmem:[%s2535] sm:$0xf]
    %v2537 = vld [vmem:[%s2535 + $0x4] sm:$0xf]
    %v2538 = vld [vmem:[%s2535 + $0x8] sm:$0xf]
    %v2539 = vld [vmem:[%s2535 + $0xc] sm:$0xf]
    %v2540 = vld [vmem:[%s2535 + $0x10] sm:$0xf]
    %v2541 = vld [vmem:[%s2535 + $0x14] sm:$0xf]
    %v2542 = vld [vmem:[%s2535 + $0x18] sm:$0xf]
    %v2543 = vld [vmem:[%s2535 + $0x1c] sm:$0xf]
    %v2544 = vld [vmem:[%s2535 + $0x20] sm:$0xf]
    %v2545 = vld [vmem:[%s2535 + $0x24] sm:$0xf]
    %v2546 = vld [vmem:[%s2535 + $0x28] sm:$0xf]
    %v2547 = vld [vmem:[%s2535 + $0x2c] sm:$0xf]
    %v2548 = vld [vmem:[%s2535 + $0x30] sm:$0xf]
    %v2549 = vld [vmem:[%s2535 + $0x34] sm:$0xf]
    %v2550 = vld [vmem:[%s2535 + $0x38] sm:$0xf]
    %v2551 = vld [vmem:[%s2535 + $0x3c] sm:$0xf]
    %v2552 = vld [vmem:[%s2535 + $0x40] sm:$0xf]
    %v2553 = vld [vmem:[%s2535 + $0x44] sm:$0xf]
    %v2554 = vld [vmem:[%s2535 + $0x48] sm:$0xf]
    %v2555 = vld [vmem:[%s2535 + $0x4c] sm:$0xf]
    %v2556 = vld [vmem:[%s2535 + $0x50] sm:$0xf]
    %v2557 = vld [vmem:[%s2535 + $0x54] sm:$0xf]
    %v2558 = vld [vmem:[%s2535 + $0x58] sm:$0xf]
    %v2559 = vld [vmem:[%s2535 + $0x5c] sm:$0xf]
    %v2560 = vld [vmem:[%s2535 + $0x60] sm:$0xf]
    %v2561 = vld [vmem:[%s2535 + $0x64] sm:$0xf]
    %v2562 = vld [vmem:[%s2535 + $0x68] sm:$0xf]
    %v2563 = vld [vmem:[%s2535 + $0x6c] sm:$0xf]
    %v2564 = vld [vmem:[%s2535 + $0x70] sm:$0xf]
    %v2565 = vld [vmem:[%s2535 + $0x74] sm:$0xf]
    %v2566 = vld [vmem:[%s2535 + $0x78] sm:$0xf]
    %v2567 = vld [vmem:[%s2535 + $0x7c] sm:$0xf]
    %v2600 = vunpack.c.l.b16 %v2536
    %v2601 = vunpack.c.l.b16 %v2537
    %v2602 = vunpack.c.l.b16 %v2538
    %v2603 = vunpack.c.l.b16 %v2539
    %v2604 = vunpack.c.l.b16 %v2540
    %v2605 = vunpack.c.l.b16 %v2541
    %v2606 = vunpack.c.l.b16 %v2542
    %v2607 = vunpack.c.l.b16 %v2543
    %v2608 = vunpack.c.l.b16 %v2544
    %v2609 = vunpack.c.l.b16 %v2545
    %v2610 = vunpack.c.l.b16 %v2546
    %v2611 = vunpack.c.l.b16 %v2547
    %v2612 = vunpack.c.l.b16 %v2548
    %v2613 = vunpack.c.l.b16 %v2549
    %v2614 = vunpack.c.l.b16 %v2550
    %v2615 = vunpack.c.l.b16 %v2551
    %v2616 = vunpack.c.l.b16 %v2552
    %v2617 = vunpack.c.l.b16 %v2553
    %v2618 = vunpack.c.l.b16 %v2554
    %v2619 = vunpack.c.l.b16 %v2555
    %v2620 = vunpack.c.l.b16 %v2556
    %v2621 = vunpack.c.l.b16 %v2557
    %v2622 = vunpack.c.l.b16 %v2558
    %v2623 = vunpack.c.l.b16 %v2559
    %v2624 = vunpack.c.l.b16 %v2560
    %v2625 = vunpack.c.l.b16 %v2561
    %v2626 = vunpack.c.l.b16 %v2562
    %v2627 = vunpack.c.l.b16 %v2563
    %v2628 = vunpack.c.l.b16 %v2564
    %v2629 = vunpack.c.l.b16 %v2565
    %v2630 = vunpack.c.l.b16 %v2566
    %v2631 = vunpack.c.l.b16 %v2567
    %v2632 = vpack.c.b16 %v2601, %v2600
    %v2633 = vpack.c.b16 %v2603, %v2602
    %v2634 = vpack.c.b16 %v2605, %v2604
    %v2635 = vpack.c.b16 %v2607, %v2606
    %v2636 = vpack.c.b16 %v2609, %v2608
    %v2637 = vpack.c.b16 %v2611, %v2610
    %v2638 = vpack.c.b16 %v2613, %v2612
    %v2639 = vpack.c.b16 %v2615, %v2614
    %v2640 = vpack.c.b16 %v2617, %v2616
    %v2641 = vpack.c.b16 %v2619, %v2618
    %v2642 = vpack.c.b16 %v2621, %v2620
    %v2643 = vpack.c.b16 %v2623, %v2622
    %v2644 = vpack.c.b16 %v2625, %v2624
    %v2645 = vpack.c.b16 %v2627, %v2626
    %v2646 = vpack.c.b16 %v2629, %v2628
    %v2647 = vpack.c.b16 %v2631, %v2630
    %2664 = vmatprep.subr.bf16.mxu0 0
    %2665 = vmatpush1.bf16.msra.mxu0 %v2639
    %2666 = vmatprep.subr.bf16.mxu0 0
    %2667 = vmatpush1.bf16.msra.mxu0 %v2638
    %2668 = vmatprep.subr.bf16.mxu0 0
    %2669 = vmatpush1.bf16.msra.mxu0 %v2637
    %2670 = vmatprep.subr.bf16.mxu0 0
    %2671 = vmatpush1.bf16.msra.mxu0 %v2636
    %2672 = vmatprep.subr.bf16.mxu0 0
    %2673 = vmatpush1.bf16.msra.mxu0 %v2635
    %2674 = vmatprep.subr.bf16.mxu0 0
    %2675 = vmatpush1.bf16.msra.mxu0 %v2634
    %2676 = vmatprep.subr.bf16.mxu0 0
    %2677 = vmatpush1.bf16.msra.mxu0 %v2633
    %2678 = vmatprep.subr.bf16.mxu0 0
    %2679 = vmatpush1.bf16.msra.mxu0 %v2632
    %2680 = vmatprep.subr.bf16.mxu0 0
    %2681 = vmatpush2.bf16.msra.mxu0 %v2647
    %2682 = vmatprep.subr.bf16.mxu0 0
    %2683 = vmatpush2.bf16.msra.mxu0 %v2646
    %2684 = vmatprep.subr.bf16.mxu0 0
    %2685 = vmatpush2.bf16.msra.mxu0 %v2645
    %2686 = vmatprep.subr.bf16.mxu0 0
    %2687 = vmatpush2.bf16.msra.mxu0 %v2644
    %2688 = vmatprep.subr.bf16.mxu0 0
    %2689 = vmatpush2.bf16.msra.mxu0 %v2643
    %2690 = vmatprep.subr.bf16.mxu0 0
    %2691 = vmatpush2.bf16.msra.mxu0 %v2642
    %2692 = vmatprep.subr.bf16.mxu0 0
    %2693 = vmatpush2.bf16.msra.mxu0 %v2641
    %2694 = vmatprep.subr.bf16.mxu0 0
    %2695 = vmatpush2.bf16.msra.mxu0 %v2640
    %2696 = vmatprep.mubr.bf16.mxu0 %v2114
    %2697 = vmatmul.mubr.bf16.gmra.mxu0 %v2113
    %v2698 = vpop.f32.mrf.mxu0
    %v2699 = vadd.f32 0.0, %v2698
    %v2700 = vpop.f32.mrf.mxu0
    %v2701 = vpop.f32.mrf.mxu0
    %v2702 = vadd.f32 0.0, %v2701
    %v2703 = vpop.f32.mrf.mxu0
    %2704 = vmatprep.mubr.bf16.mxu0 %v2116
    %2705 = vmatmul.mubr.bf16.gmra.mxu0 %v2115
    %v2706 = vpop.f32.mrf.mxu0
    %v2707 = vadd.f32 0.0, %v2706
    %v2708 = vpop.f32.mrf.mxu0
    %v2709 = vpop.f32.mrf.mxu0
    %v2710 = vadd.f32 0.0, %v2709
    %v2711 = vpop.f32.mrf.mxu0
    %2712 = vdwg.mxu0
    %v2713 = vadd.f32 %v2531, %v2699
    %v2714 = vadd.f32 %v2532, %v2702
    %v2715 = vadd.f32 %v2533, %v2707
    %v2716 = vadd.f32 %v2534, %v2710
    %s2717 = scalar_lea.vmem %s8, 64
    %v2718 = vld [vmem:[%s2717] sm:$0xf]
    %v2719 = vld [vmem:[%s2717 + $0x4] sm:$0xf]
    %v2720 = vld [vmem:[%s2717 + $0x8] sm:$0xf]
    %v2721 = vld [vmem:[%s2717 + $0xc] sm:$0xf]
    %v2722 = vld [vmem:[%s2717 + $0x10] sm:$0xf]
    %v2723 = vld [vmem:[%s2717 + $0x14] sm:$0xf]
    %v2724 = vld [vmem:[%s2717 + $0x18] sm:$0xf]
    %v2725 = vld [vmem:[%s2717 + $0x1c] sm:$0xf]
    %v2734 = vunpack.c.l.b16 %v2718
    %v2735 = vunpack.c.l.b16 %v2719
    %v2736 = vunpack.c.l.b16 %v2720
    %v2737 = vunpack.c.l.b16 %v2721
    %v2738 = vunpack.c.l.b16 %v2722
    %v2739 = vunpack.c.l.b16 %v2723
    %v2740 = vunpack.c.l.b16 %v2724
    %v2741 = vunpack.c.l.b16 %v2725
    %v2742 = vpack.c.b16 %v2735, %v2734
    %v2743 = vpack.c.b16 %v2737, %v2736
    %v2744 = vpack.c.b16 %v2739, %v2738
    %v2745 = vpack.c.b16 %v2741, %v2740
    %2750 = vmatprep.subr.bf16.mxu0 0
    %2751 = vmatpush1.bf16.msra.mxu0 0
    %2752 = vmatprep.subr.bf16.mxu0 0
    %2753 = vmatpush1.bf16.msra.mxu0 0
    %2754 = vmatprep.subr.bf16.mxu0 0
    %2755 = vmatpush1.bf16.msra.mxu0 0
    %2756 = vmatprep.subr.bf16.mxu0 0
    %2757 = vmatpush1.bf16.msra.mxu0 0
    %2758 = vmatprep.subr.bf16.mxu0 0
    %2759 = vmatpush1.bf16.msra.mxu0 %v2745
    %2760 = vmatprep.subr.bf16.mxu0 0
    %2761 = vmatpush1.bf16.msra.mxu0 %v2744
    %2762 = vmatprep.subr.bf16.mxu0 0
    %2763 = vmatpush1.bf16.msra.mxu0 %v2743
    %2764 = vmatprep.subr.bf16.mxu0 0
    %2765 = vmatpush1.bf16.msra.mxu0 %v2742
    %2766 = vmatprep.subr.bf16.mxu0 0
    %2767 = vmatpush2.bf16.msra.mxu0 0
    %2768 = vmatprep.subr.bf16.mxu0 0
    %2769 = vmatpush2.bf16.msra.mxu0 0
    %2770 = vmatprep.subr.bf16.mxu0 0
    %2771 = vmatpush2.bf16.msra.mxu0 0
    %2772 = vmatprep.subr.bf16.mxu0 0
    %2773 = vmatpush2.bf16.msra.mxu0 0
    %2774 = vmatprep.subr.bf16.mxu0 0
    %2775 = vmatpush2.bf16.msra.mxu0 0
    %2776 = vmatprep.subr.bf16.mxu0 0
    %2777 = vmatpush2.bf16.msra.mxu0 0
    %2778 = vmatprep.subr.bf16.mxu0 0
    %2779 = vmatpush2.bf16.msra.mxu0 0
    %2780 = vmatprep.subr.bf16.mxu0 0
    %2781 = vmatpush2.bf16.msra.mxu0 0
    %2782 = vmatprep.mubr.bf16.mxu0 0
    %2783 = vmatmul.mubr.bf16.gmra.mxu0 %v1555
    %v2784 = vpop.f32.mrf.mxu0
    %v2785 = vadd.f32 0.0, %v2784
    %v2786 = vpop.f32.mrf.mxu0
    %v2787 = vpop.f32.mrf.mxu0
    %v2788 = vadd.f32 0.0, %v2787
    %v2789 = vpop.f32.mrf.mxu0
    %2790 = vmatprep.mubr.bf16.mxu0 0
    %2791 = vmatmul.mubr.bf16.gmra.mxu0 %v1558
    %v2792 = vpop.f32.mrf.mxu0
    %v2793 = vadd.f32 0.0, %v2792
    %v2794 = vpop.f32.mrf.mxu0
    %v2795 = vpop.f32.mrf.mxu0
    %v2796 = vadd.f32 0.0, %v2795
    %v2797 = vpop.f32.mrf.mxu0
    %2798 = vdwg.mxu0
    %v2799 = vadd.f32 %v2713, %v2785
    %v2800 = vadd.f32 %v2714, %v2788
    %v2801 = vadd.f32 %v2715, %v2793
    %v2802 = vadd.f32 %v2716, %v2796
    %s2803 = scalar_lea.vmem %s9, 256
    %v2804 = vld [vmem:[%s2803] sm:$0xf]
    %v2805 = vld [vmem:[%s2803 + $0x4] sm:$0xf]
    %v2806 = vld [vmem:[%s2803 + $0x8] sm:$0xf]
    %v2807 = vld [vmem:[%s2803 + $0xc] sm:$0xf]
    %v2808 = vld [vmem:[%s2803 + $0x10] sm:$0xf]
    %v2809 = vld [vmem:[%s2803 + $0x14] sm:$0xf]
    %v2810 = vld [vmem:[%s2803 + $0x18] sm:$0xf]
    %v2811 = vld [vmem:[%s2803 + $0x1c] sm:$0xf]
    %v2812 = vld [vmem:[%s2803 + $0x20] sm:$0xf]
    %v2813 = vld [vmem:[%s2803 + $0x24] sm:$0xf]
    %v2814 = vld [vmem:[%s2803 + $0x28] sm:$0xf]
    %v2815 = vld [vmem:[%s2803 + $0x2c] sm:$0xf]
    %v2816 = vld [vmem:[%s2803 + $0x30] sm:$0xf]
    %v2817 = vld [vmem:[%s2803 + $0x34] sm:$0xf]
    %v2818 = vld [vmem:[%s2803 + $0x38] sm:$0xf]
    %v2819 = vld [vmem:[%s2803 + $0x3c] sm:$0xf]
    %v2820 = vld [vmem:[%s2803 + $0x40] sm:$0xf]
    %v2821 = vld [vmem:[%s2803 + $0x44] sm:$0xf]
    %v2822 = vld [vmem:[%s2803 + $0x48] sm:$0xf]
    %v2823 = vld [vmem:[%s2803 + $0x4c] sm:$0xf]
    %v2824 = vld [vmem:[%s2803 + $0x50] sm:$0xf]
    %v2825 = vld [vmem:[%s2803 + $0x54] sm:$0xf]
    %v2826 = vld [vmem:[%s2803 + $0x58] sm:$0xf]
    %v2827 = vld [vmem:[%s2803 + $0x5c] sm:$0xf]
    %v2828 = vld [vmem:[%s2803 + $0x60] sm:$0xf]
    %v2829 = vld [vmem:[%s2803 + $0x64] sm:$0xf]
    %v2830 = vld [vmem:[%s2803 + $0x68] sm:$0xf]
    %v2831 = vld [vmem:[%s2803 + $0x6c] sm:$0xf]
    %v2832 = vld [vmem:[%s2803 + $0x70] sm:$0xf]
    %v2833 = vld [vmem:[%s2803 + $0x74] sm:$0xf]
    %v2834 = vld [vmem:[%s2803 + $0x78] sm:$0xf]
    %v2835 = vld [vmem:[%s2803 + $0x7c] sm:$0xf]
    %v2868 = vunpack.c.l.b16 %v2804
    %v2869 = vunpack.c.l.b16 %v2805
    %v2870 = vunpack.c.l.b16 %v2806
    %v2871 = vunpack.c.l.b16 %v2807
    %v2872 = vunpack.c.l.b16 %v2808
    %v2873 = vunpack.c.l.b16 %v2809
    %v2874 = vunpack.c.l.b16 %v2810
    %v2875 = vunpack.c.l.b16 %v2811
    %v2876 = vunpack.c.l.b16 %v2812
    %v2877 = vunpack.c.l.b16 %v2813
    %v2878 = vunpack.c.l.b16 %v2814
    %v2879 = vunpack.c.l.b16 %v2815
    %v2880 = vunpack.c.l.b16 %v2816
    %v2881 = vunpack.c.l.b16 %v2817
    %v2882 = vunpack.c.l.b16 %v2818
    %v2883 = vunpack.c.l.b16 %v2819
    %v2884 = vunpack.c.l.b16 %v2820
    %v2885 = vunpack.c.l.b16 %v2821
    %v2886 = vunpack.c.l.b16 %v2822
    %v2887 = vunpack.c.l.b16 %v2823
    %v2888 = vunpack.c.l.b16 %v2824
    %v2889 = vunpack.c.l.b16 %v2825
    %v2890 = vunpack.c.l.b16 %v2826
    %v2891 = vunpack.c.l.b16 %v2827
    %v2892 = vunpack.c.l.b16 %v2828
    %v2893 = vunpack.c.l.b16 %v2829
    %v2894 = vunpack.c.l.b16 %v2830
    %v2895 = vunpack.c.l.b16 %v2831
    %v2896 = vunpack.c.l.b16 %v2832
    %v2897 = vunpack.c.l.b16 %v2833
    %v2898 = vunpack.c.l.b16 %v2834
    %v2899 = vunpack.c.l.b16 %v2835
    %v2900 = vpack.c.b16 %v2869, %v2868
    %v2901 = vpack.c.b16 %v2871, %v2870
    %v2902 = vpack.c.b16 %v2873, %v2872
    %v2903 = vpack.c.b16 %v2875, %v2874
    %v2904 = vpack.c.b16 %v2877, %v2876
    %v2905 = vpack.c.b16 %v2879, %v2878
    %v2906 = vpack.c.b16 %v2881, %v2880
    %v2907 = vpack.c.b16 %v2883, %v2882
    %v2908 = vpack.c.b16 %v2885, %v2884
    %v2909 = vpack.c.b16 %v2887, %v2886
    %v2910 = vpack.c.b16 %v2889, %v2888
    %v2911 = vpack.c.b16 %v2891, %v2890
    %v2912 = vpack.c.b16 %v2893, %v2892
    %v2913 = vpack.c.b16 %v2895, %v2894
    %v2914 = vpack.c.b16 %v2897, %v2896
    %v2915 = vpack.c.b16 %v2899, %v2898
    %2932 = vmatprep.subr.bf16.mxu0 0
    %2933 = vmatpush1.bf16.msra.mxu0 %v2907
    %2934 = vmatprep.subr.bf16.mxu0 0
    %2935 = vmatpush1.bf16.msra.mxu0 %v2906
    %2936 = vmatprep.subr.bf16.mxu0 0
    %2937 = vmatpush1.bf16.msra.mxu0 %v2905
    %2938 = vmatprep.subr.bf16.mxu0 0
    %2939 = vmatpush1.bf16.msra.mxu0 %v2904
    %2940 = vmatprep.subr.bf16.mxu0 0
    %2941 = vmatpush1.bf16.msra.mxu0 %v2903
    %2942 = vmatprep.subr.bf16.mxu0 0
    %2943 = vmatpush1.bf16.msra.mxu0 %v2902
    %2944 = vmatprep.subr.bf16.mxu0 0
    %2945 = vmatpush1.bf16.msra.mxu0 %v2901
    %2946 = vmatprep.subr.bf16.mxu0 0
    %2947 = vmatpush1.bf16.msra.mxu0 %v2900
    %2948 = vmatprep.subr.bf16.mxu0 0
    %2949 = vmatpush2.bf16.msra.mxu0 %v2915
    %2950 = vmatprep.subr.bf16.mxu0 0
    %2951 = vmatpush2.bf16.msra.mxu0 %v2914
    %2952 = vmatprep.subr.bf16.mxu0 0
    %2953 = vmatpush2.bf16.msra.mxu0 %v2913
    %2954 = vmatprep.subr.bf16.mxu0 0
    %2955 = vmatpush2.bf16.msra.mxu0 %v2912
    %2956 = vmatprep.subr.bf16.mxu0 0
    %2957 = vmatpush2.bf16.msra.mxu0 %v2911
    %2958 = vmatprep.subr.bf16.mxu0 0
    %2959 = vmatpush2.bf16.msra.mxu0 %v2910
    %2960 = vmatprep.subr.bf16.mxu0 0
    %2961 = vmatpush2.bf16.msra.mxu0 %v2909
    %2962 = vmatprep.subr.bf16.mxu0 0
    %2963 = vmatpush2.bf16.msra.mxu0 %v2908
    %2964 = vmatprep.mubr.bf16.mxu0 %v2178
    %2965 = vmatmul.mubr.bf16.gmra.mxu0 %v2177
    %v2966 = vpop.f32.mrf.mxu0
    %v2967 = vadd.f32 0.0, %v2966
    %v2968 = vpop.f32.mrf.mxu0
    %v2969 = vpop.f32.mrf.mxu0
    %v2970 = vadd.f32 0.0, %v2969
    %v2971 = vpop.f32.mrf.mxu0
    %2972 = vmatprep.mubr.bf16.mxu0 %v2180
    %2973 = vmatmul.mubr.bf16.gmra.mxu0 %v2179
    %v2974 = vpop.f32.mrf.mxu0
    %v2975 = vadd.f32 0.0, %v2974
    %v2976 = vpop.f32.mrf.mxu0
    %v2977 = vpop.f32.mrf.mxu0
    %v2978 = vadd.f32 0.0, %v2977
    %v2979 = vpop.f32.mrf.mxu0
    %2980 = vdwg.mxu0
    %v2981 = vadd.f32 %v2799, %v2967
    %v2982 = vadd.f32 %v2800, %v2970
    %v2983 = vadd.f32 %v2801, %v2975
    %v2984 = vadd.f32 %v2802, %v2978
    %v2985 = vtanh.pop %v2981
    %v2986 = vtanh.pop %v2982
    %v2987 = vtanh.pop %v2983
    %v2988 = vtanh.pop %v2984
    %v2989 = vmul.f32 %v1812, %v784
    %v2990 = vmul.f32 %v1814, %v786
    %v2991 = vmul.f32 %v1816, %v788
    %v2992 = vmul.f32 %v1818, %v790
    %v2993 = vsub.f32 1.0, %v1812
    %v2994 = vsub.f32 1.0, %v1814
    %v2995 = vsub.f32 1.0, %v1816
    %v2996 = vsub.f32 1.0, %v1818
    %3001 = vrot.lane.b32.xlu0 %v2985, 32
    %v3002 = vpop.permute.xlu0 %3001
    %3003 = vrot.lane.b32.xlu0 %v2986, 32
    %v3004 = vpop.permute.xlu0 %3003
    %3005 = vrot.lane.b32.xlu0 %v2987, 32
    %v3006 = vpop.permute.xlu0 %3005
    %3007 = vrot.lane.b32.xlu0 %v2988, 32
    %v3008 = vpop.permute.xlu0 %3007
    %v3013 = vmul.f32 %v2993, %v3002
    %v3014 = vmul.f32 %v2994, %v3004
    %v3015 = vmul.f32 %v2995, %v3006
    %v3016 = vmul.f32 %v2996, %v3008
    %v3017 = vadd.f32 %v2989, %v3013
    %v3018 = vadd.f32 %v2990, %v3014
    %v3019 = vadd.f32 %v2991, %v3015
    %v3020 = vadd.f32 %v2992, %v3016
    %3025 = vrot.lane.b32.xlu0 %v3017, 96
    %v3026 = vpop.permute.xlu0 %3025
    %3027 = vrot.lane.b32.xlu0 %v3018, 96
    %v3028 = vpop.permute.xlu0 %3027
    %3029 = vrot.lane.b32.xlu0 %v3019, 96
    %v3030 = vpop.permute.xlu0 %3029
    %3031 = vrot.lane.b32.xlu0 %v3020, 96
    %v3032 = vpop.permute.xlu0 %3031
    %3037 = vst.msk [vmem:[#allocation2] sm:$0xff] %vm509, %v3026
    %3038 = vst.msk [vmem:[#allocation2 + $0x8] sm:$0xff] %vm509, %v3028
    %3039 = vst.msk [vmem:[#allocation2 + $0x10] sm:$0xff] %vm509, %v3030
    %3040 = vst.msk [vmem:[#allocation2 + $0x18] sm:$0xff] %vm509, %v3032
    // Predicated region
    $region46: #{tpu_custom_call.1} parent=1 // pred_check
      _
    $region47: #{tpu_custom_call.1} parent=1 // pred_check_branch
      %3042 = sbr.rel (0) target = $region49
    $region48: #{tpu_custom_call.1} parent=1 // pred_region
      %s3044 = ssub.s32 512, 512
      %3045 = vsyncadd [#allocation3], %s3044
      %s3046 = sshll.u32 [#allocation2], 4
      %s3047 = int_to_ptr.vmem [resolvable:$true] %s3046
      %3052 = dma.vmem_to_hbm [thread:$0]  %s3047, 512, %s11, [#allocation3], 128, 128, 8
    $region49: #{tpu_custom_call.1} parent=1 // pred_fallthru
      _
    // Predicated region
    $region50: #{tpu_custom_call.1} parent=1 // pred_check
      _
    $region51: #{tpu_custom_call.1} parent=1 // pred_check_branch
      %3054 = sbr.rel (0) target = $region53
    $region52: #{tpu_custom_call.1} parent=1 // pred_region
      %3055 = dma.done [#allocation3], 512
    $region53: #{tpu_custom_call.1} parent=1 // pred_fallthru
      _
    %3056 = vsyncpa [#allocation3], 1

</llo_original>
